<compile_context>
chip_gen: v7x
topology: tpu7x:2x2x1
jax: 0.10.0
libtpu: 0.0.40
codegen_flags: <defaults>
</compile_context>

<pallas_src>
import functools

import jax
import jax.numpy as jnp
from jax.experimental import pallas as pl
from jax.experimental.pallas import tpu as pltpu


# -----------------------------------------------------------------------------
# Pallas kernel
# -----------------------------------------------------------------------------
def _relu_dilconv(x, pad_ref, w, b, d, H, W):
    """relu(x) -> dilated 3x3 conv (single im2col MXU matmul) -> +bias.

    x       : (H, W, C)        f32 value
    pad_ref : (H+2d, W+2d, C)  f32 VMEM scratch; border already zeroed
    w       : (9*C, Cout)      bf16, tap-major rows (row = k*C + cin, k=kh*3+kw)
    b       : (Cout,)          f32
    returns : (H*W, Cout)      f32
    """
    C = x.shape[-1]
    # Pad in VMEM: write relu(x) into the interior of the zero-bordered buffer.
    pad_ref[d:d + H, d:d + W, :] = jnp.maximum(x, 0.0)
    # im2col: 9 shifted taps concatenated along channels -> K = 9*C matmul.
    taps = []
    for k in range(9):
        kh, kw = divmod(k, 3)
        taps.append(
            pad_ref[kh * d:kh * d + H, kw * d:kw * d + W, :].reshape(H * W, C))
    a = jnp.concatenate(taps, axis=-1).astype(jnp.bfloat16)   # (H*W, 9*C)
    acc = jnp.dot(a, w, preferred_element_type=jnp.float32)   # one MXU matmul
    return acc + b


def _block_kernel(x_ref, w1_ref, b1_ref, w2_ref, b2_ref, o_ref, pad_ref,
                  *, d, H, W):
    # x_ref  : (1, H, W, C)        f32
    # w*_ref : (9*C, C)            bf16
    # b*_ref : (1, C)              f32
    # o_ref  : (1, H*W//2, 2*C)    f32  (lane-dense packed output)
    # pad_ref: (H+2d, W+2d, C)     f32 VMEM scratch shared by both convs
    M = H * W
    pad_ref[...] = jnp.zeros_like(pad_ref)   # zero halo; interior overwritten
    h = _relu_dilconv(x_ref[0], pad_ref, w1_ref[...], b1_ref[0], d, H, W)
    h = h.reshape(H, W, h.shape[-1])
    out = _relu_dilconv(h, pad_ref, w2_ref[...], b2_ref[0], d, H, W)
    # Lane-dense packing: row p = [pixel p | pixel p + M//2] (128 lanes).
    packed = jnp.concatenate([out[:M // 2, :], out[M // 2:, :]], axis=1)
    o_ref[0] = packed.astype(o_ref.dtype)


# -----------------------------------------------------------------------------
# Wrapper
# -----------------------------------------------------------------------------
def block_forward(x_nchw, params, dilation=1):
    """Pallas forward for Block. x_nchw: (N, 64, H, W) f32 -> (N, 64, H, W)."""
    N, C, H, W = x_nchw.shape
    assert C == 64, "Block fixes channels at 64"
    M = H * W
    assert M % 2 == 0 and W % 8 == 0
    d = int(dilation)

    x = jnp.transpose(x_nchw, (0, 2, 3, 1)).astype(jnp.float32)   # NHWC

    # Hoisted weight reshape + bf16 cast (tap-major (9,Cin,Cout) -> (9*Cin,Cout)).
    w1 = params["w1"].reshape(9 * C, C).astype(jnp.bfloat16)
    w2 = params["w2"].reshape(9 * C, C).astype(jnp.bfloat16)
    b1 = params["b1"].reshape(1, C).astype(jnp.float32)
    b2 = params["b2"].reshape(1, C).astype(jnp.float32)

    kernel = functools.partial(_block_kernel, d=d, H=H, W=W)
    out_packed = pl.pallas_call(
        kernel,
        out_shape=jax.ShapeDtypeStruct((N, M // 2, 2 * C), jnp.float32),
        grid=(N,),
        in_specs=[
            pl.BlockSpec((1, H, W, C), lambda n: (n, 0, 0, 0)),
            pl.BlockSpec((9 * C, C), lambda n: (0, 0)),
            pl.BlockSpec((1, C), lambda n: (0, 0)),
            pl.BlockSpec((9 * C, C), lambda n: (0, 0)),
            pl.BlockSpec((1, C), lambda n: (0, 0)),
        ],
        out_specs=pl.BlockSpec((1, M // 2, 2 * C), lambda n: (n, 0, 0)),
        scratch_shapes=[pltpu.VMEM((H + 2 * d, W + 2 * d, C), jnp.float32)],
        compiler_params=pltpu.CompilerParams(
            dimension_semantics=("parallel",)),
    )(x, w1, b1, w2, b2)

    # Undo the lane-dense packing; XLA fuses this with the NHWC->NCHW
    # transpose below into a single copy.
    y = out_packed.reshape(N, M // 2, 2, C)
    y = jnp.transpose(y, (0, 2, 1, 3)).reshape(N, H, W, C)
    return jnp.transpose(y, (0, 3, 1, 2))


# -----------------------------------------------------------------------------
# Pure-JAX reference (f32) and synthetic parameters
# -----------------------------------------------------------------------------
def block_reference(x_nchw, params, dilation=1):
    d = int(dilation)
    C = x_nchw.shape[1]
    x = jnp.transpose(x_nchw, (0, 2, 3, 1))

    def conv(h, w, b):
        y = jax.lax.conv_general_dilated(
            h, w.reshape(3, 3, C, C), window_strides=(1, 1),
            padding=[(d, d), (d, d)], rhs_dilation=(d, d),
            dimension_numbers=("NHWC", "HWIO", "NHWC"))
        return y + b

    h = conv(jax.nn.relu(x), params["w1"], params["b1"])
    out = conv(jax.nn.relu(h), params["w2"], params["b2"])
    return jnp.transpose(out, (0, 3, 1, 2))


def init_params(key, channels=64):
    """Weights in (kh*3+kw, Cin, Cout) order; equivalent to the PyTorch conv
    weight W_torch[o, i, kh, kw] via w[kh*3+kw, i, o] = W_torch[o, i, kh, kw]."""
    std = 1.0 / jnp.sqrt(9.0 * channels)   # ~ PyTorch default conv init scale
    k1, k2, k3, k4 = jax.random.split(key, 4)
    return {
        "w1": jax.random.normal(k1, (9, channels, channels), jnp.float32) * std,
        "b1": jax.random.normal(k2, (channels,), jnp.float32) * std,
        "w2": jax.random.normal(k3, (9, channels, channels), jnp.float32) * std,
        "b2": jax.random.normal(k4, (channels,), jnp.float32) * std,
    }


if __name__ == "__main__":
    key = jax.random.PRNGKey(0)
    k_in, k_par = jax.random.split(key)

    # Module fixes channels at 64; small batch / spatial for the demo.
    N, C, H, W = 2, 64, 16, 16
    x = jax.random.normal(k_in, (N, C, H, W), jnp.float32)
    params = init_params(k_par, channels=C)

    fwd = jax.jit(block_forward, static_argnames=("dilation",))
    for dil in (1, 2):   # default Dilation=1 plus a dilated configuration
        out = fwd(x, params, dilation=dil)
        jax.block_until_ready(out)
        assert out.shape == (N, C, H, W), out.shape
        assert bool(jnp.all(jnp.isfinite(out)))
        ref = block_reference(x, params, dilation=dil)
        err = float(jnp.max(jnp.abs(out - ref)))
        assert err < 1e-1, f"dilation={dil}: max abs err {err} vs f32 reference"
    print("KERNEL_OK")
</pallas_src>

<mosaic_0001>
module attributes {stable_mosaic.version = 11 : i64} {
  func.func @_block_kernel(%arg0: i32, %arg1: memref<1x16x16x64xf32, #tpu.memory_space<vmem>>, %arg2: memref<576x64xbf16, #tpu.memory_space<vmem>>, %arg3: memref<1x64xf32, #tpu.memory_space<vmem>>, %arg4: memref<576x64xbf16, #tpu.memory_space<vmem>>, %arg5: memref<1x64xf32, #tpu.memory_space<vmem>>, %arg6: memref<1x128x128xf32, #tpu.memory_space<vmem>>, %arg7: memref<18x18x64xf32, #tpu.memory_space<vmem>>) attributes {dimension_semantics = [#tpu.dimension_semantics<parallel>], iteration_bounds = array<i64: 2>, scalar_prefetch = 0 : i64, scratch_operands = 1 : i64, tpu.core_type = #tpu.core_type<tc>, window_params = [{transform_indices = @transform_0, window_bounds = array<i64: 1, 16, 16, 64>}, {pipeline_mode = #tpu.pipeline_mode<synchronous>, transform_indices = @transform_1, window_bounds = array<i64: 576, 64>}, {pipeline_mode = #tpu.pipeline_mode<synchronous>, transform_indices = @transform_2, window_bounds = array<i64: 1, 64>}, {pipeline_mode = #tpu.pipeline_mode<synchronous>, transform_indices = @transform_3, window_bounds = array<i64: 576, 64>}, {pipeline_mode = #tpu.pipeline_mode<synchronous>, transform_indices = @transform_4, window_bounds = array<i64: 1, 64>}, {transform_indices = @transform_5, window_bounds = array<i64: 1, 128, 128>}]} {
    %cst = arith.constant 0.000000e+00 : f32
    %0 = vector.broadcast %cst : f32 to vector<18x18x64xf32>
    %c0 = arith.constant 0 : index
    %c0_0 = arith.constant 0 : index
    %c0_1 = arith.constant 0 : index
    %1 = vector.load %arg7[%c0, %c0_0, %c0_1] : memref<18x18x64xf32, #tpu.memory_space<vmem>>, vector<18x18x64xf32>
    tpu.vector_store %arg7[%c0, %c0_0, %c0_1], %0 {strides = array<i32>} : memref<18x18x64xf32, #tpu.memory_space<vmem>>, vector<18x18x64xf32>,
    %c0_2 = arith.constant 0 : index
    %c0_3 = arith.constant 0 : index
    %c0_4 = arith.constant 0 : index
    %c0_5 = arith.constant 0 : index
    %2 = vector.load %arg1[%c0_2, %c0_3, %c0_4, %c0_5] : memref<1x16x16x64xf32, #tpu.memory_space<vmem>>, vector<1x16x16x64xf32>
    %3 = vector.shape_cast %2 : vector<1x16x16x64xf32> to vector<16x16x64xf32>
    %c0_6 = arith.constant 0 : index
    %c0_7 = arith.constant 0 : index
    %4 = vector.load %arg2[%c0_6, %c0_7] : memref<576x64xbf16, #tpu.memory_space<vmem>>, vector<576x64xbf16>
    %c0_8 = arith.constant 0 : index
    %c0_9 = arith.constant 0 : index
    %5 = vector.load %arg3[%c0_8, %c0_9] : memref<1x64xf32, #tpu.memory_space<vmem>>, vector<1x64xf32>
    %6 = vector.shape_cast %5 : vector<1x64xf32> to vector<64xf32>
    %cst_10 = arith.constant 0.000000e+00 : f32
    %7 = vector.broadcast %cst_10 : f32 to vector<16x16x64xf32>
    %8 = arith.maximumf %3, %7 : vector<16x16x64xf32>
    %c1 = arith.constant 1 : index
    %c1_11 = arith.constant 1 : index
    %c0_12 = arith.constant 0 : index
    %9 = vector.load %arg7[%c1, %c1_11, %c0_12] : memref<18x18x64xf32, #tpu.memory_space<vmem>>, vector<16x16x64xf32>
    tpu.vector_store %arg7[%c1, %c1_11, %c0_12], %8 {strides = array<i32>} : memref<18x18x64xf32, #tpu.memory_space<vmem>>, vector<16x16x64xf32>,
    %c0_13 = arith.constant 0 : index
    %c0_14 = arith.constant 0 : index
    %c0_15 = arith.constant 0 : index
    %10 = vector.load %arg7[%c0_13, %c0_14, %c0_15] : memref<18x18x64xf32, #tpu.memory_space<vmem>>, vector<16x16x64xf32>
    %11 = vector.shape_cast %10 : vector<16x16x64xf32> to vector<256x64xf32>
    %c0_16 = arith.constant 0 : index
    %c1_17 = arith.constant 1 : index
    %c0_18 = arith.constant 0 : index
    %12 = vector.load %arg7[%c0_16, %c1_17, %c0_18] : memref<18x18x64xf32, #tpu.memory_space<vmem>>, vector<16x16x64xf32>
    %13 = vector.shape_cast %12 : vector<16x16x64xf32> to vector<256x64xf32>
    %c0_19 = arith.constant 0 : index
    %c2 = arith.constant 2 : index
    %c0_20 = arith.constant 0 : index
    %14 = vector.load %arg7[%c0_19, %c2, %c0_20] : memref<18x18x64xf32, #tpu.memory_space<vmem>>, vector<16x16x64xf32>
    %15 = vector.shape_cast %14 : vector<16x16x64xf32> to vector<256x64xf32>
    %c1_21 = arith.constant 1 : index
    %c0_22 = arith.constant 0 : index
    %c0_23 = arith.constant 0 : index
    %16 = vector.load %arg7[%c1_21, %c0_22, %c0_23] : memref<18x18x64xf32, #tpu.memory_space<vmem>>, vector<16x16x64xf32>
    %17 = vector.shape_cast %16 : vector<16x16x64xf32> to vector<256x64xf32>
    %c1_24 = arith.constant 1 : index
    %c1_25 = arith.constant 1 : index
    %c0_26 = arith.constant 0 : index
    %18 = vector.load %arg7[%c1_24, %c1_25, %c0_26] : memref<18x18x64xf32, #tpu.memory_space<vmem>>, vector<16x16x64xf32>
    %19 = vector.shape_cast %18 : vector<16x16x64xf32> to vector<256x64xf32>
    %c1_27 = arith.constant 1 : index
    %c2_28 = arith.constant 2 : index
    %c0_29 = arith.constant 0 : index
    %20 = vector.load %arg7[%c1_27, %c2_28, %c0_29] : memref<18x18x64xf32, #tpu.memory_space<vmem>>, vector<16x16x64xf32>
    %21 = vector.shape_cast %20 : vector<16x16x64xf32> to vector<256x64xf32>
    %c2_30 = arith.constant 2 : index
    %c0_31 = arith.constant 0 : index
    %c0_32 = arith.constant 0 : index
    %22 = vector.load %arg7[%c2_30, %c0_31, %c0_32] : memref<18x18x64xf32, #tpu.memory_space<vmem>>, vector<16x16x64xf32>
    %23 = vector.shape_cast %22 : vector<16x16x64xf32> to vector<256x64xf32>
    %c2_33 = arith.constant 2 : index
    %c1_34 = arith.constant 1 : index
    %c0_35 = arith.constant 0 : index
    %24 = vector.load %arg7[%c2_33, %c1_34, %c0_35] : memref<18x18x64xf32, #tpu.memory_space<vmem>>, vector<16x16x64xf32>
    %25 = vector.shape_cast %24 : vector<16x16x64xf32> to vector<256x64xf32>
    %c2_36 = arith.constant 2 : index
    %c2_37 = arith.constant 2 : index
    %c0_38 = arith.constant 0 : index
    %26 = vector.load %arg7[%c2_36, %c2_37, %c0_38] : memref<18x18x64xf32, #tpu.memory_space<vmem>>, vector<16x16x64xf32>
    %27 = vector.shape_cast %26 : vector<16x16x64xf32> to vector<256x64xf32>
    %28 = tpu.concatenate %11, %13, %15, %17, %19, %21, %23, %25, %27 in 1 : vector<256x64xf32>, vector<256x64xf32>, vector<256x64xf32>, vector<256x64xf32>, vector<256x64xf32>, vector<256x64xf32>, vector<256x64xf32>, vector<256x64xf32>, vector<256x64xf32> -> vector<256x576xf32>
    %29 = arith.truncf %28 : vector<256x576xf32> to vector<256x576xbf16>
    %cst_39 = arith.constant dense<0.000000e+00> : vector<256x64xf32>
    %30 = tpu.matmul %29, %4, %cst_39 {dimension_numbers = #tpu.dot_dimension_numbers<[1], [0], [0], [1], [0, 0, 1, 1], [], []>} : vector<256x576xbf16>, vector<576x64xbf16>, vector<256x64xf32> -> vector<256x64xf32>
    %31 = vector.shape_cast %6 : vector<64xf32> to vector<1x64xf32>
    %32 = vector.broadcast %31 : vector<1x64xf32> to vector<256x64xf32>
    %33 = arith.addf %30, %32 : vector<256x64xf32>
    %34 = vector.shape_cast %33 : vector<256x64xf32> to vector<16x16x64xf32>
    %c0_40 = arith.constant 0 : index
    %c0_41 = arith.constant 0 : index
    %35 = vector.load %arg4[%c0_40, %c0_41] : memref<576x64xbf16, #tpu.memory_space<vmem>>, vector<576x64xbf16>
    %c0_42 = arith.constant 0 : index
    %c0_43 = arith.constant 0 : index
    %36 = vector.load %arg5[%c0_42, %c0_43] : memref<1x64xf32, #tpu.memory_space<vmem>>, vector<1x64xf32>
    %37 = vector.shape_cast %36 : vector<1x64xf32> to vector<64xf32>
    %cst_44 = arith.constant 0.000000e+00 : f32
    %38 = vector.broadcast %cst_44 : f32 to vector<16x16x64xf32>
    %39 = arith.maximumf %34, %38 : vector<16x16x64xf32>
    %c1_45 = arith.constant 1 : index
    %c1_46 = arith.constant 1 : index
    %c0_47 = arith.constant 0 : index
    %40 = vector.load %arg7[%c1_45, %c1_46, %c0_47] : memref<18x18x64xf32, #tpu.memory_space<vmem>>, vector<16x16x64xf32>
    tpu.vector_store %arg7[%c1_45, %c1_46, %c0_47], %39 {strides = array<i32>} : memref<18x18x64xf32, #tpu.memory_space<vmem>>, vector<16x16x64xf32>,
    %c0_48 = arith.constant 0 : index
    %c0_49 = arith.constant 0 : index
    %c0_50 = arith.constant 0 : index
    %41 = vector.load %arg7[%c0_48, %c0_49, %c0_50] : memref<18x18x64xf32, #tpu.memory_space<vmem>>, vector<16x16x64xf32>
    %42 = vector.shape_cast %41 : vector<16x16x64xf32> to vector<256x64xf32>
    %c0_51 = arith.constant 0 : index
    %c1_52 = arith.constant 1 : index
    %c0_53 = arith.constant 0 : index
    %43 = vector.load %arg7[%c0_51, %c1_52, %c0_53] : memref<18x18x64xf32, #tpu.memory_space<vmem>>, vector<16x16x64xf32>
    %44 = vector.shape_cast %43 : vector<16x16x64xf32> to vector<256x64xf32>
    %c0_54 = arith.constant 0 : index
    %c2_55 = arith.constant 2 : index
    %c0_56 = arith.constant 0 : index
    %45 = vector.load %arg7[%c0_54, %c2_55, %c0_56] : memref<18x18x64xf32, #tpu.memory_space<vmem>>, vector<16x16x64xf32>
    %46 = vector.shape_cast %45 : vector<16x16x64xf32> to vector<256x64xf32>
    %c1_57 = arith.constant 1 : index
    %c0_58 = arith.constant 0 : index
    %c0_59 = arith.constant 0 : index
    %47 = vector.load %arg7[%c1_57, %c0_58, %c0_59] : memref<18x18x64xf32, #tpu.memory_space<vmem>>, vector<16x16x64xf32>
    %48 = vector.shape_cast %47 : vector<16x16x64xf32> to vector<256x64xf32>
    %c1_60 = arith.constant 1 : index
    %c1_61 = arith.constant 1 : index
    %c0_62 = arith.constant 0 : index
    %49 = vector.load %arg7[%c1_60, %c1_61, %c0_62] : memref<18x18x64xf32, #tpu.memory_space<vmem>>, vector<16x16x64xf32>
    %50 = vector.shape_cast %49 : vector<16x16x64xf32> to vector<256x64xf32>
    %c1_63 = arith.constant 1 : index
    %c2_64 = arith.constant 2 : index
    %c0_65 = arith.constant 0 : index
    %51 = vector.load %arg7[%c1_63, %c2_64, %c0_65] : memref<18x18x64xf32, #tpu.memory_space<vmem>>, vector<16x16x64xf32>
    %52 = vector.shape_cast %51 : vector<16x16x64xf32> to vector<256x64xf32>
    %c2_66 = arith.constant 2 : index
    %c0_67 = arith.constant 0 : index
    %c0_68 = arith.constant 0 : index
    %53 = vector.load %arg7[%c2_66, %c0_67, %c0_68] : memref<18x18x64xf32, #tpu.memory_space<vmem>>, vector<16x16x64xf32>
    %54 = vector.shape_cast %53 : vector<16x16x64xf32> to vector<256x64xf32>
    %c2_69 = arith.constant 2 : index
    %c1_70 = arith.constant 1 : index
    %c0_71 = arith.constant 0 : index
    %55 = vector.load %arg7[%c2_69, %c1_70, %c0_71] : memref<18x18x64xf32, #tpu.memory_space<vmem>>, vector<16x16x64xf32>
    %56 = vector.shape_cast %55 : vector<16x16x64xf32> to vector<256x64xf32>
    %c2_72 = arith.constant 2 : index
    %c2_73 = arith.constant 2 : index
    %c0_74 = arith.constant 0 : index
    %57 = vector.load %arg7[%c2_72, %c2_73, %c0_74] : memref<18x18x64xf32, #tpu.memory_space<vmem>>, vector<16x16x64xf32>
    %58 = vector.shape_cast %57 : vector<16x16x64xf32> to vector<256x64xf32>
    %59 = tpu.concatenate %42, %44, %46, %48, %50, %52, %54, %56, %58 in 1 : vector<256x64xf32>, vector<256x64xf32>, vector<256x64xf32>, vector<256x64xf32>, vector<256x64xf32>, vector<256x64xf32>, vector<256x64xf32>, vector<256x64xf32>, vector<256x64xf32> -> vector<256x576xf32>
    %60 = arith.truncf %59 : vector<256x576xf32> to vector<256x576xbf16>
    %cst_75 = arith.constant dense<0.000000e+00> : vector<256x64xf32>
    %61 = tpu.matmul %60, %35, %cst_75 {dimension_numbers = #tpu.dot_dimension_numbers<[1], [0], [0], [1], [0, 0, 1, 1], [], []>} : vector<256x576xbf16>, vector<576x64xbf16>, vector<256x64xf32> -> vector<256x64xf32>
    %62 = vector.shape_cast %37 : vector<64xf32> to vector<1x64xf32>
    %63 = vector.broadcast %62 : vector<1x64xf32> to vector<256x64xf32>
    %64 = arith.addf %61, %63 : vector<256x64xf32>
    %65 = vector.extract_strided_slice %64 {offsets = [0, 0], sizes = [128, 64], strides = [1, 1]} : vector<256x64xf32> to vector<128x64xf32>
    %66 = vector.extract_strided_slice %64 {offsets = [128, 0], sizes = [128, 64], strides = [1, 1]} : vector<256x64xf32> to vector<128x64xf32>
    %67 = tpu.concatenate %65, %66 in 1 : vector<128x64xf32>, vector<128x64xf32> -> vector<128x128xf32>
    %c0_76 = arith.constant 0 : index
    %c0_77 = arith.constant 0 : index
    %c0_78 = arith.constant 0 : index
    %68 = vector.load %arg6[%c0_76, %c0_77, %c0_78] : memref<1x128x128xf32, #tpu.memory_space<vmem>>, vector<1x128x128xf32>
    %69 = vector.shape_cast %68 : vector<1x128x128xf32> to vector<128x128xf32>
    %70 = vector.shape_cast %67 : vector<128x128xf32> to vector<1x128x128xf32>
    tpu.vector_store %arg6[%c0_76, %c0_77, %c0_78], %70 {strides = array<i32>} : memref<1x128x128xf32, #tpu.memory_space<vmem>>, vector<1x128x128xf32>,
    return
  }
  func.func @transform_0(%arg0: i32) -> (i32, i32, i32, i32) {
    %c0_i32 = arith.constant 0 : i32
    %c0_i32_0 = arith.constant 0 : i32
    %c0_i32_1 = arith.constant 0 : i32
    %c0_i32_2 = arith.constant 0 : i32
    return %arg0, %c0_i32, %c0_i32_0, %c0_i32_1 : i32, i32, i32, i32
  }
  func.func @transform_1(%arg0: i32) -> (i32, i32) {
    %c0_i32 = arith.constant 0 : i32
    %c0_i32_0 = arith.constant 0 : i32
    %c0_i32_1 = arith.constant 0 : i32
    return %c0_i32, %c0_i32_0 : i32, i32
  }
  func.func @transform_2(%arg0: i32) -> (i32, i32) {
    %c0_i32 = arith.constant 0 : i32
    %c0_i32_0 = arith.constant 0 : i32
    %c0_i32_1 = arith.constant 0 : i32
    return %c0_i32, %c0_i32_0 : i32, i32
  }
  func.func @transform_3(%arg0: i32) -> (i32, i32) {
    %c0_i32 = arith.constant 0 : i32
    %c0_i32_0 = arith.constant 0 : i32
    %c0_i32_1 = arith.constant 0 : i32
    return %c0_i32, %c0_i32_0 : i32, i32
  }
  func.func @transform_4(%arg0: i32) -> (i32, i32) {
    %c0_i32 = arith.constant 0 : i32
    %c0_i32_0 = arith.constant 0 : i32
    %c0_i32_1 = arith.constant 0 : i32
    return %c0_i32, %c0_i32_0 : i32, i32
  }
  func.func @transform_5(%arg0: i32) -> (i32, i32, i32) {
    %c0_i32 = arith.constant 0 : i32
    %c0_i32_0 = arith.constant 0 : i32
    %c0_i32_1 = arith.constant 0 : i32
    return %arg0, %c0_i32, %c0_i32_0 : i32, i32, i32
  }
}

</mosaic_0001>

<llo_original>
// kernel: block_forward.1
$region0: #{block_forward.1}
  #allocation0 [shape = 'u32[]', space=smem, size = 0x4, offset = 0x4, fixed_abs, tag = 'smem constant byte address 0x4 - core index']
  #allocation1 [shape = 'u32[144,128]{1,0:T(1,128)}', space=vmem, size = 0x12000, scoped, tag = 'internal scratch']
  #allocation2 [shape = 'f32[18,18,64]{2,1,0:T(8,128)}', space=vmem, size = 0x36000, scoped, tag = 'scratch operand']
  %s0 = inlined_call_operand.vmem [shape: f32[2,16,16,64], index: 0, kind: input, shape index: {}]
  %s1 = inlined_call_operand.vmem [shape: bf16[576,64], index: 1, kind: input, shape index: {}]
  %s2 = inlined_call_operand.vmem [shape: f32[1,64], index: 2, kind: input, shape index: {}]
  %s3 = inlined_call_operand.vmem [shape: bf16[576,64], index: 3, kind: input, shape index: {}]
  %s4 = inlined_call_operand.vmem [shape: f32[1,64], index: 4, kind: input, shape index: {}]
  %s5 = inlined_call_operand.vmem [shape: f32[2,128,128], index: 5, kind: output, shape index: {}]
  %s6 = sld [smem:[#allocation0]]
  $region53: #{block_forward.1} parent=0
    _
  %s8 = ssub.s32 1, %s6
  %s9 = scalar_select 0, %s8, %s6
  loop: start=0, step=1, limit=4
  $region2: #{block_forward.1} parent=0 // loop_pre_header
    _
  $region3: #{block_forward.1} parent=0 // loop_header
    %s11 = sphi 0, %s15
    %p12 = scmp.ge.s32.totalorder %s11, 4
    %s21 = sphi 0, %s23
    %s24 = sphi 0, %s21
    %s25 = sphi 0, %s24
    %s41 = sphi 0, %s25
    %s45 = sphi 0, %s45
    %s47 = sphi 0, %s45
    %s48 = sphi 0, %s47
    %s62 = sphi 0, %s48
    %s66 = sphi 0, %s66
    %s68 = sphi 0, %s66
    %s69 = sphi 0, %s68
    %s83 = sphi 0, %s69
    %s87 = sphi 0, %s87
    %s89 = sphi 0, %s87
    %s90 = sphi 0, %s89
    %s104 = sphi 0, %s90
    %s108 = sphi 0, %s108
    %s110 = sphi 0, %s108
    %s111 = sphi 0, %s110
    %s125 = sphi 0, %s111
    %s131 = sphi 0, %s133
    %s134 = sphi 0, %s131
    %s135 = sphi 0, %s134
    %s151 = sphi 0, %s135
  $region4: #{block_forward.1} parent=0 // loop_header_branch
    %14 = sbr.rel (%p12) target = $region8
  $region5: #{block_forward.1} parent=0 // loop_body
    %s16 = ssub.s32 %s11, 1
    %s17 = ssub.s32 %s11, 2
    %s18 = sadd.s32 %s11, 1
    %s19 = ssub.s32 %s11, %s18
    %p20 = scmp.eq.s32.totalorder %s19, 0
    %s22 = sadd.s32 %s21, 1
    %s23 = scalar_select %p20, %s21, %s22
    %p26 = pneg %p20
    %p27 = scmp.eq.s32.totalorder %s11, 1
    %p28 = por %p26, %p27
    %p29 = scmp.ne.s32.totalorder %s21, %s24
    %p30 = scmp.eq.s32.totalorder %s11, 0
    %p31 = por %p29, %p30
    %p32 = scmp.ne.s32.totalorder %s21, %s24
    %p33 = scmp.eq.s32.totalorder %s16, 1
    %p34 = por %p32, %p33
    %p35 = scmp.ne.s32.totalorder %s24, %s25
    %p36 = scmp.eq.s32.totalorder %s16, 0
    %p37 = por %p35, %p36
    %p38 = scmp.ne.s32.totalorder %s24, %s25
    %p39 = scmp.eq.s32.totalorder %s17, 1
    %p40 = por %p38, %p39
    %p42 = scmp.ne.s32.totalorder %s25, %s41
    %p43 = scmp.eq.s32.totalorder %s17, 0
    %p44 = por %p42, %p43
    %s46 = sadd.s32 %s45, 1
    %p49 = scmp.eq.s32.totalorder %s11, 1
    %p50 = scmp.ne.s32.totalorder %s45, %s47
    %p51 = scmp.eq.s32.totalorder %s11, 0
    %p52 = por %p50, %p51
    %p53 = scmp.ne.s32.totalorder %s45, %s47
    %p54 = scmp.eq.s32.totalorder %s16, 1
    %p55 = por %p53, %p54
    %p56 = scmp.ne.s32.totalorder %s47, %s48
    %p57 = scmp.eq.s32.totalorder %s16, 0
    %p58 = por %p56, %p57
    %p59 = scmp.ne.s32.totalorder %s47, %s48
    %p60 = scmp.eq.s32.totalorder %s17, 1
    %p61 = por %p59, %p60
    %p63 = scmp.ne.s32.totalorder %s48, %s62
    %p64 = scmp.eq.s32.totalorder %s17, 0
    %p65 = por %p63, %p64
    %s67 = sadd.s32 %s66, 1
    %p70 = scmp.eq.s32.totalorder %s11, 1
    %p71 = scmp.ne.s32.totalorder %s66, %s68
    %p72 = scmp.eq.s32.totalorder %s11, 0
    %p73 = por %p71, %p72
    %p74 = scmp.ne.s32.totalorder %s66, %s68
    %p75 = scmp.eq.s32.totalorder %s16, 1
    %p76 = por %p74, %p75
    %p77 = scmp.ne.s32.totalorder %s68, %s69
    %p78 = scmp.eq.s32.totalorder %s16, 0
    %p79 = por %p77, %p78
    %p80 = scmp.ne.s32.totalorder %s68, %s69
    %p81 = scmp.eq.s32.totalorder %s17, 1
    %p82 = por %p80, %p81
    %p84 = scmp.ne.s32.totalorder %s69, %s83
    %p85 = scmp.eq.s32.totalorder %s17, 0
    %p86 = por %p84, %p85
    %s88 = sadd.s32 %s87, 1
    %p91 = scmp.eq.s32.totalorder %s11, 1
    %p92 = scmp.ne.s32.totalorder %s87, %s89
    %p93 = scmp.eq.s32.totalorder %s11, 0
    %p94 = por %p92, %p93
    %p95 = scmp.ne.s32.totalorder %s87, %s89
    %p96 = scmp.eq.s32.totalorder %s16, 1
    %p97 = por %p95, %p96
    %p98 = scmp.ne.s32.totalorder %s89, %s90
    %p99 = scmp.eq.s32.totalorder %s16, 0
    %p100 = por %p98, %p99
    %p101 = scmp.ne.s32.totalorder %s89, %s90
    %p102 = scmp.eq.s32.totalorder %s17, 1
    %p103 = por %p101, %p102
    %p105 = scmp.ne.s32.totalorder %s90, %s104
    %p106 = scmp.eq.s32.totalorder %s17, 0
    %p107 = por %p105, %p106
    %s109 = sadd.s32 %s108, 1
    %p112 = scmp.eq.s32.totalorder %s11, 1
    %p113 = scmp.ne.s32.totalorder %s108, %s110
    %p114 = scmp.eq.s32.totalorder %s11, 0
    %p115 = por %p113, %p114
    %p116 = scmp.ne.s32.totalorder %s108, %s110
    %p117 = scmp.eq.s32.totalorder %s16, 1
    %p118 = por %p116, %p117
    %p119 = scmp.ne.s32.totalorder %s110, %s111
    %p120 = scmp.eq.s32.totalorder %s16, 0
    %p121 = por %p119, %p120
    %p122 = scmp.ne.s32.totalorder %s110, %s111
    %p123 = scmp.eq.s32.totalorder %s17, 1
    %p124 = por %p122, %p123
    %p126 = scmp.ne.s32.totalorder %s111, %s125
    %p127 = scmp.eq.s32.totalorder %s17, 0
    %p128 = por %p126, %p127
    %s129 = ssub.s32 %s11, %s18
    %p130 = scmp.eq.s32.totalorder %s129, 0
    %s132 = sadd.s32 %s131, 1
    %s133 = scalar_select %p130, %s131, %s132
    %p136 = pneg %p130
    %p137 = scmp.eq.s32.totalorder %s11, 1
    %p138 = por %p136, %p137
    %p139 = scmp.ne.s32.totalorder %s131, %s134
    %p140 = scmp.eq.s32.totalorder %s11, 0
    %p141 = por %p139, %p140
    %p142 = scmp.ne.s32.totalorder %s131, %s134
    %p143 = scmp.eq.s32.totalorder %s16, 1
    %p144 = por %p142, %p143
    %p145 = scmp.ne.s32.totalorder %s134, %s135
    %p146 = scmp.eq.s32.totalorder %s16, 0
    %p147 = por %p145, %p146
    %p148 = scmp.ne.s32.totalorder %s134, %s135
    %p149 = scmp.eq.s32.totalorder %s17, 1
    %p150 = por %p148, %p149
    %p152 = scmp.ne.s32.totalorder %s135, %s151
    %p153 = scmp.eq.s32.totalorder %s17, 0
    %p154 = por %p152, %p153
    %p155 = scmp.le.s32.totalorder 1, %s11
    %p156 = scmp.lt.s32.totalorder %s11, 3
    %p157 = pnand %p155, %p156
    %p158 = pneg %p157
    // Predicated region
    $region9: #{block_forward.1} parent=5 // pred_check
      _
    $region10: #{block_forward.1} parent=5 // pred_check_branch
      %160 = sbr.rel (%p157) target = $region12
    $region11: #{block_forward.1} parent=5 // pred_region
      %s161 = ssub.s32 %s11, 1
      // Predicated region
      $region13: #{block_forward.1} parent=11 // pred_check
        %p162 = pneg %p58
      $region14: #{block_forward.1} parent=11 // pred_check_branch
        %164 = sbr.rel (%p162) target = $region16
      $region15: #{block_forward.1} parent=11 // pred_region
        _
      $region16: #{block_forward.1} parent=11 // pred_fallthru
        _
      // Predicated region
      $region17: #{block_forward.1} parent=11 // pred_check
        %p165 = pneg %p79
      $region18: #{block_forward.1} parent=11 // pred_check_branch
        %167 = sbr.rel (%p165) target = $region20
      $region19: #{block_forward.1} parent=11 // pred_region
        _
      $region20: #{block_forward.1} parent=11 // pred_fallthru
        _
      // Predicated region
      $region21: #{block_forward.1} parent=11 // pred_check
        %p168 = pneg %p100
      $region22: #{block_forward.1} parent=11 // pred_check_branch
        %170 = sbr.rel (%p168) target = $region24
      $region23: #{block_forward.1} parent=11 // pred_region
        _
      $region24: #{block_forward.1} parent=11 // pred_fallthru
        _
      // Predicated region
      $region25: #{block_forward.1} parent=11 // pred_check
        %p171 = pneg %p121
      $region26: #{block_forward.1} parent=11 // pred_check_branch
        %173 = sbr.rel (%p171) target = $region28
      $region27: #{block_forward.1} parent=11 // pred_region
        _
      $region28: #{block_forward.1} parent=11 // pred_fallthru
        _
    $region12: #{block_forward.1} parent=5 // pred_fallthru
      _
    %p174 = scmp.lt.s32.totalorder %s11, 2
    // Predicated region
    $region29: #{block_forward.1} parent=5 // pred_check
      %p175 = pneg %p174
    $region30: #{block_forward.1} parent=5 // pred_check_branch
      %177 = sbr.rel (%p175) target = $region32
    $region31: #{block_forward.1} parent=5 // pred_region
      // Predicated region
      $region33: #{block_forward.1} parent=31 // pred_check
        %p178 = pneg %p31
      $region34: #{block_forward.1} parent=31 // pred_check_branch
        %180 = sbr.rel (%p178) target = $region36
      $region35: #{block_forward.1} parent=31 // pred_region
        %p181 = scmp.lt.s32.totalorder %s11, 1
        %s182 = scalar_select %p181, %s11, 1
        %s183 = smul.addr %s182, 32
        %s184 = smul.addr %s183, 8
        %s185 = scalar_lea.vmem %s0, %s184
      $region36: #{block_forward.1} parent=31 // pred_fallthru
        _
    $region32: #{block_forward.1} parent=5 // pred_fallthru
      _
    %p186 = scmp.le.s32.totalorder 1, %s11
    %p187 = scmp.lt.s32.totalorder %s11, 3
    %p188 = pnand %p186, %p187
    %p189 = pneg %p188
    // Predicated region
    $region37: #{block_forward.1} parent=5 // pred_check
      _
    $region38: #{block_forward.1} parent=5 // pred_check_branch
      %191 = sbr.rel (%p188) target = $region40
    $region39: #{block_forward.1} parent=5 // pred_region
      %s192 = ssub.s32 %s11, 1
      %p193 = scmp.lt.s32.totalorder %s16, 1
      %s194 = scalar_select %p193, %s16, 1
      %s195 = smul.addr %s194, 32
      %s196 = smul.addr %s195, 8
      %s197 = scalar_lea.vmem %s0, %s196
      %p198 = pneg %p37
      %p199 = pneg %p34
      %p200 = pneg %p58
      %p201 = pneg %p55
      %p202 = pneg %p79
      %p203 = pneg %p76
      %p204 = pneg %p100
      %p205 = pneg %p97
      %p206 = pneg %p121
      %p207 = pneg %p118
      %p208 = pneg %p147
      %p209 = pneg %p144
      %p210 = scmp.lt.s32.totalorder %s16, 1
      %s211 = scalar_select %p210, %s16, 1
      %s212 = smul.addr %s211, 16
      %s213 = smul.addr %s212, 8
      %s214 = scalar_lea.vmem %s5, %s213
      %p215 = scmp.lt.s32.totalorder %s16, 1
      %s216 = scalar_select %p215, %s16, 1
      %s217 = smul.addr %s216, 32
      %s218 = smul.addr %s217, 8
      %s219 = scalar_lea.vmem %s0, %s218
      %p220 = scmp.lt.s32.totalorder %s16, 1
      %s221 = scalar_select %p220, %s16, 1
      %s222 = smul.addr %s221, 16
      %s223 = smul.addr %s222, 8
      %s224 = scalar_lea.vmem %s5, %s223
      %vm226 = vcmask 523264
      %227 = vst.msk [vmem:[#allocation2] sm:$0xff] %vm226, 0.0
      %228 = vst.msk [vmem:[#allocation2 + $0x8] sm:$0xff] %vm226, 0.0
      %vm229 = vcmask 517120
      %230 = vst.msk [vmem:[#allocation2 + $0x10] sm:$0x3] %vm229, 0.0
      %231 = vst.msk [vmem:[#allocation2 + $0x18] sm:$0xff] %vm226, 0.0
      %232 = vst.msk [vmem:[#allocation2 + $0x20] sm:$0xff] %vm226, 0.0
      %233 = vst.msk [vmem:[#allocation2 + $0x28] sm:$0x3] %vm229, 0.0
      %234 = vst.msk [vmem:[#allocation2 + $0x30] sm:$0xff] %vm226, 0.0
      %235 = vst.msk [vmem:[#allocation2 + $0x38] sm:$0xff] %vm226, 0.0
      %236 = vst.msk [vmem:[#allocation2 + $0x40] sm:$0x3] %vm229, 0.0
      %237 = vst.msk [vmem:[#allocation2 + $0x48] sm:$0xff] %vm226, 0.0
      %238 = vst.msk [vmem:[#allocation2 + $0x50] sm:$0xff] %vm226, 0.0
      %239 = vst.msk [vmem:[#allocation2 + $0x58] sm:$0x3] %vm229, 0.0
      %240 = vst.msk [vmem:[#allocation2 + $0x60] sm:$0xff] %vm226, 0.0
      %241 = vst.msk [vmem:[#allocation2 + $0x68] sm:$0xff] %vm226, 0.0
      %242 = vst.msk [vmem:[#allocation2 + $0x70] sm:$0x3] %vm229, 0.0
      %243 = vst.msk [vmem:[#allocation2 + $0x78] sm:$0xff] %vm226, 0.0
      %244 = vst.msk [vmem:[#allocation2 + $0x80] sm:$0xff] %vm226, 0.0
      %245 = vst.msk [vmem:[#allocation2 + $0x88] sm:$0x3] %vm229, 0.0
      %246 = vst.msk [vmem:[#allocation2 + $0x90] sm:$0xff] %vm226, 0.0
      %247 = vst.msk [vmem:[#allocation2 + $0x98] sm:$0xff] %vm226, 0.0
      %248 = vst.msk [vmem:[#allocation2 + $0xa0] sm:$0x3] %vm229, 0.0
      %249 = vst.msk [vmem:[#allocation2 + $0xa8] sm:$0xff] %vm226, 0.0
      %250 = vst.msk [vmem:[#allocation2 + $0xb0] sm:$0xff] %vm226, 0.0
      %251 = vst.msk [vmem:[#allocation2 + $0xb8] sm:$0x3] %vm229, 0.0
      %252 = vst.msk [vmem:[#allocation2 + $0xc0] sm:$0xff] %vm226, 0.0
      %253 = vst.msk [vmem:[#allocation2 + $0xc8] sm:$0xff] %vm226, 0.0
      %254 = vst.msk [vmem:[#allocation2 + $0xd0] sm:$0x3] %vm229, 0.0
      %255 = vst.msk [vmem:[#allocation2 + $0xd8] sm:$0xff] %vm226, 0.0
      %256 = vst.msk [vmem:[#allocation2 + $0xe0] sm:$0xff] %vm226, 0.0
      %257 = vst.msk [vmem:[#allocation2 + $0xe8] sm:$0x3] %vm229, 0.0
      %258 = vst.msk [vmem:[#allocation2 + $0xf0] sm:$0xff] %vm226, 0.0
      %259 = vst.msk [vmem:[#allocation2 + $0xf8] sm:$0xff] %vm226, 0.0
      %260 = vst.msk [vmem:[#allocation2 + $0x100] sm:$0x3] %vm229, 0.0
      %261 = vst.msk [vmem:[#allocation2 + $0x108] sm:$0xff] %vm226, 0.0
      %262 = vst.msk [vmem:[#allocation2 + $0x110] sm:$0xff] %vm226, 0.0
      %263 = vst.msk [vmem:[#allocation2 + $0x118] sm:$0x3] %vm229, 0.0
      %264 = vst.msk [vmem:[#allocation2 + $0x120] sm:$0xff] %vm226, 0.0
      %265 = vst.msk [vmem:[#allocation2 + $0x128] sm:$0xff] %vm226, 0.0
      %266 = vst.msk [vmem:[#allocation2 + $0x130] sm:$0x3] %vm229, 0.0
      %267 = vst.msk [vmem:[#allocation2 + $0x138] sm:$0xff] %vm226, 0.0
      %268 = vst.msk [vmem:[#allocation2 + $0x140] sm:$0xff] %vm226, 0.0
      %269 = vst.msk [vmem:[#allocation2 + $0x148] sm:$0x3] %vm229, 0.0
      %270 = vst.msk [vmem:[#allocation2 + $0x150] sm:$0xff] %vm226, 0.0
      %271 = vst.msk [vmem:[#allocation2 + $0x158] sm:$0xff] %vm226, 0.0
      %272 = vst.msk [vmem:[#allocation2 + $0x160] sm:$0x3] %vm229, 0.0
      %273 = vst.msk [vmem:[#allocation2 + $0x168] sm:$0xff] %vm226, 0.0
      %274 = vst.msk [vmem:[#allocation2 + $0x170] sm:$0xff] %vm226, 0.0
      %275 = vst.msk [vmem:[#allocation2 + $0x178] sm:$0x3] %vm229, 0.0
      %276 = vst.msk [vmem:[#allocation2 + $0x180] sm:$0xff] %vm226, 0.0
      %277 = vst.msk [vmem:[#allocation2 + $0x188] sm:$0xff] %vm226, 0.0
      %278 = vst.msk [vmem:[#allocation2 + $0x190] sm:$0x3] %vm229, 0.0
      %279 = vst.msk [vmem:[#allocation2 + $0x198] sm:$0xff] %vm226, 0.0
      %280 = vst.msk [vmem:[#allocation2 + $0x1a0] sm:$0xff] %vm226, 0.0
      %281 = vst.msk [vmem:[#allocation2 + $0x1a8] sm:$0x3] %vm229, 0.0
      %v282 = vld [vmem:[%s219] sm:$0xff]
      %v283 = vld [vmem:[%s219 + $0x8] sm:$0xff]
      %v284 = vld [vmem:[%s219 + $0x10] sm:$0xff]
      %v285 = vld [vmem:[%s219 + $0x18] sm:$0xff]
      %v286 = vld [vmem:[%s219 + $0x20] sm:$0xff]
      %v287 = vld [vmem:[%s219 + $0x28] sm:$0xff]
      %v288 = vld [vmem:[%s219 + $0x30] sm:$0xff]
      %v289 = vld [vmem:[%s219 + $0x38] sm:$0xff]
      %v290 = vld [vmem:[%s219 + $0x40] sm:$0xff]
      %v291 = vld [vmem:[%s219 + $0x48] sm:$0xff]
      %v292 = vld [vmem:[%s219 + $0x50] sm:$0xff]
      %v293 = vld [vmem:[%s219 + $0x58] sm:$0xff]
      %v294 = vld [vmem:[%s219 + $0x60] sm:$0xff]
      %v295 = vld [vmem:[%s219 + $0x68] sm:$0xff]
      %v296 = vld [vmem:[%s219 + $0x70] sm:$0xff]
      %v297 = vld [vmem:[%s219 + $0x78] sm:$0xff]
      %v298 = vld [vmem:[%s219 + $0x80] sm:$0xff]
      %v299 = vld [vmem:[%s219 + $0x88] sm:$0xff]
      %v300 = vld [vmem:[%s219 + $0x90] sm:$0xff]
      %v301 = vld [vmem:[%s219 + $0x98] sm:$0xff]
      %v302 = vld [vmem:[%s219 + $0xa0] sm:$0xff]
      %v303 = vld [vmem:[%s219 + $0xa8] sm:$0xff]
      %v304 = vld [vmem:[%s219 + $0xb0] sm:$0xff]
      %v305 = vld [vmem:[%s219 + $0xb8] sm:$0xff]
      %v306 = vld [vmem:[%s219 + $0xc0] sm:$0xff]
      %v307 = vld [vmem:[%s219 + $0xc8] sm:$0xff]
      %v308 = vld [vmem:[%s219 + $0xd0] sm:$0xff]
      %v309 = vld [vmem:[%s219 + $0xd8] sm:$0xff]
      %v310 = vld [vmem:[%s219 + $0xe0] sm:$0xff]
      %v311 = vld [vmem:[%s219 + $0xe8] sm:$0xff]
      %v312 = vld [vmem:[%s219 + $0xf0] sm:$0xff]
      %v313 = vld [vmem:[%s219 + $0xf8] sm:$0xff]
      %v314 = vld [vmem:[%s1] sm:$0xf]
      %v315 = vld [vmem:[%s1 + $0x4] sm:$0xf]
      %v316 = vld [vmem:[%s1 + $0x8] sm:$0xf]
      %v317 = vld [vmem:[%s1 + $0xc] sm:$0xf]
      %v318 = vld [vmem:[%s1 + $0x10] sm:$0xf]
      %v319 = vld [vmem:[%s1 + $0x14] sm:$0xf]
      %v320 = vld [vmem:[%s1 + $0x18] sm:$0xf]
      %v321 = vld [vmem:[%s1 + $0x1c] sm:$0xf]
      %v322 = vld [vmem:[%s1 + $0x20] sm:$0xf]
      %v323 = vld [vmem:[%s1 + $0x24] sm:$0xf]
      %v324 = vld [vmem:[%s1 + $0x28] sm:$0xf]
      %v325 = vld [vmem:[%s1 + $0x2c] sm:$0xf]
      %v326 = vld [vmem:[%s1 + $0x30] sm:$0xf]
      %v327 = vld [vmem:[%s1 + $0x34] sm:$0xf]
      %v328 = vld [vmem:[%s1 + $0x38] sm:$0xf]
      %v329 = vld [vmem:[%s1 + $0x3c] sm:$0xf]
      %v330 = vld [vmem:[%s1 + $0x40] sm:$0xf]
      %v331 = vld [vmem:[%s1 + $0x44] sm:$0xf]
      %v332 = vld [vmem:[%s1 + $0x48] sm:$0xf]
      %v333 = vld [vmem:[%s1 + $0x4c] sm:$0xf]
      %v334 = vld [vmem:[%s1 + $0x50] sm:$0xf]
      %v335 = vld [vmem:[%s1 + $0x54] sm:$0xf]
      %v336 = vld [vmem:[%s1 + $0x58] sm:$0xf]
      %v337 = vld [vmem:[%s1 + $0x5c] sm:$0xf]
      %v338 = vld [vmem:[%s1 + $0x60] sm:$0xf]
      %v339 = vld [vmem:[%s1 + $0x64] sm:$0xf]
      %v340 = vld [vmem:[%s1 + $0x68] sm:$0xf]
      %v341 = vld [vmem:[%s1 + $0x6c] sm:$0xf]
      %v342 = vld [vmem:[%s1 + $0x70] sm:$0xf]
      %v343 = vld [vmem:[%s1 + $0x74] sm:$0xf]
      %v344 = vld [vmem:[%s1 + $0x78] sm:$0xf]
      %v345 = vld [vmem:[%s1 + $0x7c] sm:$0xf]
      %v346 = vld [vmem:[%s1 + $0x80] sm:$0xf]
      %v347 = vld [vmem:[%s1 + $0x84] sm:$0xf]
      %v348 = vld [vmem:[%s1 + $0x88] sm:$0xf]
      %v349 = vld [vmem:[%s1 + $0x8c] sm:$0xf]
      %v350 = vld [vmem:[%s1 + $0x90] sm:$0xf]
      %v351 = vld [vmem:[%s1 + $0x94] sm:$0xf]
      %v352 = vld [vmem:[%s1 + $0x98] sm:$0xf]
      %v353 = vld [vmem:[%s1 + $0x9c] sm:$0xf]
      %v354 = vld [vmem:[%s1 + $0xa0] sm:$0xf]
      %v355 = vld [vmem:[%s1 + $0xa4] sm:$0xf]
      %v356 = vld [vmem:[%s1 + $0xa8] sm:$0xf]
      %v357 = vld [vmem:[%s1 + $0xac] sm:$0xf]
      %v358 = vld [vmem:[%s1 + $0xb0] sm:$0xf]
      %v359 = vld [vmem:[%s1 + $0xb4] sm:$0xf]
      %v360 = vld [vmem:[%s1 + $0xb8] sm:$0xf]
      %v361 = vld [vmem:[%s1 + $0xbc] sm:$0xf]
      %v362 = vld [vmem:[%s1 + $0xc0] sm:$0xf]
      %v363 = vld [vmem:[%s1 + $0xc4] sm:$0xf]
      %v364 = vld [vmem:[%s1 + $0xc8] sm:$0xf]
      %v365 = vld [vmem:[%s1 + $0xcc] sm:$0xf]
      %v366 = vld [vmem:[%s1 + $0xd0] sm:$0xf]
      %v367 = vld [vmem:[%s1 + $0xd4] sm:$0xf]
      %v368 = vld [vmem:[%s1 + $0xd8] sm:$0xf]
      %v369 = vld [vmem:[%s1 + $0xdc] sm:$0xf]
      %v370 = vld [vmem:[%s1 + $0xe0] sm:$0xf]
      %v371 = vld [vmem:[%s1 + $0xe4] sm:$0xf]
      %v372 = vld [vmem:[%s1 + $0xe8] sm:$0xf]
      %v373 = vld [vmem:[%s1 + $0xec] sm:$0xf]
      %v374 = vld [vmem:[%s1 + $0xf0] sm:$0xf]
      %v375 = vld [vmem:[%s1 + $0xf4] sm:$0xf]
      %v376 = vld [vmem:[%s1 + $0xf8] sm:$0xf]
      %v377 = vld [vmem:[%s1 + $0xfc] sm:$0xf]
      %v378 = vld [vmem:[%s1 + $0x100] sm:$0xf]
      %v379 = vld [vmem:[%s1 + $0x104] sm:$0xf]
      %v380 = vld [vmem:[%s1 + $0x108] sm:$0xf]
      %v381 = vld [vmem:[%s1 + $0x10c] sm:$0xf]
      %v382 = vld [vmem:[%s1 + $0x110] sm:$0xf]
      %v383 = vld [vmem:[%s1 + $0x114] sm:$0xf]
      %v384 = vld [vmem:[%s1 + $0x118] sm:$0xf]
      %v385 = vld [vmem:[%s1 + $0x11c] sm:$0xf]
      %v386 = vld [vmem:[%s2] sm:$0x1]
      %v387 = vmax.f32 %v282, 0.0
      %v388 = vmax.f32 %v283, 0.0
      %v389 = vmax.f32 %v284, 0.0
      %v390 = vmax.f32 %v285, 0.0
      %v391 = vmax.f32 %v286, 0.0
      %v392 = vmax.f32 %v287, 0.0
      %v393 = vmax.f32 %v288, 0.0
      %v394 = vmax.f32 %v289, 0.0
      %v395 = vmax.f32 %v290, 0.0
      %v396 = vmax.f32 %v291, 0.0
      %v397 = vmax.f32 %v292, 0.0
      %v398 = vmax.f32 %v293, 0.0
      %v399 = vmax.f32 %v294, 0.0
      %v400 = vmax.f32 %v295, 0.0
      %v401 = vmax.f32 %v296, 0.0
      %v402 = vmax.f32 %v297, 0.0
      %v403 = vmax.f32 %v298, 0.0
      %v404 = vmax.f32 %v299, 0.0
      %v405 = vmax.f32 %v300, 0.0
      %v406 = vmax.f32 %v301, 0.0
      %v407 = vmax.f32 %v302, 0.0
      %v408 = vmax.f32 %v303, 0.0
      %v409 = vmax.f32 %v304, 0.0
      %v410 = vmax.f32 %v305, 0.0
      %v411 = vmax.f32 %v306, 0.0
      %v412 = vmax.f32 %v307, 0.0
      %v413 = vmax.f32 %v308, 0.0
      %v414 = vmax.f32 %v309, 0.0
      %v415 = vmax.f32 %v310, 0.0
      %v416 = vmax.f32 %v311, 0.0
      %v417 = vmax.f32 %v312, 0.0
      %v418 = vmax.f32 %v313, 0.0
      %s419 = scalar_lea.vmem [#allocation2], 24
      %420 = vst.msk [vmem:[%s419 + $0x1] sm:$0xff] %vm226, %v387
      %421 = vst.msk [vmem:[%s419 + $0x9] sm:$0xff] %vm226, %v388
      %422 = vst.msk [vmem:[%s419 + $0x19] sm:$0xff] %vm226, %v389
      %423 = vst.msk [vmem:[%s419 + $0x21] sm:$0xff] %vm226, %v390
      %424 = vst.msk [vmem:[%s419 + $0x31] sm:$0xff] %vm226, %v391
      %425 = vst.msk [vmem:[%s419 + $0x39] sm:$0xff] %vm226, %v392
      %426 = vst.msk [vmem:[%s419 + $0x49] sm:$0xff] %vm226, %v393
      %427 = vst.msk [vmem:[%s419 + $0x51] sm:$0xff] %vm226, %v394
      %428 = vst.msk [vmem:[%s419 + $0x61] sm:$0xff] %vm226, %v395
      %429 = vst.msk [vmem:[%s419 + $0x69] sm:$0xff] %vm226, %v396
      %430 = vst.msk [vmem:[%s419 + $0x79] sm:$0xff] %vm226, %v397
      %431 = vst.msk [vmem:[%s419 + $0x81] sm:$0xff] %vm226, %v398
      %432 = vst.msk [vmem:[%s419 + $0x91] sm:$0xff] %vm226, %v399
      %433 = vst.msk [vmem:[%s419 + $0x99] sm:$0xff] %vm226, %v400
      %434 = vst.msk [vmem:[%s419 + $0xa9] sm:$0xff] %vm226, %v401
      %435 = vst.msk [vmem:[%s419 + $0xb1] sm:$0xff] %vm226, %v402
      %436 = vst.msk [vmem:[%s419 + $0xc1] sm:$0xff] %vm226, %v403
      %437 = vst.msk [vmem:[%s419 + $0xc9] sm:$0xff] %vm226, %v404
      %438 = vst.msk [vmem:[%s419 + $0xd9] sm:$0xff] %vm226, %v405
      %439 = vst.msk [vmem:[%s419 + $0xe1] sm:$0xff] %vm226, %v406
      %440 = vst.msk [vmem:[%s419 + $0xf1] sm:$0xff] %vm226, %v407
      %441 = vst.msk [vmem:[%s419 + $0xf9] sm:$0xff] %vm226, %v408
      %442 = vst.msk [vmem:[%s419 + $0x109] sm:$0xff] %vm226, %v409
      %443 = vst.msk [vmem:[%s419 + $0x111] sm:$0xff] %vm226, %v410
      %444 = vst.msk [vmem:[%s419 + $0x121] sm:$0xff] %vm226, %v411
      %445 = vst.msk [vmem:[%s419 + $0x129] sm:$0xff] %vm226, %v412
      %446 = vst.msk [vmem:[%s419 + $0x139] sm:$0xff] %vm226, %v413
      %447 = vst.msk [vmem:[%s419 + $0x141] sm:$0xff] %vm226, %v414
      %448 = vst.msk [vmem:[%s419 + $0x151] sm:$0xff] %vm226, %v415
      %449 = vst.msk [vmem:[%s419 + $0x159] sm:$0xff] %vm226, %v416
      %450 = vst.msk [vmem:[%s419 + $0x169] sm:$0xff] %vm226, %v417
      %451 = vst.msk [vmem:[%s419 + $0x171] sm:$0xff] %vm226, %v418
      %v452 = vld [vmem:[#allocation2] sm:$0xff]
      %v453 = vld [vmem:[#allocation2 + $0x8] sm:$0xff]
      %v454 = vld [vmem:[#allocation2 + $0x18] sm:$0xff]
      %v455 = vld [vmem:[#allocation2 + $0x20] sm:$0xff]
      %v456 = vld [vmem:[#allocation2 + $0x30] sm:$0xff]
      %v457 = vld [vmem:[#allocation2 + $0x38] sm:$0xff]
      %v458 = vld [vmem:[#allocation2 + $0x48] sm:$0xff]
      %v459 = vld [vmem:[#allocation2 + $0x50] sm:$0xff]
      %v460 = vld [vmem:[#allocation2 + $0x60] sm:$0xff]
      %v461 = vld [vmem:[#allocation2 + $0x68] sm:$0xff]
      %v462 = vld [vmem:[#allocation2 + $0x78] sm:$0xff]
      %v463 = vld [vmem:[#allocation2 + $0x80] sm:$0xff]
      %v464 = vld [vmem:[#allocation2 + $0x90] sm:$0xff]
      %v465 = vld [vmem:[#allocation2 + $0x98] sm:$0xff]
      %v466 = vld [vmem:[#allocation2 + $0xa8] sm:$0xff]
      %v467 = vld [vmem:[#allocation2 + $0xb0] sm:$0xff]
      %v468 = vld [vmem:[#allocation2 + $0xc0] sm:$0xff]
      %v469 = vld [vmem:[#allocation2 + $0xc8] sm:$0xff]
      %v470 = vld [vmem:[#allocation2 + $0xd8] sm:$0xff]
      %v471 = vld [vmem:[#allocation2 + $0xe0] sm:$0xff]
      %v472 = vld [vmem:[#allocation2 + $0xf0] sm:$0xff]
      %v473 = vld [vmem:[#allocation2 + $0xf8] sm:$0xff]
      %v474 = vld [vmem:[#allocation2 + $0x108] sm:$0xff]
      %v475 = vld [vmem:[#allocation2 + $0x110] sm:$0xff]
      %v476 = vld [vmem:[#allocation2 + $0x120] sm:$0xff]
      %v477 = vld [vmem:[#allocation2 + $0x128] sm:$0xff]
      %v478 = vld [vmem:[#allocation2 + $0x138] sm:$0xff]
      %v479 = vld [vmem:[#allocation2 + $0x140] sm:$0xff]
      %v480 = vld [vmem:[#allocation2 + $0x150] sm:$0xff]
      %v481 = vld [vmem:[#allocation2 + $0x158] sm:$0xff]
      %v482 = vld [vmem:[#allocation2 + $0x168] sm:$0xff]
      %v483 = vld [vmem:[#allocation2 + $0x170] sm:$0xff]
      %v484 = vld [vmem:[#allocation2 + $0x1] sm:$0xff]
      %v485 = vld [vmem:[#allocation2 + $0x9] sm:$0xff]
      %v486 = vld [vmem:[#allocation2 + $0x19] sm:$0xff]
      %v487 = vld [vmem:[#allocation2 + $0x21] sm:$0xff]
      %v488 = vld [vmem:[#allocation2 + $0x31] sm:$0xff]
      %v489 = vld [vmem:[#allocation2 + $0x39] sm:$0xff]
      %v490 = vld [vmem:[#allocation2 + $0x49] sm:$0xff]
      %v491 = vld [vmem:[#allocation2 + $0x51] sm:$0xff]
      %v492 = vld [vmem:[#allocation2 + $0x61] sm:$0xff]
      %v493 = vld [vmem:[#allocation2 + $0x69] sm:$0xff]
      %v494 = vld [vmem:[#allocation2 + $0x79] sm:$0xff]
      %v495 = vld [vmem:[#allocation2 + $0x81] sm:$0xff]
      %v496 = vld [vmem:[#allocation2 + $0x91] sm:$0xff]
      %v497 = vld [vmem:[#allocation2 + $0x99] sm:$0xff]
      %v498 = vld [vmem:[#allocation2 + $0xa9] sm:$0xff]
      %v499 = vld [vmem:[#allocation2 + $0xb1] sm:$0xff]
      %v500 = vld [vmem:[#allocation2 + $0xc1] sm:$0xff]
      %v501 = vld [vmem:[#allocation2 + $0xc9] sm:$0xff]
      %v502 = vld [vmem:[#allocation2 + $0xd9] sm:$0xff]
      %v503 = vld [vmem:[#allocation2 + $0xe1] sm:$0xff]
      %v504 = vld [vmem:[#allocation2 + $0xf1] sm:$0xff]
      %v505 = vld [vmem:[#allocation2 + $0xf9] sm:$0xff]
      %v506 = vld [vmem:[#allocation2 + $0x109] sm:$0xff]
      %v507 = vld [vmem:[#allocation2 + $0x111] sm:$0xff]
      %v508 = vld [vmem:[#allocation2 + $0x121] sm:$0xff]
      %v509 = vld [vmem:[#allocation2 + $0x129] sm:$0xff]
      %v510 = vld [vmem:[#allocation2 + $0x139] sm:$0xff]
      %v511 = vld [vmem:[#allocation2 + $0x141] sm:$0xff]
      %v512 = vld [vmem:[#allocation2 + $0x151] sm:$0xff]
      %v513 = vld [vmem:[#allocation2 + $0x159] sm:$0xff]
      %v514 = vld [vmem:[#allocation2 + $0x169] sm:$0xff]
      %v515 = vld [vmem:[#allocation2 + $0x171] sm:$0xff]
      %v516 = vld [vmem:[#allocation2 + $0x2] sm:$0xff]
      %v517 = vld [vmem:[#allocation2 + $0xa] sm:$0xff]
      %v518 = vld [vmem:[#allocation2 + $0x1a] sm:$0xff]
      %v519 = vld [vmem:[#allocation2 + $0x22] sm:$0xff]
      %v520 = vld [vmem:[#allocation2 + $0x32] sm:$0xff]
      %v521 = vld [vmem:[#allocation2 + $0x3a] sm:$0xff]
      %v522 = vld [vmem:[#allocation2 + $0x4a] sm:$0xff]
      %v523 = vld [vmem:[#allocation2 + $0x52] sm:$0xff]
      %v524 = vld [vmem:[#allocation2 + $0x62] sm:$0xff]
      %v525 = vld [vmem:[#allocation2 + $0x6a] sm:$0xff]
      %v526 = vld [vmem:[#allocation2 + $0x7a] sm:$0xff]
      %v527 = vld [vmem:[#allocation2 + $0x82] sm:$0xff]
      %v528 = vld [vmem:[#allocation2 + $0x92] sm:$0xff]
      %v529 = vld [vmem:[#allocation2 + $0x9a] sm:$0xff]
      %v530 = vld [vmem:[#allocation2 + $0xaa] sm:$0xff]
      %v531 = vld [vmem:[#allocation2 + $0xb2] sm:$0xff]
      %v532 = vld [vmem:[#allocation2 + $0xc2] sm:$0xff]
      %v533 = vld [vmem:[#allocation2 + $0xca] sm:$0xff]
      %v534 = vld [vmem:[#allocation2 + $0xda] sm:$0xff]
      %v535 = vld [vmem:[#allocation2 + $0xe2] sm:$0xff]
      %v536 = vld [vmem:[#allocation2 + $0xf2] sm:$0xff]
      %v537 = vld [vmem:[#allocation2 + $0xfa] sm:$0xff]
      %v538 = vld [vmem:[#allocation2 + $0x10a] sm:$0xff]
      %v539 = vld [vmem:[#allocation2 + $0x112] sm:$0xff]
      %v540 = vld [vmem:[#allocation2 + $0x122] sm:$0xff]
      %v541 = vld [vmem:[#allocation2 + $0x12a] sm:$0xff]
      %v542 = vld [vmem:[#allocation2 + $0x13a] sm:$0xff]
      %v543 = vld [vmem:[#allocation2 + $0x142] sm:$0xff]
      %v544 = vld [vmem:[#allocation2 + $0x152] sm:$0xff]
      %v545 = vld [vmem:[#allocation2 + $0x15a] sm:$0xff]
      %v546 = vld [vmem:[#allocation2 + $0x16a] sm:$0xff]
      %v547 = vld [vmem:[#allocation2 + $0x172] sm:$0xff]
      %v548 = vld [vmem:[%s419] sm:$0xff]
      %v549 = vld [vmem:[%s419 + $0x8] sm:$0xff]
      %v550 = vld [vmem:[%s419 + $0x18] sm:$0xff]
      %v551 = vld [vmem:[%s419 + $0x20] sm:$0xff]
      %v552 = vld [vmem:[%s419 + $0x30] sm:$0xff]
      %v553 = vld [vmem:[%s419 + $0x38] sm:$0xff]
      %v554 = vld [vmem:[%s419 + $0x48] sm:$0xff]
      %v555 = vld [vmem:[%s419 + $0x50] sm:$0xff]
      %v556 = vld [vmem:[%s419 + $0x60] sm:$0xff]
      %v557 = vld [vmem:[%s419 + $0x68] sm:$0xff]
      %v558 = vld [vmem:[%s419 + $0x78] sm:$0xff]
      %v559 = vld [vmem:[%s419 + $0x80] sm:$0xff]
      %v560 = vld [vmem:[%s419 + $0x90] sm:$0xff]
      %v561 = vld [vmem:[%s419 + $0x98] sm:$0xff]
      %v562 = vld [vmem:[%s419 + $0xa8] sm:$0xff]
      %v563 = vld [vmem:[%s419 + $0xb0] sm:$0xff]
      %v564 = vld [vmem:[%s419 + $0xc0] sm:$0xff]
      %v565 = vld [vmem:[%s419 + $0xc8] sm:$0xff]
      %v566 = vld [vmem:[%s419 + $0xd8] sm:$0xff]
      %v567 = vld [vmem:[%s419 + $0xe0] sm:$0xff]
      %v568 = vld [vmem:[%s419 + $0xf0] sm:$0xff]
      %v569 = vld [vmem:[%s419 + $0xf8] sm:$0xff]
      %v570 = vld [vmem:[%s419 + $0x108] sm:$0xff]
      %v571 = vld [vmem:[%s419 + $0x110] sm:$0xff]
      %v572 = vld [vmem:[%s419 + $0x120] sm:$0xff]
      %v573 = vld [vmem:[%s419 + $0x128] sm:$0xff]
      %v574 = vld [vmem:[%s419 + $0x138] sm:$0xff]
      %v575 = vld [vmem:[%s419 + $0x140] sm:$0xff]
      %v576 = vld [vmem:[%s419 + $0x150] sm:$0xff]
      %v577 = vld [vmem:[%s419 + $0x158] sm:$0xff]
      %v578 = vld [vmem:[%s419 + $0x168] sm:$0xff]
      %v579 = vld [vmem:[%s419 + $0x170] sm:$0xff]
      %v580 = vld [vmem:[%s419 + $0x1] sm:$0xff]
      %v581 = vld [vmem:[%s419 + $0x9] sm:$0xff]
      %v582 = vld [vmem:[%s419 + $0x19] sm:$0xff]
      %v583 = vld [vmem:[%s419 + $0x21] sm:$0xff]
      %v584 = vld [vmem:[%s419 + $0x31] sm:$0xff]
      %v585 = vld [vmem:[%s419 + $0x39] sm:$0xff]
      %v586 = vld [vmem:[%s419 + $0x49] sm:$0xff]
      %v587 = vld [vmem:[%s419 + $0x51] sm:$0xff]
      %v588 = vld [vmem:[%s419 + $0x61] sm:$0xff]
      %v589 = vld [vmem:[%s419 + $0x69] sm:$0xff]
      %v590 = vld [vmem:[%s419 + $0x79] sm:$0xff]
      %v591 = vld [vmem:[%s419 + $0x81] sm:$0xff]
      %v592 = vld [vmem:[%s419 + $0x91] sm:$0xff]
      %v593 = vld [vmem:[%s419 + $0x99] sm:$0xff]
      %v594 = vld [vmem:[%s419 + $0xa9] sm:$0xff]
      %v595 = vld [vmem:[%s419 + $0xb1] sm:$0xff]
      %v596 = vld [vmem:[%s419 + $0xc1] sm:$0xff]
      %v597 = vld [vmem:[%s419 + $0xc9] sm:$0xff]
      %v598 = vld [vmem:[%s419 + $0xd9] sm:$0xff]
      %v599 = vld [vmem:[%s419 + $0xe1] sm:$0xff]
      %v600 = vld [vmem:[%s419 + $0xf1] sm:$0xff]
      %v601 = vld [vmem:[%s419 + $0xf9] sm:$0xff]
      %v602 = vld [vmem:[%s419 + $0x109] sm:$0xff]
      %v603 = vld [vmem:[%s419 + $0x111] sm:$0xff]
      %v604 = vld [vmem:[%s419 + $0x121] sm:$0xff]
      %v605 = vld [vmem:[%s419 + $0x129] sm:$0xff]
      %v606 = vld [vmem:[%s419 + $0x139] sm:$0xff]
      %v607 = vld [vmem:[%s419 + $0x141] sm:$0xff]
      %v608 = vld [vmem:[%s419 + $0x151] sm:$0xff]
      %v609 = vld [vmem:[%s419 + $0x159] sm:$0xff]
      %v610 = vld [vmem:[%s419 + $0x169] sm:$0xff]
      %v611 = vld [vmem:[%s419 + $0x171] sm:$0xff]
      %v612 = vld [vmem:[%s419 + $0x2] sm:$0xff]
      %v613 = vld [vmem:[%s419 + $0xa] sm:$0xff]
      %v614 = vld [vmem:[%s419 + $0x1a] sm:$0xff]
      %v615 = vld [vmem:[%s419 + $0x22] sm:$0xff]
      %v616 = vld [vmem:[%s419 + $0x32] sm:$0xff]
      %v617 = vld [vmem:[%s419 + $0x3a] sm:$0xff]
      %v618 = vld [vmem:[%s419 + $0x4a] sm:$0xff]
      %v619 = vld [vmem:[%s419 + $0x52] sm:$0xff]
      %v620 = vld [vmem:[%s419 + $0x62] sm:$0xff]
      %v621 = vld [vmem:[%s419 + $0x6a] sm:$0xff]
      %v622 = vld [vmem:[%s419 + $0x7a] sm:$0xff]
      %v623 = vld [vmem:[%s419 + $0x82] sm:$0xff]
      %v624 = vld [vmem:[%s419 + $0x92] sm:$0xff]
      %v625 = vld [vmem:[%s419 + $0x9a] sm:$0xff]
      %v626 = vld [vmem:[%s419 + $0xaa] sm:$0xff]
      %v627 = vld [vmem:[%s419 + $0xb2] sm:$0xff]
      %v628 = vld [vmem:[%s419 + $0xc2] sm:$0xff]
      %v629 = vld [vmem:[%s419 + $0xca] sm:$0xff]
      %v630 = vld [vmem:[%s419 + $0xda] sm:$0xff]
      %v631 = vld [vmem:[%s419 + $0xe2] sm:$0xff]
      %v632 = vld [vmem:[%s419 + $0xf2] sm:$0xff]
      %v633 = vld [vmem:[%s419 + $0xfa] sm:$0xff]
      %v634 = vld [vmem:[%s419 + $0x10a] sm:$0xff]
      %v635 = vld [vmem:[%s419 + $0x112] sm:$0xff]
      %v636 = vld [vmem:[%s419 + $0x122] sm:$0xff]
      %v637 = vld [vmem:[%s419 + $0x12a] sm:$0xff]
      %v638 = vld [vmem:[%s419 + $0x13a] sm:$0xff]
      %v639 = vld [vmem:[%s419 + $0x142] sm:$0xff]
      %v640 = vld [vmem:[%s419 + $0x152] sm:$0xff]
      %v641 = vld [vmem:[%s419 + $0x15a] sm:$0xff]
      %v642 = vld [vmem:[%s419 + $0x16a] sm:$0xff]
      %v643 = vld [vmem:[%s419 + $0x172] sm:$0xff]
      %s644 = scalar_lea.vmem [#allocation2], 48
      %v645 = vld [vmem:[%s644] sm:$0xff]
      %v646 = vld [vmem:[%s644 + $0x8] sm:$0xff]
      %v647 = vld [vmem:[%s644 + $0x18] sm:$0xff]
      %v648 = vld [vmem:[%s644 + $0x20] sm:$0xff]
      %v649 = vld [vmem:[%s644 + $0x30] sm:$0xff]
      %v650 = vld [vmem:[%s644 + $0x38] sm:$0xff]
      %v651 = vld [vmem:[%s644 + $0x48] sm:$0xff]
      %v652 = vld [vmem:[%s644 + $0x50] sm:$0xff]
      %v653 = vld [vmem:[%s644 + $0x60] sm:$0xff]
      %v654 = vld [vmem:[%s644 + $0x68] sm:$0xff]
      %v655 = vld [vmem:[%s644 + $0x78] sm:$0xff]
      %v656 = vld [vmem:[%s644 + $0x80] sm:$0xff]
      %v657 = vld [vmem:[%s644 + $0x90] sm:$0xff]
      %v658 = vld [vmem:[%s644 + $0x98] sm:$0xff]
      %v659 = vld [vmem:[%s644 + $0xa8] sm:$0xff]
      %v660 = vld [vmem:[%s644 + $0xb0] sm:$0xff]
      %v661 = vld [vmem:[%s644 + $0xc0] sm:$0xff]
      %v662 = vld [vmem:[%s644 + $0xc8] sm:$0xff]
      %v663 = vld [vmem:[%s644 + $0xd8] sm:$0xff]
      %v664 = vld [vmem:[%s644 + $0xe0] sm:$0xff]
      %v665 = vld [vmem:[%s644 + $0xf0] sm:$0xff]
      %v666 = vld [vmem:[%s644 + $0xf8] sm:$0xff]
      %v667 = vld [vmem:[%s644 + $0x108] sm:$0xff]
      %v668 = vld [vmem:[%s644 + $0x110] sm:$0xff]
      %v669 = vld [vmem:[%s644 + $0x120] sm:$0xff]
      %v670 = vld [vmem:[%s644 + $0x128] sm:$0xff]
      %v671 = vld [vmem:[%s644 + $0x138] sm:$0xff]
      %v672 = vld [vmem:[%s644 + $0x140] sm:$0xff]
      %v673 = vld [vmem:[%s644 + $0x150] sm:$0xff]
      %v674 = vld [vmem:[%s644 + $0x158] sm:$0xff]
      %v675 = vld [vmem:[%s644 + $0x168] sm:$0xff]
      %v676 = vld [vmem:[%s644 + $0x170] sm:$0xff]
      %v677 = vld [vmem:[%s644 + $0x1] sm:$0xff]
      %v678 = vld [vmem:[%s644 + $0x9] sm:$0xff]
      %v679 = vld [vmem:[%s644 + $0x19] sm:$0xff]
      %v680 = vld [vmem:[%s644 + $0x21] sm:$0xff]
      %v681 = vld [vmem:[%s644 + $0x31] sm:$0xff]
      %v682 = vld [vmem:[%s644 + $0x39] sm:$0xff]
      %v683 = vld [vmem:[%s644 + $0x49] sm:$0xff]
      %v684 = vld [vmem:[%s644 + $0x51] sm:$0xff]
      %v685 = vld [vmem:[%s644 + $0x61] sm:$0xff]
      %v686 = vld [vmem:[%s644 + $0x69] sm:$0xff]
      %v687 = vld [vmem:[%s644 + $0x79] sm:$0xff]
      %v688 = vld [vmem:[%s644 + $0x81] sm:$0xff]
      %v689 = vld [vmem:[%s644 + $0x91] sm:$0xff]
      %v690 = vld [vmem:[%s644 + $0x99] sm:$0xff]
      %v691 = vld [vmem:[%s644 + $0xa9] sm:$0xff]
      %v692 = vld [vmem:[%s644 + $0xb1] sm:$0xff]
      %v693 = vld [vmem:[%s644 + $0xc1] sm:$0xff]
      %v694 = vld [vmem:[%s644 + $0xc9] sm:$0xff]
      %v695 = vld [vmem:[%s644 + $0xd9] sm:$0xff]
      %v696 = vld [vmem:[%s644 + $0xe1] sm:$0xff]
      %v697 = vld [vmem:[%s644 + $0xf1] sm:$0xff]
      %v698 = vld [vmem:[%s644 + $0xf9] sm:$0xff]
      %v699 = vld [vmem:[%s644 + $0x109] sm:$0xff]
      %v700 = vld [vmem:[%s644 + $0x111] sm:$0xff]
      %v701 = vld [vmem:[%s644 + $0x121] sm:$0xff]
      %v702 = vld [vmem:[%s644 + $0x129] sm:$0xff]
      %v703 = vld [vmem:[%s644 + $0x139] sm:$0xff]
      %v704 = vld [vmem:[%s644 + $0x141] sm:$0xff]
      %v705 = vld [vmem:[%s644 + $0x151] sm:$0xff]
      %v706 = vld [vmem:[%s644 + $0x159] sm:$0xff]
      %v707 = vld [vmem:[%s644 + $0x169] sm:$0xff]
      %v708 = vld [vmem:[%s644 + $0x171] sm:$0xff]
      %v709 = vld [vmem:[%s644 + $0x2] sm:$0xff]
      %v710 = vld [vmem:[%s644 + $0xa] sm:$0xff]
      %v711 = vld [vmem:[%s644 + $0x1a] sm:$0xff]
      %v712 = vld [vmem:[%s644 + $0x22] sm:$0xff]
      %v713 = vld [vmem:[%s644 + $0x32] sm:$0xff]
      %v714 = vld [vmem:[%s644 + $0x3a] sm:$0xff]
      %v715 = vld [vmem:[%s644 + $0x4a] sm:$0xff]
      %v716 = vld [vmem:[%s644 + $0x52] sm:$0xff]
      %v717 = vld [vmem:[%s644 + $0x62] sm:$0xff]
      %v718 = vld [vmem:[%s644 + $0x6a] sm:$0xff]
      %v719 = vld [vmem:[%s644 + $0x7a] sm:$0xff]
      %v720 = vld [vmem:[%s644 + $0x82] sm:$0xff]
      %v721 = vld [vmem:[%s644 + $0x92] sm:$0xff]
      %v722 = vld [vmem:[%s644 + $0x9a] sm:$0xff]
      %v723 = vld [vmem:[%s644 + $0xaa] sm:$0xff]
      %v724 = vld [vmem:[%s644 + $0xb2] sm:$0xff]
      %v725 = vld [vmem:[%s644 + $0xc2] sm:$0xff]
      %v726 = vld [vmem:[%s644 + $0xca] sm:$0xff]
      %v727 = vld [vmem:[%s644 + $0xda] sm:$0xff]
      %v728 = vld [vmem:[%s644 + $0xe2] sm:$0xff]
      %v729 = vld [vmem:[%s644 + $0xf2] sm:$0xff]
      %v730 = vld [vmem:[%s644 + $0xfa] sm:$0xff]
      %v731 = vld [vmem:[%s644 + $0x10a] sm:$0xff]
      %v732 = vld [vmem:[%s644 + $0x112] sm:$0xff]
      %v733 = vld [vmem:[%s644 + $0x122] sm:$0xff]
      %v734 = vld [vmem:[%s644 + $0x12a] sm:$0xff]
      %v735 = vld [vmem:[%s644 + $0x13a] sm:$0xff]
      %v736 = vld [vmem:[%s644 + $0x142] sm:$0xff]
      %v737 = vld [vmem:[%s644 + $0x152] sm:$0xff]
      %v738 = vld [vmem:[%s644 + $0x15a] sm:$0xff]
      %v739 = vld [vmem:[%s644 + $0x16a] sm:$0xff]
      %v740 = vld [vmem:[%s644 + $0x172] sm:$0xff]
      %773 = vrot.lane.b32.xlu0 %v484, 64
      %v774 = vpop.permute.xlu0 %773
      %775 = vrot.lane.b32.xlu0 %v485, 64
      %v776 = vpop.permute.xlu0 %775
      %777 = vrot.lane.b32.xlu0 %v486, 64
      %v778 = vpop.permute.xlu0 %777
      %779 = vrot.lane.b32.xlu0 %v487, 64
      %v780 = vpop.permute.xlu0 %779
      %781 = vrot.lane.b32.xlu0 %v488, 64
      %v782 = vpop.permute.xlu0 %781
      %783 = vrot.lane.b32.xlu0 %v489, 64
      %v784 = vpop.permute.xlu0 %783
      %785 = vrot.lane.b32.xlu0 %v490, 64
      %v786 = vpop.permute.xlu0 %785
      %787 = vrot.lane.b32.xlu0 %v491, 64
      %v788 = vpop.permute.xlu0 %787
      %789 = vrot.lane.b32.xlu0 %v492, 64
      %v790 = vpop.permute.xlu0 %789
      %791 = vrot.lane.b32.xlu0 %v493, 64
      %v792 = vpop.permute.xlu0 %791
      %793 = vrot.lane.b32.xlu0 %v494, 64
      %v794 = vpop.permute.xlu0 %793
      %795 = vrot.lane.b32.xlu0 %v495, 64
      %v796 = vpop.permute.xlu0 %795
      %797 = vrot.lane.b32.xlu0 %v496, 64
      %v798 = vpop.permute.xlu0 %797
      %799 = vrot.lane.b32.xlu0 %v497, 64
      %v800 = vpop.permute.xlu0 %799
      %801 = vrot.lane.b32.xlu0 %v498, 64
      %v802 = vpop.permute.xlu0 %801
      %803 = vrot.lane.b32.xlu0 %v499, 64
      %v804 = vpop.permute.xlu0 %803
      %805 = vrot.lane.b32.xlu0 %v500, 64
      %v806 = vpop.permute.xlu0 %805
      %807 = vrot.lane.b32.xlu0 %v501, 64
      %v808 = vpop.permute.xlu0 %807
      %809 = vrot.lane.b32.xlu0 %v502, 64
      %v810 = vpop.permute.xlu0 %809
      %811 = vrot.lane.b32.xlu0 %v503, 64
      %v812 = vpop.permute.xlu0 %811
      %813 = vrot.lane.b32.xlu0 %v504, 64
      %v814 = vpop.permute.xlu0 %813
      %815 = vrot.lane.b32.xlu0 %v505, 64
      %v816 = vpop.permute.xlu0 %815
      %817 = vrot.lane.b32.xlu0 %v506, 64
      %v818 = vpop.permute.xlu0 %817
      %819 = vrot.lane.b32.xlu0 %v507, 64
      %v820 = vpop.permute.xlu0 %819
      %821 = vrot.lane.b32.xlu0 %v508, 64
      %v822 = vpop.permute.xlu0 %821
      %823 = vrot.lane.b32.xlu0 %v509, 64
      %v824 = vpop.permute.xlu0 %823
      %825 = vrot.lane.b32.xlu0 %v510, 64
      %v826 = vpop.permute.xlu0 %825
      %827 = vrot.lane.b32.xlu0 %v511, 64
      %v828 = vpop.permute.xlu0 %827
      %829 = vrot.lane.b32.xlu0 %v512, 64
      %v830 = vpop.permute.xlu0 %829
      %831 = vrot.lane.b32.xlu0 %v513, 64
      %v832 = vpop.permute.xlu0 %831
      %833 = vrot.lane.b32.xlu0 %v514, 64
      %v834 = vpop.permute.xlu0 %833
      %835 = vrot.lane.b32.xlu0 %v515, 64
      %v836 = vpop.permute.xlu0 %835
      %901 = vrot.lane.b32.xlu0 %v548, 64
      %v902 = vpop.permute.xlu0 %901
      %903 = vrot.lane.b32.xlu0 %v549, 64
      %v904 = vpop.permute.xlu0 %903
      %905 = vrot.lane.b32.xlu0 %v550, 64
      %v906 = vpop.permute.xlu0 %905
      %907 = vrot.lane.b32.xlu0 %v551, 64
      %v908 = vpop.permute.xlu0 %907
      %909 = vrot.lane.b32.xlu0 %v552, 64
      %v910 = vpop.permute.xlu0 %909
      %911 = vrot.lane.b32.xlu0 %v553, 64
      %v912 = vpop.permute.xlu0 %911
      %913 = vrot.lane.b32.xlu0 %v554, 64
      %v914 = vpop.permute.xlu0 %913
      %915 = vrot.lane.b32.xlu0 %v555, 64
      %v916 = vpop.permute.xlu0 %915
      %917 = vrot.lane.b32.xlu0 %v556, 64
      %v918 = vpop.permute.xlu0 %917
      %919 = vrot.lane.b32.xlu0 %v557, 64
      %v920 = vpop.permute.xlu0 %919
      %921 = vrot.lane.b32.xlu0 %v558, 64
      %v922 = vpop.permute.xlu0 %921
      %923 = vrot.lane.b32.xlu0 %v559, 64
      %v924 = vpop.permute.xlu0 %923
      %925 = vrot.lane.b32.xlu0 %v560, 64
      %v926 = vpop.permute.xlu0 %925
      %927 = vrot.lane.b32.xlu0 %v561, 64
      %v928 = vpop.permute.xlu0 %927
      %929 = vrot.lane.b32.xlu0 %v562, 64
      %v930 = vpop.permute.xlu0 %929
      %931 = vrot.lane.b32.xlu0 %v563, 64
      %v932 = vpop.permute.xlu0 %931
      %933 = vrot.lane.b32.xlu0 %v564, 64
      %v934 = vpop.permute.xlu0 %933
      %935 = vrot.lane.b32.xlu0 %v565, 64
      %v936 = vpop.permute.xlu0 %935
      %937 = vrot.lane.b32.xlu0 %v566, 64
      %v938 = vpop.permute.xlu0 %937
      %939 = vrot.lane.b32.xlu0 %v567, 64
      %v940 = vpop.permute.xlu0 %939
      %941 = vrot.lane.b32.xlu0 %v568, 64
      %v942 = vpop.permute.xlu0 %941
      %943 = vrot.lane.b32.xlu0 %v569, 64
      %v944 = vpop.permute.xlu0 %943
      %945 = vrot.lane.b32.xlu0 %v570, 64
      %v946 = vpop.permute.xlu0 %945
      %947 = vrot.lane.b32.xlu0 %v571, 64
      %v948 = vpop.permute.xlu0 %947
      %949 = vrot.lane.b32.xlu0 %v572, 64
      %v950 = vpop.permute.xlu0 %949
      %951 = vrot.lane.b32.xlu0 %v573, 64
      %v952 = vpop.permute.xlu0 %951
      %953 = vrot.lane.b32.xlu0 %v574, 64
      %v954 = vpop.permute.xlu0 %953
      %955 = vrot.lane.b32.xlu0 %v575, 64
      %v956 = vpop.permute.xlu0 %955
      %957 = vrot.lane.b32.xlu0 %v576, 64
      %v958 = vpop.permute.xlu0 %957
      %959 = vrot.lane.b32.xlu0 %v577, 64
      %v960 = vpop.permute.xlu0 %959
      %961 = vrot.lane.b32.xlu0 %v578, 64
      %v962 = vpop.permute.xlu0 %961
      %963 = vrot.lane.b32.xlu0 %v579, 64
      %v964 = vpop.permute.xlu0 %963
      %1029 = vrot.lane.b32.xlu0 %v612, 64
      %v1030 = vpop.permute.xlu0 %1029
      %1031 = vrot.lane.b32.xlu0 %v613, 64
      %v1032 = vpop.permute.xlu0 %1031
      %1033 = vrot.lane.b32.xlu0 %v614, 64
      %v1034 = vpop.permute.xlu0 %1033
      %1035 = vrot.lane.b32.xlu0 %v615, 64
      %v1036 = vpop.permute.xlu0 %1035
      %1037 = vrot.lane.b32.xlu0 %v616, 64
      %v1038 = vpop.permute.xlu0 %1037
      %1039 = vrot.lane.b32.xlu0 %v617, 64
      %v1040 = vpop.permute.xlu0 %1039
      %1041 = vrot.lane.b32.xlu0 %v618, 64
      %v1042 = vpop.permute.xlu0 %1041
      %1043 = vrot.lane.b32.xlu0 %v619, 64
      %v1044 = vpop.permute.xlu0 %1043
      %1045 = vrot.lane.b32.xlu0 %v620, 64
      %v1046 = vpop.permute.xlu0 %1045
      %1047 = vrot.lane.b32.xlu0 %v621, 64
      %v1048 = vpop.permute.xlu0 %1047
      %1049 = vrot.lane.b32.xlu0 %v622, 64
      %v1050 = vpop.permute.xlu0 %1049
      %1051 = vrot.lane.b32.xlu0 %v623, 64
      %v1052 = vpop.permute.xlu0 %1051
      %1053 = vrot.lane.b32.xlu0 %v624, 64
      %v1054 = vpop.permute.xlu0 %1053
      %1055 = vrot.lane.b32.xlu0 %v625, 64
      %v1056 = vpop.permute.xlu0 %1055
      %1057 = vrot.lane.b32.xlu0 %v626, 64
      %v1058 = vpop.permute.xlu0 %1057
      %1059 = vrot.lane.b32.xlu0 %v627, 64
      %v1060 = vpop.permute.xlu0 %1059
      %1061 = vrot.lane.b32.xlu0 %v628, 64
      %v1062 = vpop.permute.xlu0 %1061
      %1063 = vrot.lane.b32.xlu0 %v629, 64
      %v1064 = vpop.permute.xlu0 %1063
      %1065 = vrot.lane.b32.xlu0 %v630, 64
      %v1066 = vpop.permute.xlu0 %1065
      %1067 = vrot.lane.b32.xlu0 %v631, 64
      %v1068 = vpop.permute.xlu0 %1067
      %1069 = vrot.lane.b32.xlu0 %v632, 64
      %v1070 = vpop.permute.xlu0 %1069
      %1071 = vrot.lane.b32.xlu0 %v633, 64
      %v1072 = vpop.permute.xlu0 %1071
      %1073 = vrot.lane.b32.xlu0 %v634, 64
      %v1074 = vpop.permute.xlu0 %1073
      %1075 = vrot.lane.b32.xlu0 %v635, 64
      %v1076 = vpop.permute.xlu0 %1075
      %1077 = vrot.lane.b32.xlu0 %v636, 64
      %v1078 = vpop.permute.xlu0 %1077
      %1079 = vrot.lane.b32.xlu0 %v637, 64
      %v1080 = vpop.permute.xlu0 %1079
      %1081 = vrot.lane.b32.xlu0 %v638, 64
      %v1082 = vpop.permute.xlu0 %1081
      %1083 = vrot.lane.b32.xlu0 %v639, 64
      %v1084 = vpop.permute.xlu0 %1083
      %1085 = vrot.lane.b32.xlu0 %v640, 64
      %v1086 = vpop.permute.xlu0 %1085
      %1087 = vrot.lane.b32.xlu0 %v641, 64
      %v1088 = vpop.permute.xlu0 %1087
      %1089 = vrot.lane.b32.xlu0 %v642, 64
      %v1090 = vpop.permute.xlu0 %1089
      %1091 = vrot.lane.b32.xlu0 %v643, 64
      %v1092 = vpop.permute.xlu0 %1091
      %1157 = vrot.lane.b32.xlu0 %v677, 64
      %v1158 = vpop.permute.xlu0 %1157
      %1159 = vrot.lane.b32.xlu0 %v678, 64
      %v1160 = vpop.permute.xlu0 %1159
      %1161 = vrot.lane.b32.xlu0 %v679, 64
      %v1162 = vpop.permute.xlu0 %1161
      %1163 = vrot.lane.b32.xlu0 %v680, 64
      %v1164 = vpop.permute.xlu0 %1163
      %1165 = vrot.lane.b32.xlu0 %v681, 64
      %v1166 = vpop.permute.xlu0 %1165
      %1167 = vrot.lane.b32.xlu0 %v682, 64
      %v1168 = vpop.permute.xlu0 %1167
      %1169 = vrot.lane.b32.xlu0 %v683, 64
      %v1170 = vpop.permute.xlu0 %1169
      %1171 = vrot.lane.b32.xlu0 %v684, 64
      %v1172 = vpop.permute.xlu0 %1171
      %1173 = vrot.lane.b32.xlu0 %v685, 64
      %v1174 = vpop.permute.xlu0 %1173
      %1175 = vrot.lane.b32.xlu0 %v686, 64
      %v1176 = vpop.permute.xlu0 %1175
      %1177 = vrot.lane.b32.xlu0 %v687, 64
      %v1178 = vpop.permute.xlu0 %1177
      %1179 = vrot.lane.b32.xlu0 %v688, 64
      %v1180 = vpop.permute.xlu0 %1179
      %1181 = vrot.lane.b32.xlu0 %v689, 64
      %v1182 = vpop.permute.xlu0 %1181
      %1183 = vrot.lane.b32.xlu0 %v690, 64
      %v1184 = vpop.permute.xlu0 %1183
      %1185 = vrot.lane.b32.xlu0 %v691, 64
      %v1186 = vpop.permute.xlu0 %1185
      %1187 = vrot.lane.b32.xlu0 %v692, 64
      %v1188 = vpop.permute.xlu0 %1187
      %1189 = vrot.lane.b32.xlu0 %v693, 64
      %v1190 = vpop.permute.xlu0 %1189
      %1191 = vrot.lane.b32.xlu0 %v694, 64
      %v1192 = vpop.permute.xlu0 %1191
      %1193 = vrot.lane.b32.xlu0 %v695, 64
      %v1194 = vpop.permute.xlu0 %1193
      %1195 = vrot.lane.b32.xlu0 %v696, 64
      %v1196 = vpop.permute.xlu0 %1195
      %1197 = vrot.lane.b32.xlu0 %v697, 64
      %v1198 = vpop.permute.xlu0 %1197
      %1199 = vrot.lane.b32.xlu0 %v698, 64
      %v1200 = vpop.permute.xlu0 %1199
      %1201 = vrot.lane.b32.xlu0 %v699, 64
      %v1202 = vpop.permute.xlu0 %1201
      %1203 = vrot.lane.b32.xlu0 %v700, 64
      %v1204 = vpop.permute.xlu0 %1203
      %1205 = vrot.lane.b32.xlu0 %v701, 64
      %v1206 = vpop.permute.xlu0 %1205
      %1207 = vrot.lane.b32.xlu0 %v702, 64
      %v1208 = vpop.permute.xlu0 %1207
      %1209 = vrot.lane.b32.xlu0 %v703, 64
      %v1210 = vpop.permute.xlu0 %1209
      %1211 = vrot.lane.b32.xlu0 %v704, 64
      %v1212 = vpop.permute.xlu0 %1211
      %1213 = vrot.lane.b32.xlu0 %v705, 64
      %v1214 = vpop.permute.xlu0 %1213
      %1215 = vrot.lane.b32.xlu0 %v706, 64
      %v1216 = vpop.permute.xlu0 %1215
      %1217 = vrot.lane.b32.xlu0 %v707, 64
      %v1218 = vpop.permute.xlu0 %1217
      %1219 = vrot.lane.b32.xlu0 %v708, 64
      %v1220 = vpop.permute.xlu0 %1219
      %v1253 = vsel %vm226, %v452, %v774
      %v1254 = vsel %vm226, %v453, %v776
      %v1255 = vsel %vm226, %v454, %v778
      %v1256 = vsel %vm226, %v455, %v780
      %v1257 = vsel %vm226, %v456, %v782
      %v1258 = vsel %vm226, %v457, %v784
      %v1259 = vsel %vm226, %v458, %v786
      %v1260 = vsel %vm226, %v459, %v788
      %v1261 = vsel %vm226, %v460, %v790
      %v1262 = vsel %vm226, %v461, %v792
      %v1263 = vsel %vm226, %v462, %v794
      %v1264 = vsel %vm226, %v463, %v796
      %v1265 = vsel %vm226, %v464, %v798
      %v1266 = vsel %vm226, %v465, %v800
      %v1267 = vsel %vm226, %v466, %v802
      %v1268 = vsel %vm226, %v467, %v804
      %v1269 = vsel %vm226, %v468, %v806
      %v1270 = vsel %vm226, %v469, %v808
      %v1271 = vsel %vm226, %v470, %v810
      %v1272 = vsel %vm226, %v471, %v812
      %v1273 = vsel %vm226, %v472, %v814
      %v1274 = vsel %vm226, %v473, %v816
      %v1275 = vsel %vm226, %v474, %v818
      %v1276 = vsel %vm226, %v475, %v820
      %v1277 = vsel %vm226, %v476, %v822
      %v1278 = vsel %vm226, %v477, %v824
      %v1279 = vsel %vm226, %v478, %v826
      %v1280 = vsel %vm226, %v479, %v828
      %v1281 = vsel %vm226, %v480, %v830
      %v1282 = vsel %vm226, %v481, %v832
      %v1283 = vsel %vm226, %v482, %v834
      %v1284 = vsel %vm226, %v483, %v836
      %v1285 = vsel %vm226, %v516, %v902
      %v1286 = vsel %vm226, %v517, %v904
      %v1287 = vsel %vm226, %v518, %v906
      %v1288 = vsel %vm226, %v519, %v908
      %v1289 = vsel %vm226, %v520, %v910
      %v1290 = vsel %vm226, %v521, %v912
      %v1291 = vsel %vm226, %v522, %v914
      %v1292 = vsel %vm226, %v523, %v916
      %v1293 = vsel %vm226, %v524, %v918
      %v1294 = vsel %vm226, %v525, %v920
      %v1295 = vsel %vm226, %v526, %v922
      %v1296 = vsel %vm226, %v527, %v924
      %v1297 = vsel %vm226, %v528, %v926
      %v1298 = vsel %vm226, %v529, %v928
      %v1299 = vsel %vm226, %v530, %v930
      %v1300 = vsel %vm226, %v531, %v932
      %v1301 = vsel %vm226, %v532, %v934
      %v1302 = vsel %vm226, %v533, %v936
      %v1303 = vsel %vm226, %v534, %v938
      %v1304 = vsel %vm226, %v535, %v940
      %v1305 = vsel %vm226, %v536, %v942
      %v1306 = vsel %vm226, %v537, %v944
      %v1307 = vsel %vm226, %v538, %v946
      %v1308 = vsel %vm226, %v539, %v948
      %v1309 = vsel %vm226, %v540, %v950
      %v1310 = vsel %vm226, %v541, %v952
      %v1311 = vsel %vm226, %v542, %v954
      %v1312 = vsel %vm226, %v543, %v956
      %v1313 = vsel %vm226, %v544, %v958
      %v1314 = vsel %vm226, %v545, %v960
      %v1315 = vsel %vm226, %v546, %v962
      %v1316 = vsel %vm226, %v547, %v964
      %v1317 = vsel %vm226, %v580, %v1030
      %v1318 = vsel %vm226, %v581, %v1032
      %v1319 = vsel %vm226, %v582, %v1034
      %v1320 = vsel %vm226, %v583, %v1036
      %v1321 = vsel %vm226, %v584, %v1038
      %v1322 = vsel %vm226, %v585, %v1040
      %v1323 = vsel %vm226, %v586, %v1042
      %v1324 = vsel %vm226, %v587, %v1044
      %v1325 = vsel %vm226, %v588, %v1046
      %v1326 = vsel %vm226, %v589, %v1048
      %v1327 = vsel %vm226, %v590, %v1050
      %v1328 = vsel %vm226, %v591, %v1052
      %v1329 = vsel %vm226, %v592, %v1054
      %v1330 = vsel %vm226, %v593, %v1056
      %v1331 = vsel %vm226, %v594, %v1058
      %v1332 = vsel %vm226, %v595, %v1060
      %v1333 = vsel %vm226, %v596, %v1062
      %v1334 = vsel %vm226, %v597, %v1064
      %v1335 = vsel %vm226, %v598, %v1066
      %v1336 = vsel %vm226, %v599, %v1068
      %v1337 = vsel %vm226, %v600, %v1070
      %v1338 = vsel %vm226, %v601, %v1072
      %v1339 = vsel %vm226, %v602, %v1074
      %v1340 = vsel %vm226, %v603, %v1076
      %v1341 = vsel %vm226, %v604, %v1078
      %v1342 = vsel %vm226, %v605, %v1080
      %v1343 = vsel %vm226, %v606, %v1082
      %v1344 = vsel %vm226, %v607, %v1084
      %v1345 = vsel %vm226, %v608, %v1086
      %v1346 = vsel %vm226, %v609, %v1088
      %v1347 = vsel %vm226, %v610, %v1090
      %v1348 = vsel %vm226, %v611, %v1092
      %v1349 = vsel %vm226, %v645, %v1158
      %v1350 = vsel %vm226, %v646, %v1160
      %v1351 = vsel %vm226, %v647, %v1162
      %v1352 = vsel %vm226, %v648, %v1164
      %v1353 = vsel %vm226, %v649, %v1166
      %v1354 = vsel %vm226, %v650, %v1168
      %v1355 = vsel %vm226, %v651, %v1170
      %v1356 = vsel %vm226, %v652, %v1172
      %v1357 = vsel %vm226, %v653, %v1174
      %v1358 = vsel %vm226, %v654, %v1176
      %v1359 = vsel %vm226, %v655, %v1178
      %v1360 = vsel %vm226, %v656, %v1180
      %v1361 = vsel %vm226, %v657, %v1182
      %v1362 = vsel %vm226, %v658, %v1184
      %v1363 = vsel %vm226, %v659, %v1186
      %v1364 = vsel %vm226, %v660, %v1188
      %v1365 = vsel %vm226, %v661, %v1190
      %v1366 = vsel %vm226, %v662, %v1192
      %v1367 = vsel %vm226, %v663, %v1194
      %v1368 = vsel %vm226, %v664, %v1196
      %v1369 = vsel %vm226, %v665, %v1198
      %v1370 = vsel %vm226, %v666, %v1200
      %v1371 = vsel %vm226, %v667, %v1202
      %v1372 = vsel %vm226, %v668, %v1204
      %v1373 = vsel %vm226, %v669, %v1206
      %v1374 = vsel %vm226, %v670, %v1208
      %v1375 = vsel %vm226, %v671, %v1210
      %v1376 = vsel %vm226, %v672, %v1212
      %v1377 = vsel %vm226, %v673, %v1214
      %v1378 = vsel %vm226, %v674, %v1216
      %v1379 = vsel %vm226, %v675, %v1218
      %v1380 = vsel %vm226, %v676, %v1220
      %v1381 = vpack.c.bf16 %v1254, %v1253
      %v1382 = vpack.c.bf16 %v1286, %v1285
      %v1383 = vpack.c.bf16 %v1318, %v1317
      %v1384 = vpack.c.bf16 %v1350, %v1349
      %v1385 = vpack.c.bf16 %v710, %v709
      %v1386 = vpack.c.bf16 %v1256, %v1255
      %v1387 = vpack.c.bf16 %v1288, %v1287
      %v1388 = vpack.c.bf16 %v1320, %v1319
      %v1389 = vpack.c.bf16 %v1352, %v1351
      %v1390 = vpack.c.bf16 %v712, %v711
      %v1391 = vpack.c.bf16 %v1258, %v1257
      %v1392 = vpack.c.bf16 %v1290, %v1289
      %v1393 = vpack.c.bf16 %v1322, %v1321
      %v1394 = vpack.c.bf16 %v1354, %v1353
      %v1395 = vpack.c.bf16 %v714, %v713
      %v1396 = vpack.c.bf16 %v1260, %v1259
      %v1397 = vpack.c.bf16 %v1292, %v1291
      %v1398 = vpack.c.bf16 %v1324, %v1323
      %v1399 = vpack.c.bf16 %v1356, %v1355
      %v1400 = vpack.c.bf16 %v716, %v715
      %v1401 = vpack.c.bf16 %v1262, %v1261
      %v1402 = vpack.c.bf16 %v1294, %v1293
      %v1403 = vpack.c.bf16 %v1326, %v1325
      %v1404 = vpack.c.bf16 %v1358, %v1357
      %v1405 = vpack.c.bf16 %v718, %v717
      %v1406 = vpack.c.bf16 %v1264, %v1263
      %v1407 = vpack.c.bf16 %v1296, %v1295
      %v1408 = vpack.c.bf16 %v1328, %v1327
      %v1409 = vpack.c.bf16 %v1360, %v1359
      %v1410 = vpack.c.bf16 %v720, %v719
      %v1411 = vpack.c.bf16 %v1266, %v1265
      %v1412 = vpack.c.bf16 %v1298, %v1297
      %v1413 = vpack.c.bf16 %v1330, %v1329
      %v1414 = vpack.c.bf16 %v1362, %v1361
      %v1415 = vpack.c.bf16 %v722, %v721
      %v1416 = vpack.c.bf16 %v1268, %v1267
      %v1417 = vpack.c.bf16 %v1300, %v1299
      %v1418 = vpack.c.bf16 %v1332, %v1331
      %v1419 = vpack.c.bf16 %v1364, %v1363
      %v1420 = vpack.c.bf16 %v724, %v723
      %v1421 = vpack.c.bf16 %v1270, %v1269
      %v1422 = vpack.c.bf16 %v1302, %v1301
      %v1423 = vpack.c.bf16 %v1334, %v1333
      %v1424 = vpack.c.bf16 %v1366, %v1365
      %v1425 = vpack.c.bf16 %v726, %v725
      %v1426 = vpack.c.bf16 %v1272, %v1271
      %v1427 = vpack.c.bf16 %v1304, %v1303
      %v1428 = vpack.c.bf16 %v1336, %v1335
      %v1429 = vpack.c.bf16 %v1368, %v1367
      %v1430 = vpack.c.bf16 %v728, %v727
      %v1431 = vpack.c.bf16 %v1274, %v1273
      %v1432 = vpack.c.bf16 %v1306, %v1305
      %v1433 = vpack.c.bf16 %v1338, %v1337
      %v1434 = vpack.c.bf16 %v1370, %v1369
      %v1435 = vpack.c.bf16 %v730, %v729
      %v1436 = vpack.c.bf16 %v1276, %v1275
      %v1437 = vpack.c.bf16 %v1308, %v1307
      %v1438 = vpack.c.bf16 %v1340, %v1339
      %v1439 = vpack.c.bf16 %v1372, %v1371
      %v1440 = vpack.c.bf16 %v732, %v731
      %v1441 = vpack.c.bf16 %v1278, %v1277
      %v1442 = vpack.c.bf16 %v1310, %v1309
      %v1443 = vpack.c.bf16 %v1342, %v1341
      %v1444 = vpack.c.bf16 %v1374, %v1373
      %v1445 = vpack.c.bf16 %v734, %v733
      %v1446 = vpack.c.bf16 %v1280, %v1279
      %v1447 = vpack.c.bf16 %v1312, %v1311
      %v1448 = vpack.c.bf16 %v1344, %v1343
      %v1449 = vpack.c.bf16 %v1376, %v1375
      %v1450 = vpack.c.bf16 %v736, %v735
      %v1451 = vpack.c.bf16 %v1282, %v1281
      %v1452 = vpack.c.bf16 %v1314, %v1313
      %v1453 = vpack.c.bf16 %v1346, %v1345
      %v1454 = vpack.c.bf16 %v1378, %v1377
      %v1455 = vpack.c.bf16 %v738, %v737
      %v1456 = vpack.c.bf16 %v1284, %v1283
      %v1457 = vpack.c.bf16 %v1316, %v1315
      %v1458 = vpack.c.bf16 %v1348, %v1347
      %v1459 = vpack.c.bf16 %v1380, %v1379
      %v1460 = vpack.c.bf16 %v740, %v739
      %v1462 = vlaneseq
      %v1463 = vshrl.u32 %v1462, 7
      %v1464 = vsub.s32 0, %v1463
      %v1465 = vrot.slane %v386, %v1464
      %v1539 = vunpack.c.l.b16 %v314
      %v1540 = vunpack.c.l.b16 %v315
      %v1541 = vunpack.c.l.b16 %v316
      %v1542 = vunpack.c.l.b16 %v317
      %v1543 = vunpack.c.l.b16 %v318
      %v1544 = vunpack.c.l.b16 %v319
      %v1545 = vunpack.c.l.b16 %v320
      %v1546 = vunpack.c.l.b16 %v321
      %v1547 = vunpack.c.l.b16 %v322
      %v1548 = vunpack.c.l.b16 %v323
      %v1549 = vunpack.c.l.b16 %v324
      %v1550 = vunpack.c.l.b16 %v325
      %v1551 = vunpack.c.l.b16 %v326
      %v1552 = vunpack.c.l.b16 %v327
      %v1553 = vunpack.c.l.b16 %v328
      %v1554 = vunpack.c.l.b16 %v329
      %v1555 = vunpack.c.l.b16 %v330
      %v1556 = vunpack.c.l.b16 %v331
      %v1557 = vunpack.c.l.b16 %v332
      %v1558 = vunpack.c.l.b16 %v333
      %v1559 = vunpack.c.l.b16 %v334
      %v1560 = vunpack.c.l.b16 %v335
      %v1561 = vunpack.c.l.b16 %v336
      %v1562 = vunpack.c.l.b16 %v337
      %v1563 = vunpack.c.l.b16 %v338
      %v1564 = vunpack.c.l.b16 %v339
      %v1565 = vunpack.c.l.b16 %v340
      %v1566 = vunpack.c.l.b16 %v341
      %v1567 = vunpack.c.l.b16 %v342
      %v1568 = vunpack.c.l.b16 %v343
      %v1569 = vunpack.c.l.b16 %v344
      %v1570 = vunpack.c.l.b16 %v345
      %v1571 = vunpack.c.l.b16 %v346
      %v1572 = vunpack.c.l.b16 %v347
      %v1573 = vunpack.c.l.b16 %v348
      %v1574 = vunpack.c.l.b16 %v349
      %v1575 = vunpack.c.l.b16 %v350
      %v1576 = vunpack.c.l.b16 %v351
      %v1577 = vunpack.c.l.b16 %v352
      %v1578 = vunpack.c.l.b16 %v353
      %v1579 = vunpack.c.l.b16 %v354
      %v1580 = vunpack.c.l.b16 %v355
      %v1581 = vunpack.c.l.b16 %v356
      %v1582 = vunpack.c.l.b16 %v357
      %v1583 = vunpack.c.l.b16 %v358
      %v1584 = vunpack.c.l.b16 %v359
      %v1585 = vunpack.c.l.b16 %v360
      %v1586 = vunpack.c.l.b16 %v361
      %v1587 = vunpack.c.l.b16 %v362
      %v1588 = vunpack.c.l.b16 %v363
      %v1589 = vunpack.c.l.b16 %v364
      %v1590 = vunpack.c.l.b16 %v365
      %v1591 = vunpack.c.l.b16 %v366
      %v1592 = vunpack.c.l.b16 %v367
      %v1593 = vunpack.c.l.b16 %v368
      %v1594 = vunpack.c.l.b16 %v369
      %v1595 = vunpack.c.l.b16 %v370
      %v1596 = vunpack.c.l.b16 %v371
      %v1597 = vunpack.c.l.b16 %v372
      %v1598 = vunpack.c.l.b16 %v373
      %v1599 = vunpack.c.l.b16 %v374
      %v1600 = vunpack.c.l.b16 %v375
      %v1601 = vunpack.c.l.b16 %v376
      %v1602 = vunpack.c.l.b16 %v377
      %v1603 = vunpack.c.l.b16 %v378
      %v1604 = vunpack.c.l.b16 %v379
      %v1605 = vunpack.c.l.b16 %v380
      %v1606 = vunpack.c.l.b16 %v381
      %v1607 = vunpack.c.l.b16 %v382
      %v1608 = vunpack.c.l.b16 %v383
      %v1609 = vunpack.c.l.b16 %v384
      %v1610 = vunpack.c.l.b16 %v385
      %v1611 = vpack.c.b16 %v1540, %v1539
      %v1612 = vpack.c.b16 %v1542, %v1541
      %v1613 = vpack.c.b16 %v1544, %v1543
      %v1614 = vpack.c.b16 %v1546, %v1545
      %v1615 = vpack.c.b16 %v1548, %v1547
      %v1616 = vpack.c.b16 %v1550, %v1549
      %v1617 = vpack.c.b16 %v1552, %v1551
      %v1618 = vpack.c.b16 %v1554, %v1553
      %v1619 = vpack.c.b16 %v1556, %v1555
      %v1620 = vpack.c.b16 %v1558, %v1557
      %v1621 = vpack.c.b16 %v1560, %v1559
      %v1622 = vpack.c.b16 %v1562, %v1561
      %v1623 = vpack.c.b16 %v1564, %v1563
      %v1624 = vpack.c.b16 %v1566, %v1565
      %v1625 = vpack.c.b16 %v1568, %v1567
      %v1626 = vpack.c.b16 %v1570, %v1569
      %v1627 = vpack.c.b16 %v1572, %v1571
      %v1628 = vpack.c.b16 %v1574, %v1573
      %v1629 = vpack.c.b16 %v1576, %v1575
      %v1630 = vpack.c.b16 %v1578, %v1577
      %v1631 = vpack.c.b16 %v1580, %v1579
      %v1632 = vpack.c.b16 %v1582, %v1581
      %v1633 = vpack.c.b16 %v1584, %v1583
      %v1634 = vpack.c.b16 %v1586, %v1585
      %v1635 = vpack.c.b16 %v1588, %v1587
      %v1636 = vpack.c.b16 %v1590, %v1589
      %v1637 = vpack.c.b16 %v1592, %v1591
      %v1638 = vpack.c.b16 %v1594, %v1593
      %v1639 = vpack.c.b16 %v1596, %v1595
      %v1640 = vpack.c.b16 %v1598, %v1597
      %v1641 = vpack.c.b16 %v1600, %v1599
      %v1642 = vpack.c.b16 %v1602, %v1601
      %v1643 = vpack.c.b16 %v1604, %v1603
      %v1644 = vpack.c.b16 %v1606, %v1605
      %v1645 = vpack.c.b16 %v1608, %v1607
      %v1646 = vpack.c.b16 %v1610, %v1609
      %v1684 = vsel %vm226, %v1385, 0
      %v1687 = vsel %vm226, %v1390, 0
      %v1690 = vsel %vm226, %v1395, 0
      %v1693 = vsel %vm226, %v1400, 0
      %v1696 = vsel %vm226, %v1405, 0
      %v1699 = vsel %vm226, %v1410, 0
      %v1702 = vsel %vm226, %v1415, 0
      %v1705 = vsel %vm226, %v1420, 0
      %v1708 = vsel %vm226, %v1425, 0
      %v1711 = vsel %vm226, %v1430, 0
      %v1714 = vsel %vm226, %v1435, 0
      %v1717 = vsel %vm226, %v1440, 0
      %v1720 = vsel %vm226, %v1445, 0
      %v1723 = vsel %vm226, %v1450, 0
      %v1726 = vsel %vm226, %v1455, 0
      %v1729 = vsel %vm226, %v1460, 0
      %1731 = vmatprep.subr.bf16.mxu0 0
      %1732 = vmatpush1.bf16.msra.mxu0 %v1611
      %1733 = vmatprep.subr.bf16.mxu0 0
      %1734 = vmatpush1.bf16.msra.mxu0 %v1612
      %1735 = vmatprep.subr.bf16.mxu0 0
      %1736 = vmatpush1.bf16.msra.mxu0 %v1613
      %1737 = vmatprep.subr.bf16.mxu0 0
      %1738 = vmatpush1.bf16.msra.mxu0 %v1614
      %1739 = vmatprep.subr.bf16.mxu0 0
      %1740 = vmatpush1.bf16.msra.mxu0 %v1615
      %1741 = vmatprep.subr.bf16.mxu0 0
      %1742 = vmatpush1.bf16.msra.mxu0 %v1616
      %1743 = vmatprep.subr.bf16.mxu0 0
      %1744 = vmatpush1.bf16.msra.mxu0 %v1617
      %1745 = vmatprep.subr.bf16.mxu0 0
      %1746 = vmatpush1.bf16.msra.mxu0 %v1618
      %1747 = vmatprep.subr.bf16.mxu0 0
      %1748 = vmatpush1.bf16.msra.mxu0 %v1619
      %1749 = vmatprep.subr.bf16.mxu0 0
      %1750 = vmatpush1.bf16.msra.mxu0 %v1620
      %1751 = vmatprep.subr.bf16.mxu0 0
      %1752 = vmatpush1.bf16.msra.mxu0 %v1621
      %1753 = vmatprep.subr.bf16.mxu0 0
      %1754 = vmatpush1.bf16.msra.mxu0 %v1622
      %1755 = vmatprep.subr.bf16.mxu0 0
      %1756 = vmatpush1.bf16.msra.mxu0 %v1623
      %1757 = vmatprep.subr.bf16.mxu0 0
      %1758 = vmatpush1.bf16.msra.mxu0 %v1624
      %1759 = vmatprep.subr.bf16.mxu0 0
      %1760 = vmatpush1.bf16.msra.mxu0 %v1625
      %1761 = vmatprep.subr.bf16.mxu0 0
      %1762 = vmatpush1.bf16.msra.mxu0 %v1626
      %1763 = vmatprep.mubr.bf16.mxu0 %v1382
      %1764 = vmatmul.mubr.bf16.gmra.mrb[0].mxu0 %v1381
      %v1765 = vpop.f32.mrb[0].mxu0
      %v1766 = vadd.f32 %v1465, %v1765
      %v1767 = vpop.f32.mrb[0].mxu0
      %v1768 = vpop.f32.mrb[0].mxu0
      %v1769 = vadd.f32 %v1465, %v1768
      %v1770 = vpop.f32.mrb[0].mxu0
      %1771 = vmatprep.mubr.bf16.mxu0 %v1387
      %1772 = vmatmul.mubr.bf16.gmra.mrb[0].mxu0 %v1386
      %v1773 = vpop.f32.mrb[0].mxu0
      %v1774 = vadd.f32 %v1465, %v1773
      %v1775 = vpop.f32.mrb[0].mxu0
      %v1776 = vpop.f32.mrb[0].mxu0
      %v1777 = vadd.f32 %v1465, %v1776
      %v1778 = vpop.f32.mrb[0].mxu0
      %1779 = vmatprep.mubr.bf16.mxu0 %v1392
      %1780 = vmatmul.mubr.bf16.gmra.mrb[0].mxu0 %v1391
      %v1781 = vpop.f32.mrb[0].mxu0
      %v1782 = vadd.f32 %v1465, %v1781
      %v1783 = vpop.f32.mrb[0].mxu0
      %v1784 = vpop.f32.mrb[0].mxu0
      %v1785 = vadd.f32 %v1465, %v1784
      %v1786 = vpop.f32.mrb[0].mxu0
      %1787 = vmatprep.mubr.bf16.mxu0 %v1397
      %1788 = vmatmul.mubr.bf16.gmra.mrb[0].mxu0 %v1396
      %v1789 = vpop.f32.mrb[0].mxu0
      %v1790 = vadd.f32 %v1465, %v1789
      %v1791 = vpop.f32.mrb[0].mxu0
      %v1792 = vpop.f32.mrb[0].mxu0
      %v1793 = vadd.f32 %v1465, %v1792
      %v1794 = vpop.f32.mrb[0].mxu0
      %1795 = vmatprep.mubr.bf16.mxu0 %v1402
      %1796 = vmatmul.mubr.bf16.gmra.mrb[0].mxu0 %v1401
      %v1797 = vpop.f32.mrb[0].mxu0
      %v1798 = vadd.f32 %v1465, %v1797
      %v1799 = vpop.f32.mrb[0].mxu0
      %v1800 = vpop.f32.mrb[0].mxu0
      %v1801 = vadd.f32 %v1465, %v1800
      %v1802 = vpop.f32.mrb[0].mxu0
      %1803 = vmatprep.mubr.bf16.mxu0 %v1407
      %1804 = vmatmul.mubr.bf16.gmra.mrb[0].mxu0 %v1406
      %v1805 = vpop.f32.mrb[0].mxu0
      %v1806 = vadd.f32 %v1465, %v1805
      %v1807 = vpop.f32.mrb[0].mxu0
      %v1808 = vpop.f32.mrb[0].mxu0
      %v1809 = vadd.f32 %v1465, %v1808
      %v1810 = vpop.f32.mrb[0].mxu0
      %1811 = vmatprep.mubr.bf16.mxu0 %v1412
      %1812 = vmatmul.mubr.bf16.gmra.mrb[0].mxu0 %v1411
      %v1813 = vpop.f32.mrb[0].mxu0
      %v1814 = vadd.f32 %v1465, %v1813
      %v1815 = vpop.f32.mrb[0].mxu0
      %v1816 = vpop.f32.mrb[0].mxu0
      %v1817 = vadd.f32 %v1465, %v1816
      %v1818 = vpop.f32.mrb[0].mxu0
      %1819 = vmatprep.mubr.bf16.mxu0 %v1417
      %1820 = vmatmul.mubr.bf16.gmra.mrb[0].mxu0 %v1416
      %v1821 = vpop.f32.mrb[0].mxu0
      %v1822 = vadd.f32 %v1465, %v1821
      %v1823 = vpop.f32.mrb[0].mxu0
      %v1824 = vpop.f32.mrb[0].mxu0
      %v1825 = vadd.f32 %v1465, %v1824
      %v1826 = vpop.f32.mrb[0].mxu0
      %1827 = vmatprep.mubr.bf16.mxu0 %v1422
      %1828 = vmatmul.mubr.bf16.gmra.mrb[0].mxu0 %v1421
      %v1829 = vpop.f32.mrb[0].mxu0
      %v1830 = vadd.f32 %v1465, %v1829
      %v1831 = vpop.f32.mrb[0].mxu0
      %v1832 = vpop.f32.mrb[0].mxu0
      %v1833 = vadd.f32 %v1465, %v1832
      %v1834 = vpop.f32.mrb[0].mxu0
      %1835 = vmatprep.mubr.bf16.mxu0 %v1427
      %1836 = vmatmul.mubr.bf16.gmra.mrb[0].mxu0 %v1426
      %v1837 = vpop.f32.mrb[0].mxu0
      %v1838 = vadd.f32 %v1465, %v1837
      %v1839 = vpop.f32.mrb[0].mxu0
      %v1840 = vpop.f32.mrb[0].mxu0
      %v1841 = vadd.f32 %v1465, %v1840
      %v1842 = vpop.f32.mrb[0].mxu0
      %1843 = vmatprep.mubr.bf16.mxu0 %v1432
      %1844 = vmatmul.mubr.bf16.gmra.mrb[0].mxu0 %v1431
      %v1845 = vpop.f32.mrb[0].mxu0
      %v1846 = vadd.f32 %v1465, %v1845
      %v1847 = vpop.f32.mrb[0].mxu0
      %v1848 = vpop.f32.mrb[0].mxu0
      %v1849 = vadd.f32 %v1465, %v1848
      %v1850 = vpop.f32.mrb[0].mxu0
      %1851 = vmatprep.mubr.bf16.mxu0 %v1437
      %1852 = vmatmul.mubr.bf16.gmra.mrb[0].mxu0 %v1436
      %v1853 = vpop.f32.mrb[0].mxu0
      %v1854 = vadd.f32 %v1465, %v1853
      %v1855 = vpop.f32.mrb[0].mxu0
      %v1856 = vpop.f32.mrb[0].mxu0
      %v1857 = vadd.f32 %v1465, %v1856
      %v1858 = vpop.f32.mrb[0].mxu0
      %1859 = vmatprep.mubr.bf16.mxu0 %v1442
      %1860 = vmatmul.mubr.bf16.gmra.mrb[0].mxu0 %v1441
      %v1861 = vpop.f32.mrb[0].mxu0
      %v1862 = vadd.f32 %v1465, %v1861
      %v1863 = vpop.f32.mrb[0].mxu0
      %v1864 = vpop.f32.mrb[0].mxu0
      %v1865 = vadd.f32 %v1465, %v1864
      %v1866 = vpop.f32.mrb[0].mxu0
      %1867 = vmatprep.mubr.bf16.mxu0 %v1447
      %1868 = vmatmul.mubr.bf16.gmra.mrb[0].mxu0 %v1446
      %v1869 = vpop.f32.mrb[0].mxu0
      %v1870 = vadd.f32 %v1465, %v1869
      %v1871 = vpop.f32.mrb[0].mxu0
      %v1872 = vpop.f32.mrb[0].mxu0
      %v1873 = vadd.f32 %v1465, %v1872
      %v1874 = vpop.f32.mrb[0].mxu0
      %1875 = vmatprep.mubr.bf16.mxu0 %v1452
      %1876 = vmatmul.mubr.bf16.gmra.mrb[0].mxu0 %v1451
      %v1877 = vpop.f32.mrb[0].mxu0
      %v1878 = vadd.f32 %v1465, %v1877
      %v1879 = vpop.f32.mrb[0].mxu0
      %v1880 = vpop.f32.mrb[0].mxu0
      %v1881 = vadd.f32 %v1465, %v1880
      %v1882 = vpop.f32.mrb[0].mxu0
      %1883 = vmatprep.mubr.bf16.mxu0 %v1457
      %1884 = vmatmul.mubr.bf16.gmra.mrb[0].mxu0 %v1456
      %v1885 = vpop.f32.mrb[0].mxu0
      %v1886 = vadd.f32 %v1465, %v1885
      %v1887 = vpop.f32.mrb[0].mxu0
      %v1888 = vpop.f32.mrb[0].mxu0
      %v1889 = vadd.f32 %v1465, %v1888
      %v1890 = vpop.f32.mrb[0].mxu0
      %1891 = vdwg.mxu0
      %1892 = vmatprep.subr.bf16.mxu0 0
      %1893 = vmatpush1.bf16.msra.mxu0 %v1627
      %1894 = vmatprep.subr.bf16.mxu0 0
      %1895 = vmatpush1.bf16.msra.mxu0 %v1628
      %1896 = vmatprep.subr.bf16.mxu0 0
      %1897 = vmatpush1.bf16.msra.mxu0 %v1629
      %1898 = vmatprep.subr.bf16.mxu0 0
      %1899 = vmatpush1.bf16.msra.mxu0 %v1630
      %1900 = vmatprep.subr.bf16.mxu0 0
      %1901 = vmatpush1.bf16.msra.mxu0 %v1631
      %1902 = vmatprep.subr.bf16.mxu0 0
      %1903 = vmatpush1.bf16.msra.mxu0 %v1632
      %1904 = vmatprep.subr.bf16.mxu0 0
      %1905 = vmatpush1.bf16.msra.mxu0 %v1633
      %1906 = vmatprep.subr.bf16.mxu0 0
      %1907 = vmatpush1.bf16.msra.mxu0 %v1634
      %1908 = vmatprep.subr.bf16.mxu0 0
      %1909 = vmatpush1.bf16.msra.mxu0 %v1635
      %1910 = vmatprep.subr.bf16.mxu0 0
      %1911 = vmatpush1.bf16.msra.mxu0 %v1636
      %1912 = vmatprep.subr.bf16.mxu0 0
      %1913 = vmatpush1.bf16.msra.mxu0 %v1637
      %1914 = vmatprep.subr.bf16.mxu0 0
      %1915 = vmatpush1.bf16.msra.mxu0 %v1638
      %1916 = vmatprep.subr.bf16.mxu0 0
      %1917 = vmatpush1.bf16.msra.mxu0 %v1639
      %1918 = vmatprep.subr.bf16.mxu0 0
      %1919 = vmatpush1.bf16.msra.mxu0 %v1640
      %1920 = vmatprep.subr.bf16.mxu0 0
      %1921 = vmatpush1.bf16.msra.mxu0 %v1641
      %1922 = vmatprep.subr.bf16.mxu0 0
      %1923 = vmatpush1.bf16.msra.mxu0 %v1642
      %1924 = vmatprep.mubr.bf16.mxu0 %v1384
      %1925 = vmatmul.mubr.bf16.gmra.mrb[0].mxu0 %v1383
      %v1926 = vpop.f32.mrb[0].mxu0
      %v1927 = vadd.f32 %v1766, %v1926
      %v1928 = vpop.f32.mrb[0].mxu0
      %v1929 = vpop.f32.mrb[0].mxu0
      %v1930 = vadd.f32 %v1769, %v1929
      %v1931 = vpop.f32.mrb[0].mxu0
      %1932 = vmatprep.mubr.bf16.mxu0 %v1389
      %1933 = vmatmul.mubr.bf16.gmra.mrb[0].mxu0 %v1388
      %v1934 = vpop.f32.mrb[0].mxu0
      %v1935 = vadd.f32 %v1774, %v1934
      %v1936 = vpop.f32.mrb[0].mxu0
      %v1937 = vpop.f32.mrb[0].mxu0
      %v1938 = vadd.f32 %v1777, %v1937
      %v1939 = vpop.f32.mrb[0].mxu0
      %1940 = vmatprep.mubr.bf16.mxu0 %v1394
      %1941 = vmatmul.mubr.bf16.gmra.mrb[0].mxu0 %v1393
      %v1942 = vpop.f32.mrb[0].mxu0
      %v1943 = vadd.f32 %v1782, %v1942
      %v1944 = vpop.f32.mrb[0].mxu0
      %v1945 = vpop.f32.mrb[0].mxu0
      %v1946 = vadd.f32 %v1785, %v1945
      %v1947 = vpop.f32.mrb[0].mxu0
      %1948 = vmatprep.mubr.bf16.mxu0 %v1399
      %1949 = vmatmul.mubr.bf16.gmra.mrb[0].mxu0 %v1398
      %v1950 = vpop.f32.mrb[0].mxu0
      %v1951 = vadd.f32 %v1790, %v1950
      %v1952 = vpop.f32.mrb[0].mxu0
      %v1953 = vpop.f32.mrb[0].mxu0
      %v1954 = vadd.f32 %v1793, %v1953
      %v1955 = vpop.f32.mrb[0].mxu0
      %1956 = vmatprep.mubr.bf16.mxu0 %v1404
      %1957 = vmatmul.mubr.bf16.gmra.mrb[0].mxu0 %v1403
      %v1958 = vpop.f32.mrb[0].mxu0
      %v1959 = vadd.f32 %v1798, %v1958
      %v1960 = vpop.f32.mrb[0].mxu0
      %v1961 = vpop.f32.mrb[0].mxu0
      %v1962 = vadd.f32 %v1801, %v1961
      %v1963 = vpop.f32.mrb[0].mxu0
      %1964 = vmatprep.mubr.bf16.mxu0 %v1409
      %1965 = vmatmul.mubr.bf16.gmra.mrb[0].mxu0 %v1408
      %v1966 = vpop.f32.mrb[0].mxu0
      %v1967 = vadd.f32 %v1806, %v1966
      %v1968 = vpop.f32.mrb[0].mxu0
      %v1969 = vpop.f32.mrb[0].mxu0
      %v1970 = vadd.f32 %v1809, %v1969
      %v1971 = vpop.f32.mrb[0].mxu0
      %1972 = vmatprep.mubr.bf16.mxu0 %v1414
      %1973 = vmatmul.mubr.bf16.gmra.mrb[0].mxu0 %v1413
      %v1974 = vpop.f32.mrb[0].mxu0
      %v1975 = vadd.f32 %v1814, %v1974
      %v1976 = vpop.f32.mrb[0].mxu0
      %v1977 = vpop.f32.mrb[0].mxu0
      %v1978 = vadd.f32 %v1817, %v1977
      %v1979 = vpop.f32.mrb[0].mxu0
      %1980 = vmatprep.mubr.bf16.mxu0 %v1419
      %1981 = vmatmul.mubr.bf16.gmra.mrb[0].mxu0 %v1418
      %v1982 = vpop.f32.mrb[0].mxu0
      %v1983 = vadd.f32 %v1822, %v1982
      %v1984 = vpop.f32.mrb[0].mxu0
      %v1985 = vpop.f32.mrb[0].mxu0
      %v1986 = vadd.f32 %v1825, %v1985
      %v1987 = vpop.f32.mrb[0].mxu0
      %1988 = vmatprep.mubr.bf16.mxu0 %v1424
      %1989 = vmatmul.mubr.bf16.gmra.mrb[0].mxu0 %v1423
      %v1990 = vpop.f32.mrb[0].mxu0
      %v1991 = vadd.f32 %v1830, %v1990
      %v1992 = vpop.f32.mrb[0].mxu0
      %v1993 = vpop.f32.mrb[0].mxu0
      %v1994 = vadd.f32 %v1833, %v1993
      %v1995 = vpop.f32.mrb[0].mxu0
      %1996 = vmatprep.mubr.bf16.mxu0 %v1429
      %1997 = vmatmul.mubr.bf16.gmra.mrb[0].mxu0 %v1428
      %v1998 = vpop.f32.mrb[0].mxu0
      %v1999 = vadd.f32 %v1838, %v1998
      %v2000 = vpop.f32.mrb[0].mxu0
      %v2001 = vpop.f32.mrb[0].mxu0
      %v2002 = vadd.f32 %v1841, %v2001
      %v2003 = vpop.f32.mrb[0].mxu0
      %2004 = vmatprep.mubr.bf16.mxu0 %v1434
      %2005 = vmatmul.mubr.bf16.gmra.mrb[0].mxu0 %v1433
      %v2006 = vpop.f32.mrb[0].mxu0
      %v2007 = vadd.f32 %v1846, %v2006
      %v2008 = vpop.f32.mrb[0].mxu0
      %v2009 = vpop.f32.mrb[0].mxu0
      %v2010 = vadd.f32 %v1849, %v2009
      %v2011 = vpop.f32.mrb[0].mxu0
      %2012 = vmatprep.mubr.bf16.mxu0 %v1439
      %2013 = vmatmul.mubr.bf16.gmra.mrb[0].mxu0 %v1438
      %v2014 = vpop.f32.mrb[0].mxu0
      %v2015 = vadd.f32 %v1854, %v2014
      %v2016 = vpop.f32.mrb[0].mxu0
      %v2017 = vpop.f32.mrb[0].mxu0
      %v2018 = vadd.f32 %v1857, %v2017
      %v2019 = vpop.f32.mrb[0].mxu0
      %2020 = vmatprep.mubr.bf16.mxu0 %v1444
      %2021 = vmatmul.mubr.bf16.gmra.mrb[0].mxu0 %v1443
      %v2022 = vpop.f32.mrb[0].mxu0
      %v2023 = vadd.f32 %v1862, %v2022
      %v2024 = vpop.f32.mrb[0].mxu0
      %v2025 = vpop.f32.mrb[0].mxu0
      %v2026 = vadd.f32 %v1865, %v2025
      %v2027 = vpop.f32.mrb[0].mxu0
      %2028 = vmatprep.mubr.bf16.mxu0 %v1449
      %2029 = vmatmul.mubr.bf16.gmra.mrb[0].mxu0 %v1448
      %v2030 = vpop.f32.mrb[0].mxu0
      %v2031 = vadd.f32 %v1870, %v2030
      %v2032 = vpop.f32.mrb[0].mxu0
      %v2033 = vpop.f32.mrb[0].mxu0
      %v2034 = vadd.f32 %v1873, %v2033
      %v2035 = vpop.f32.mrb[0].mxu0
      %2036 = vmatprep.mubr.bf16.mxu0 %v1454
      %2037 = vmatmul.mubr.bf16.gmra.mrb[0].mxu0 %v1453
      %v2038 = vpop.f32.mrb[0].mxu0
      %v2039 = vadd.f32 %v1878, %v2038
      %v2040 = vpop.f32.mrb[0].mxu0
      %v2041 = vpop.f32.mrb[0].mxu0
      %v2042 = vadd.f32 %v1881, %v2041
      %v2043 = vpop.f32.mrb[0].mxu0
      %2044 = vmatprep.mubr.bf16.mxu0 %v1459
      %2045 = vmatmul.mubr.bf16.gmra.mrb[0].mxu0 %v1458
      %v2046 = vpop.f32.mrb[0].mxu0
      %v2047 = vadd.f32 %v1886, %v2046
      %v2048 = vpop.f32.mrb[0].mxu0
      %v2049 = vpop.f32.mrb[0].mxu0
      %v2050 = vadd.f32 %v1889, %v2049
      %v2051 = vpop.f32.mrb[0].mxu0
      %2052 = vdwg.mxu0
      %2053 = vmatprep.subr.bf16.mxu0 0
      %2054 = vmatpush1.bf16.msra.mxu0 %v1643
      %2055 = vmatprep.subr.bf16.mxu0 0
      %2056 = vmatpush1.bf16.msra.mxu0 %v1644
      %2057 = vmatprep.subr.bf16.mxu0 0
      %2058 = vmatpush1.bf16.msra.mxu0 %v1645
      %2059 = vmatprep.subr.bf16.mxu0 0
      %2060 = vmatpush1.bf16.msra.mxu0 %v1646
      %2061 = vmatprep.subr.bf16.mxu0 0
      %2062 = vmatpush1.bf16.msra.mxu0 0
      %2063 = vmatprep.subr.bf16.mxu0 0
      %2064 = vmatpush1.bf16.msra.mxu0 0
      %2065 = vmatprep.subr.bf16.mxu0 0
      %2066 = vmatpush1.bf16.msra.mxu0 0
      %2067 = vmatprep.subr.bf16.mxu0 0
      %2068 = vmatpush1.bf16.msra.mxu0 0
      %2069 = vmatprep.subr.bf16.mxu0 0
      %2070 = vmatpush1.bf16.msra.mxu0 0
      %2071 = vmatprep.subr.bf16.mxu0 0
      %2072 = vmatpush1.bf16.msra.mxu0 0
      %2073 = vmatprep.subr.bf16.mxu0 0
      %2074 = vmatpush1.bf16.msra.mxu0 0
      %2075 = vmatprep.subr.bf16.mxu0 0
      %2076 = vmatpush1.bf16.msra.mxu0 0
      %2077 = vmatprep.subr.bf16.mxu0 0
      %2078 = vmatpush1.bf16.msra.mxu0 0
      %2079 = vmatprep.subr.bf16.mxu0 0
      %2080 = vmatpush1.bf16.msra.mxu0 0
      %2081 = vmatprep.subr.bf16.mxu0 0
      %2082 = vmatpush1.bf16.msra.mxu0 0
      %2083 = vmatprep.subr.bf16.mxu0 0
      %2084 = vmatpush1.bf16.msra.mxu0 0
      %2085 = vmatprep.mubr.bf16.mxu0 0
      %2086 = vmatmul.mubr.bf16.gmra.mrb[0].mxu0 %v1684
      %v2087 = vpop.f32.mrb[0].mxu0
      %v2088 = vadd.f32 %v1927, %v2087
      %v2089 = vpop.f32.mrb[0].mxu0
      %v2090 = vpop.f32.mrb[0].mxu0
      %v2091 = vadd.f32 %v1930, %v2090
      %v2092 = vpop.f32.mrb[0].mxu0
      %2093 = vmatprep.mubr.bf16.mxu0 0
      %2094 = vmatmul.mubr.bf16.gmra.mrb[0].mxu0 %v1687
      %v2095 = vpop.f32.mrb[0].mxu0
      %v2096 = vadd.f32 %v1935, %v2095
      %v2097 = vpop.f32.mrb[0].mxu0
      %v2098 = vpop.f32.mrb[0].mxu0
      %v2099 = vadd.f32 %v1938, %v2098
      %v2100 = vpop.f32.mrb[0].mxu0
      %2101 = vmatprep.mubr.bf16.mxu0 0
      %2102 = vmatmul.mubr.bf16.gmra.mrb[0].mxu0 %v1690
      %v2103 = vpop.f32.mrb[0].mxu0
      %v2104 = vadd.f32 %v1943, %v2103
      %v2105 = vpop.f32.mrb[0].mxu0
      %v2106 = vpop.f32.mrb[0].mxu0
      %v2107 = vadd.f32 %v1946, %v2106
      %v2108 = vpop.f32.mrb[0].mxu0
      %2109 = vmatprep.mubr.bf16.mxu0 0
      %2110 = vmatmul.mubr.bf16.gmra.mrb[0].mxu0 %v1693
      %v2111 = vpop.f32.mrb[0].mxu0
      %v2112 = vadd.f32 %v1951, %v2111
      %v2113 = vpop.f32.mrb[0].mxu0
      %v2114 = vpop.f32.mrb[0].mxu0
      %v2115 = vadd.f32 %v1954, %v2114
      %v2116 = vpop.f32.mrb[0].mxu0
      %2117 = vmatprep.mubr.bf16.mxu0 0
      %2118 = vmatmul.mubr.bf16.gmra.mrb[0].mxu0 %v1696
      %v2119 = vpop.f32.mrb[0].mxu0
      %v2120 = vadd.f32 %v1959, %v2119
      %v2121 = vpop.f32.mrb[0].mxu0
      %v2122 = vpop.f32.mrb[0].mxu0
      %v2123 = vadd.f32 %v1962, %v2122
      %v2124 = vpop.f32.mrb[0].mxu0
      %2125 = vmatprep.mubr.bf16.mxu0 0
      %2126 = vmatmul.mubr.bf16.gmra.mrb[0].mxu0 %v1699
      %v2127 = vpop.f32.mrb[0].mxu0
      %v2128 = vadd.f32 %v1967, %v2127
      %v2129 = vpop.f32.mrb[0].mxu0
      %v2130 = vpop.f32.mrb[0].mxu0
      %v2131 = vadd.f32 %v1970, %v2130
      %v2132 = vpop.f32.mrb[0].mxu0
      %2133 = vmatprep.mubr.bf16.mxu0 0
      %2134 = vmatmul.mubr.bf16.gmra.mrb[0].mxu0 %v1702
      %v2135 = vpop.f32.mrb[0].mxu0
      %v2136 = vadd.f32 %v1975, %v2135
      %v2137 = vpop.f32.mrb[0].mxu0
      %v2138 = vpop.f32.mrb[0].mxu0
      %v2139 = vadd.f32 %v1978, %v2138
      %v2140 = vpop.f32.mrb[0].mxu0
      %2141 = vmatprep.mubr.bf16.mxu0 0
      %2142 = vmatmul.mubr.bf16.gmra.mrb[0].mxu0 %v1705
      %v2143 = vpop.f32.mrb[0].mxu0
      %v2144 = vadd.f32 %v1983, %v2143
      %v2145 = vpop.f32.mrb[0].mxu0
      %v2146 = vpop.f32.mrb[0].mxu0
      %v2147 = vadd.f32 %v1986, %v2146
      %v2148 = vpop.f32.mrb[0].mxu0
      %2149 = vmatprep.mubr.bf16.mxu0 0
      %2150 = vmatmul.mubr.bf16.gmra.mrb[0].mxu0 %v1708
      %v2151 = vpop.f32.mrb[0].mxu0
      %v2152 = vadd.f32 %v1991, %v2151
      %v2153 = vpop.f32.mrb[0].mxu0
      %v2154 = vpop.f32.mrb[0].mxu0
      %v2155 = vadd.f32 %v1994, %v2154
      %v2156 = vpop.f32.mrb[0].mxu0
      %2157 = vmatprep.mubr.bf16.mxu0 0
      %2158 = vmatmul.mubr.bf16.gmra.mrb[0].mxu0 %v1711
      %v2159 = vpop.f32.mrb[0].mxu0
      %v2160 = vadd.f32 %v1999, %v2159
      %v2161 = vpop.f32.mrb[0].mxu0
      %v2162 = vpop.f32.mrb[0].mxu0
      %v2163 = vadd.f32 %v2002, %v2162
      %v2164 = vpop.f32.mrb[0].mxu0
      %2165 = vmatprep.mubr.bf16.mxu0 0
      %2166 = vmatmul.mubr.bf16.gmra.mrb[0].mxu0 %v1714
      %v2167 = vpop.f32.mrb[0].mxu0
      %v2168 = vadd.f32 %v2007, %v2167
      %v2169 = vpop.f32.mrb[0].mxu0
      %v2170 = vpop.f32.mrb[0].mxu0
      %v2171 = vadd.f32 %v2010, %v2170
      %v2172 = vpop.f32.mrb[0].mxu0
      %2173 = vmatprep.mubr.bf16.mxu0 0
      %2174 = vmatmul.mubr.bf16.gmra.mrb[0].mxu0 %v1717
      %v2175 = vpop.f32.mrb[0].mxu0
      %v2176 = vadd.f32 %v2015, %v2175
      %v2177 = vpop.f32.mrb[0].mxu0
      %v2178 = vpop.f32.mrb[0].mxu0
      %v2179 = vadd.f32 %v2018, %v2178
      %v2180 = vpop.f32.mrb[0].mxu0
      %2181 = vmatprep.mubr.bf16.mxu0 0
      %2182 = vmatmul.mubr.bf16.gmra.mrb[0].mxu0 %v1720
      %v2183 = vpop.f32.mrb[0].mxu0
      %v2184 = vadd.f32 %v2023, %v2183
      %v2185 = vpop.f32.mrb[0].mxu0
      %v2186 = vpop.f32.mrb[0].mxu0
      %v2187 = vadd.f32 %v2026, %v2186
      %v2188 = vpop.f32.mrb[0].mxu0
      %2189 = vmatprep.mubr.bf16.mxu0 0
      %2190 = vmatmul.mubr.bf16.gmra.mrb[0].mxu0 %v1723
      %v2191 = vpop.f32.mrb[0].mxu0
      %v2192 = vadd.f32 %v2031, %v2191
      %v2193 = vpop.f32.mrb[0].mxu0
      %v2194 = vpop.f32.mrb[0].mxu0
      %v2195 = vadd.f32 %v2034, %v2194
      %v2196 = vpop.f32.mrb[0].mxu0
      %2197 = vmatprep.mubr.bf16.mxu0 0
      %2198 = vmatmul.mubr.bf16.gmra.mrb[0].mxu0 %v1726
      %v2199 = vpop.f32.mrb[0].mxu0
      %v2200 = vadd.f32 %v2039, %v2199
      %v2201 = vpop.f32.mrb[0].mxu0
      %v2202 = vpop.f32.mrb[0].mxu0
      %v2203 = vadd.f32 %v2042, %v2202
      %v2204 = vpop.f32.mrb[0].mxu0
      %2205 = vmatprep.mubr.bf16.mxu0 0
      %2206 = vmatmul.mubr.bf16.gmra.mrb[0].mxu0 %v1729
      %v2207 = vpop.f32.mrb[0].mxu0
      %v2208 = vadd.f32 %v2047, %v2207
      %v2209 = vpop.f32.mrb[0].mxu0
      %v2210 = vpop.f32.mrb[0].mxu0
      %v2211 = vadd.f32 %v2050, %v2210
      %v2212 = vpop.f32.mrb[0].mxu0
      %2213 = vdwg.mxu0
      %v2214 = vld [vmem:[%s3] sm:$0xf]
      %v2215 = vld [vmem:[%s3 + $0x4] sm:$0xf]
      %v2216 = vld [vmem:[%s3 + $0x8] sm:$0xf]
      %v2217 = vld [vmem:[%s3 + $0xc] sm:$0xf]
      %v2218 = vld [vmem:[%s3 + $0x10] sm:$0xf]
      %v2219 = vld [vmem:[%s3 + $0x14] sm:$0xf]
      %v2220 = vld [vmem:[%s3 + $0x18] sm:$0xf]
      %v2221 = vld [vmem:[%s3 + $0x1c] sm:$0xf]
      %v2222 = vld [vmem:[%s3 + $0x20] sm:$0xf]
      %v2223 = vld [vmem:[%s3 + $0x24] sm:$0xf]
      %v2224 = vld [vmem:[%s3 + $0x28] sm:$0xf]
      %v2225 = vld [vmem:[%s3 + $0x2c] sm:$0xf]
      %v2226 = vld [vmem:[%s3 + $0x30] sm:$0xf]
      %v2227 = vld [vmem:[%s3 + $0x34] sm:$0xf]
      %v2228 = vld [vmem:[%s3 + $0x38] sm:$0xf]
      %v2229 = vld [vmem:[%s3 + $0x3c] sm:$0xf]
      %v2230 = vld [vmem:[%s3 + $0x40] sm:$0xf]
      %v2231 = vld [vmem:[%s3 + $0x44] sm:$0xf]
      %v2232 = vld [vmem:[%s3 + $0x48] sm:$0xf]
      %v2233 = vld [vmem:[%s3 + $0x4c] sm:$0xf]
      %v2234 = vld [vmem:[%s3 + $0x50] sm:$0xf]
      %v2235 = vld [vmem:[%s3 + $0x54] sm:$0xf]
      %v2236 = vld [vmem:[%s3 + $0x58] sm:$0xf]
      %v2237 = vld [vmem:[%s3 + $0x5c] sm:$0xf]
      %v2238 = vld [vmem:[%s3 + $0x60] sm:$0xf]
      %v2239 = vld [vmem:[%s3 + $0x64] sm:$0xf]
      %v2240 = vld [vmem:[%s3 + $0x68] sm:$0xf]
      %v2241 = vld [vmem:[%s3 + $0x6c] sm:$0xf]
      %v2242 = vld [vmem:[%s3 + $0x70] sm:$0xf]
      %v2243 = vld [vmem:[%s3 + $0x74] sm:$0xf]
      %v2244 = vld [vmem:[%s3 + $0x78] sm:$0xf]
      %v2245 = vld [vmem:[%s3 + $0x7c] sm:$0xf]
      %v2246 = vld [vmem:[%s3 + $0x80] sm:$0xf]
      %v2247 = vld [vmem:[%s3 + $0x84] sm:$0xf]
      %v2248 = vld [vmem:[%s3 + $0x88] sm:$0xf]
      %v2249 = vld [vmem:[%s3 + $0x8c] sm:$0xf]
      %v2250 = vld [vmem:[%s3 + $0x90] sm:$0xf]
      %v2251 = vld [vmem:[%s3 + $0x94] sm:$0xf]
      %v2252 = vld [vmem:[%s3 + $0x98] sm:$0xf]
      %v2253 = vld [vmem:[%s3 + $0x9c] sm:$0xf]
      %v2254 = vld [vmem:[%s3 + $0xa0] sm:$0xf]
      %v2255 = vld [vmem:[%s3 + $0xa4] sm:$0xf]
      %v2256 = vld [vmem:[%s3 + $0xa8] sm:$0xf]
      %v2257 = vld [vmem:[%s3 + $0xac] sm:$0xf]
      %v2258 = vld [vmem:[%s3 + $0xb0] sm:$0xf]
      %v2259 = vld [vmem:[%s3 + $0xb4] sm:$0xf]
      %v2260 = vld [vmem:[%s3 + $0xb8] sm:$0xf]
      %v2261 = vld [vmem:[%s3 + $0xbc] sm:$0xf]
      %v2262 = vld [vmem:[%s3 + $0xc0] sm:$0xf]
      %v2263 = vld [vmem:[%s3 + $0xc4] sm:$0xf]
      %v2264 = vld [vmem:[%s3 + $0xc8] sm:$0xf]
      %v2265 = vld [vmem:[%s3 + $0xcc] sm:$0xf]
      %v2266 = vld [vmem:[%s3 + $0xd0] sm:$0xf]
      %v2267 = vld [vmem:[%s3 + $0xd4] sm:$0xf]
      %v2268 = vld [vmem:[%s3 + $0xd8] sm:$0xf]
      %v2269 = vld [vmem:[%s3 + $0xdc] sm:$0xf]
      %v2270 = vld [vmem:[%s3 + $0xe0] sm:$0xf]
      %v2271 = vld [vmem:[%s3 + $0xe4] sm:$0xf]
      %v2272 = vld [vmem:[%s3 + $0xe8] sm:$0xf]
      %v2273 = vld [vmem:[%s3 + $0xec] sm:$0xf]
      %v2274 = vld [vmem:[%s3 + $0xf0] sm:$0xf]
      %v2275 = vld [vmem:[%s3 + $0xf4] sm:$0xf]
      %v2276 = vld [vmem:[%s3 + $0xf8] sm:$0xf]
      %v2277 = vld [vmem:[%s3 + $0xfc] sm:$0xf]
      %v2278 = vld [vmem:[%s3 + $0x100] sm:$0xf]
      %v2279 = vld [vmem:[%s3 + $0x104] sm:$0xf]
      %v2280 = vld [vmem:[%s3 + $0x108] sm:$0xf]
      %v2281 = vld [vmem:[%s3 + $0x10c] sm:$0xf]
      %v2282 = vld [vmem:[%s3 + $0x110] sm:$0xf]
      %v2283 = vld [vmem:[%s3 + $0x114] sm:$0xf]
      %v2284 = vld [vmem:[%s3 + $0x118] sm:$0xf]
      %v2285 = vld [vmem:[%s3 + $0x11c] sm:$0xf]
      %v2286 = vld [vmem:[%s4] sm:$0x1]
      %v2287 = vmax.f32 %v2088, 0.0
      %v2288 = vmax.f32 %v2091, 0.0
      %v2289 = vmax.f32 %v2096, 0.0
      %v2290 = vmax.f32 %v2099, 0.0
      %v2291 = vmax.f32 %v2104, 0.0
      %v2292 = vmax.f32 %v2107, 0.0
      %v2293 = vmax.f32 %v2112, 0.0
      %v2294 = vmax.f32 %v2115, 0.0
      %v2295 = vmax.f32 %v2120, 0.0
      %v2296 = vmax.f32 %v2123, 0.0
      %v2297 = vmax.f32 %v2128, 0.0
      %v2298 = vmax.f32 %v2131, 0.0
      %v2299 = vmax.f32 %v2136, 0.0
      %v2300 = vmax.f32 %v2139, 0.0
      %v2301 = vmax.f32 %v2144, 0.0
      %v2302 = vmax.f32 %v2147, 0.0
      %v2303 = vmax.f32 %v2152, 0.0
      %v2304 = vmax.f32 %v2155, 0.0
      %v2305 = vmax.f32 %v2160, 0.0
      %v2306 = vmax.f32 %v2163, 0.0
      %v2307 = vmax.f32 %v2168, 0.0
      %v2308 = vmax.f32 %v2171, 0.0
      %v2309 = vmax.f32 %v2176, 0.0
      %v2310 = vmax.f32 %v2179, 0.0
      %v2311 = vmax.f32 %v2184, 0.0
      %v2312 = vmax.f32 %v2187, 0.0
      %v2313 = vmax.f32 %v2192, 0.0
      %v2314 = vmax.f32 %v2195, 0.0
      %v2315 = vmax.f32 %v2200, 0.0
      %v2316 = vmax.f32 %v2203, 0.0
      %v2317 = vmax.f32 %v2208, 0.0
      %v2318 = vmax.f32 %v2211, 0.0
      %2319 = vst.msk [vmem:[%s419 + $0x1] sm:$0xff] %vm226, %v2287
      %2320 = vst.msk [vmem:[%s419 + $0x9] sm:$0xff] %vm226, %v2288
      %2321 = vst.msk [vmem:[%s419 + $0x19] sm:$0xff] %vm226, %v2289
      %2322 = vst.msk [vmem:[%s419 + $0x21] sm:$0xff] %vm226, %v2290
      %2323 = vst.msk [vmem:[%s419 + $0x31] sm:$0xff] %vm226, %v2291
      %2324 = vst.msk [vmem:[%s419 + $0x39] sm:$0xff] %vm226, %v2292
      %2325 = vst.msk [vmem:[%s419 + $0x49] sm:$0xff] %vm226, %v2293
      %2326 = vst.msk [vmem:[%s419 + $0x51] sm:$0xff] %vm226, %v2294
      %2327 = vst.msk [vmem:[%s419 + $0x61] sm:$0xff] %vm226, %v2295
      %2328 = vst.msk [vmem:[%s419 + $0x69] sm:$0xff] %vm226, %v2296
      %2329 = vst.msk [vmem:[%s419 + $0x79] sm:$0xff] %vm226, %v2297
      %2330 = vst.msk [vmem:[%s419 + $0x81] sm:$0xff] %vm226, %v2298
      %2331 = vst.msk [vmem:[%s419 + $0x91] sm:$0xff] %vm226, %v2299
      %2332 = vst.msk [vmem:[%s419 + $0x99] sm:$0xff] %vm226, %v2300
      %2333 = vst.msk [vmem:[%s419 + $0xa9] sm:$0xff] %vm226, %v2301
      %2334 = vst.msk [vmem:[%s419 + $0xb1] sm:$0xff] %vm226, %v2302
      %2335 = vst.msk [vmem:[%s419 + $0xc1] sm:$0xff] %vm226, %v2303
      %2336 = vst.msk [vmem:[%s419 + $0xc9] sm:$0xff] %vm226, %v2304
      %2337 = vst.msk [vmem:[%s419 + $0xd9] sm:$0xff] %vm226, %v2305
      %2338 = vst.msk [vmem:[%s419 + $0xe1] sm:$0xff] %vm226, %v2306
      %2339 = vst.msk [vmem:[%s419 + $0xf1] sm:$0xff] %vm226, %v2307
      %2340 = vst.msk [vmem:[%s419 + $0xf9] sm:$0xff] %vm226, %v2308
      %2341 = vst.msk [vmem:[%s419 + $0x109] sm:$0xff] %vm226, %v2309
      %2342 = vst.msk [vmem:[%s419 + $0x111] sm:$0xff] %vm226, %v2310
      %2343 = vst.msk [vmem:[%s419 + $0x121] sm:$0xff] %vm226, %v2311
      %2344 = vst.msk [vmem:[%s419 + $0x129] sm:$0xff] %vm226, %v2312
      %2345 = vst.msk [vmem:[%s419 + $0x139] sm:$0xff] %vm226, %v2313
      %2346 = vst.msk [vmem:[%s419 + $0x141] sm:$0xff] %vm226, %v2314
      %2347 = vst.msk [vmem:[%s419 + $0x151] sm:$0xff] %vm226, %v2315
      %2348 = vst.msk [vmem:[%s419 + $0x159] sm:$0xff] %vm226, %v2316
      %2349 = vst.msk [vmem:[%s419 + $0x169] sm:$0xff] %vm226, %v2317
      %2350 = vst.msk [vmem:[%s419 + $0x171] sm:$0xff] %vm226, %v2318
      %v2351 = vld [vmem:[#allocation2] sm:$0xff]
      %v2352 = vld [vmem:[#allocation2 + $0x8] sm:$0xff]
      %v2353 = vld [vmem:[#allocation2 + $0x18] sm:$0xff]
      %v2354 = vld [vmem:[#allocation2 + $0x20] sm:$0xff]
      %v2355 = vld [vmem:[#allocation2 + $0x30] sm:$0xff]
      %v2356 = vld [vmem:[#allocation2 + $0x38] sm:$0xff]
      %v2357 = vld [vmem:[#allocation2 + $0x48] sm:$0xff]
      %v2358 = vld [vmem:[#allocation2 + $0x50] sm:$0xff]
      %v2359 = vld [vmem:[#allocation2 + $0x60] sm:$0xff]
      %v2360 = vld [vmem:[#allocation2 + $0x68] sm:$0xff]
      %v2361 = vld [vmem:[#allocation2 + $0x78] sm:$0xff]
      %v2362 = vld [vmem:[#allocation2 + $0x80] sm:$0xff]
      %v2363 = vld [vmem:[#allocation2 + $0x90] sm:$0xff]
      %v2364 = vld [vmem:[#allocation2 + $0x98] sm:$0xff]
      %v2365 = vld [vmem:[#allocation2 + $0xa8] sm:$0xff]
      %v2366 = vld [vmem:[#allocation2 + $0xb0] sm:$0xff]
      %v2367 = vld [vmem:[#allocation2 + $0xc0] sm:$0xff]
      %v2368 = vld [vmem:[#allocation2 + $0xc8] sm:$0xff]
      %v2369 = vld [vmem:[#allocation2 + $0xd8] sm:$0xff]
      %v2370 = vld [vmem:[#allocation2 + $0xe0] sm:$0xff]
      %v2371 = vld [vmem:[#allocation2 + $0xf0] sm:$0xff]
      %v2372 = vld [vmem:[#allocation2 + $0xf8] sm:$0xff]
      %v2373 = vld [vmem:[#allocation2 + $0x108] sm:$0xff]
      %v2374 = vld [vmem:[#allocation2 + $0x110] sm:$0xff]
      %v2375 = vld [vmem:[#allocation2 + $0x120] sm:$0xff]
      %v2376 = vld [vmem:[#allocation2 + $0x128] sm:$0xff]
      %v2377 = vld [vmem:[#allocation2 + $0x138] sm:$0xff]
      %v2378 = vld [vmem:[#allocation2 + $0x140] sm:$0xff]
      %v2379 = vld [vmem:[#allocation2 + $0x150] sm:$0xff]
      %v2380 = vld [vmem:[#allocation2 + $0x158] sm:$0xff]
      %v2381 = vld [vmem:[#allocation2 + $0x168] sm:$0xff]
      %v2382 = vld [vmem:[#allocation2 + $0x170] sm:$0xff]
      %v2383 = vld [vmem:[#allocation2 + $0x1] sm:$0xff]
      %v2384 = vld [vmem:[#allocation2 + $0x9] sm:$0xff]
      %v2385 = vld [vmem:[#allocation2 + $0x19] sm:$0xff]
      %v2386 = vld [vmem:[#allocation2 + $0x21] sm:$0xff]
      %v2387 = vld [vmem:[#allocation2 + $0x31] sm:$0xff]
      %v2388 = vld [vmem:[#allocation2 + $0x39] sm:$0xff]
      %v2389 = vld [vmem:[#allocation2 + $0x49] sm:$0xff]
      %v2390 = vld [vmem:[#allocation2 + $0x51] sm:$0xff]
      %v2391 = vld [vmem:[#allocation2 + $0x61] sm:$0xff]
      %v2392 = vld [vmem:[#allocation2 + $0x69] sm:$0xff]
      %v2393 = vld [vmem:[#allocation2 + $0x79] sm:$0xff]
      %v2394 = vld [vmem:[#allocation2 + $0x81] sm:$0xff]
      %v2395 = vld [vmem:[#allocation2 + $0x91] sm:$0xff]
      %v2396 = vld [vmem:[#allocation2 + $0x99] sm:$0xff]
      %v2397 = vld [vmem:[#allocation2 + $0xa9] sm:$0xff]
      %v2398 = vld [vmem:[#allocation2 + $0xb1] sm:$0xff]
      %v2399 = vld [vmem:[#allocation2 + $0xc1] sm:$0xff]
      %v2400 = vld [vmem:[#allocation2 + $0xc9] sm:$0xff]
      %v2401 = vld [vmem:[#allocation2 + $0xd9] sm:$0xff]
      %v2402 = vld [vmem:[#allocation2 + $0xe1] sm:$0xff]
      %v2403 = vld [vmem:[#allocation2 + $0xf1] sm:$0xff]
      %v2404 = vld [vmem:[#allocation2 + $0xf9] sm:$0xff]
      %v2405 = vld [vmem:[#allocation2 + $0x109] sm:$0xff]
      %v2406 = vld [vmem:[#allocation2 + $0x111] sm:$0xff]
      %v2407 = vld [vmem:[#allocation2 + $0x121] sm:$0xff]
      %v2408 = vld [vmem:[#allocation2 + $0x129] sm:$0xff]
      %v2409 = vld [vmem:[#allocation2 + $0x139] sm:$0xff]
      %v2410 = vld [vmem:[#allocation2 + $0x141] sm:$0xff]
      %v2411 = vld [vmem:[#allocation2 + $0x151] sm:$0xff]
      %v2412 = vld [vmem:[#allocation2 + $0x159] sm:$0xff]
      %v2413 = vld [vmem:[#allocation2 + $0x169] sm:$0xff]
      %v2414 = vld [vmem:[#allocation2 + $0x171] sm:$0xff]
      %v2415 = vld [vmem:[#allocation2 + $0x2] sm:$0xff]
      %v2416 = vld [vmem:[#allocation2 + $0xa] sm:$0xff]
      %v2417 = vld [vmem:[#allocation2 + $0x1a] sm:$0xff]
      %v2418 = vld [vmem:[#allocation2 + $0x22] sm:$0xff]
      %v2419 = vld [vmem:[#allocation2 + $0x32] sm:$0xff]
      %v2420 = vld [vmem:[#allocation2 + $0x3a] sm:$0xff]
      %v2421 = vld [vmem:[#allocation2 + $0x4a] sm:$0xff]
      %v2422 = vld [vmem:[#allocation2 + $0x52] sm:$0xff]
      %v2423 = vld [vmem:[#allocation2 + $0x62] sm:$0xff]
      %v2424 = vld [vmem:[#allocation2 + $0x6a] sm:$0xff]
      %v2425 = vld [vmem:[#allocation2 + $0x7a] sm:$0xff]
      %v2426 = vld [vmem:[#allocation2 + $0x82] sm:$0xff]
      %v2427 = vld [vmem:[#allocation2 + $0x92] sm:$0xff]
      %v2428 = vld [vmem:[#allocation2 + $0x9a] sm:$0xff]
      %v2429 = vld [vmem:[#allocation2 + $0xaa] sm:$0xff]
      %v2430 = vld [vmem:[#allocation2 + $0xb2] sm:$0xff]
      %v2431 = vld [vmem:[#allocation2 + $0xc2] sm:$0xff]
      %v2432 = vld [vmem:[#allocation2 + $0xca] sm:$0xff]
      %v2433 = vld [vmem:[#allocation2 + $0xda] sm:$0xff]
      %v2434 = vld [vmem:[#allocation2 + $0xe2] sm:$0xff]
      %v2435 = vld [vmem:[#allocation2 + $0xf2] sm:$0xff]
      %v2436 = vld [vmem:[#allocation2 + $0xfa] sm:$0xff]
      %v2437 = vld [vmem:[#allocation2 + $0x10a] sm:$0xff]
      %v2438 = vld [vmem:[#allocation2 + $0x112] sm:$0xff]
      %v2439 = vld [vmem:[#allocation2 + $0x122] sm:$0xff]
      %v2440 = vld [vmem:[#allocation2 + $0x12a] sm:$0xff]
      %v2441 = vld [vmem:[#allocation2 + $0x13a] sm:$0xff]
      %v2442 = vld [vmem:[#allocation2 + $0x142] sm:$0xff]
      %v2443 = vld [vmem:[#allocation2 + $0x152] sm:$0xff]
      %v2444 = vld [vmem:[#allocation2 + $0x15a] sm:$0xff]
      %v2445 = vld [vmem:[#allocation2 + $0x16a] sm:$0xff]
      %v2446 = vld [vmem:[#allocation2 + $0x172] sm:$0xff]
      %v2447 = vld [vmem:[%s419] sm:$0xff]
      %v2448 = vld [vmem:[%s419 + $0x8] sm:$0xff]
      %v2449 = vld [vmem:[%s419 + $0x18] sm:$0xff]
      %v2450 = vld [vmem:[%s419 + $0x20] sm:$0xff]
      %v2451 = vld [vmem:[%s419 + $0x30] sm:$0xff]
      %v2452 = vld [vmem:[%s419 + $0x38] sm:$0xff]
      %v2453 = vld [vmem:[%s419 + $0x48] sm:$0xff]
      %v2454 = vld [vmem:[%s419 + $0x50] sm:$0xff]
      %v2455 = vld [vmem:[%s419 + $0x60] sm:$0xff]
      %v2456 = vld [vmem:[%s419 + $0x68] sm:$0xff]
      %v2457 = vld [vmem:[%s419 + $0x78] sm:$0xff]
      %v2458 = vld [vmem:[%s419 + $0x80] sm:$0xff]
      %v2459 = vld [vmem:[%s419 + $0x90] sm:$0xff]
      %v2460 = vld [vmem:[%s419 + $0x98] sm:$0xff]
      %v2461 = vld [vmem:[%s419 + $0xa8] sm:$0xff]
      %v2462 = vld [vmem:[%s419 + $0xb0] sm:$0xff]
      %v2463 = vld [vmem:[%s419 + $0xc0] sm:$0xff]
      %v2464 = vld [vmem:[%s419 + $0xc8] sm:$0xff]
      %v2465 = vld [vmem:[%s419 + $0xd8] sm:$0xff]
      %v2466 = vld [vmem:[%s419 + $0xe0] sm:$0xff]
      %v2467 = vld [vmem:[%s419 + $0xf0] sm:$0xff]
      %v2468 = vld [vmem:[%s419 + $0xf8] sm:$0xff]
      %v2469 = vld [vmem:[%s419 + $0x108] sm:$0xff]
      %v2470 = vld [vmem:[%s419 + $0x110] sm:$0xff]
      %v2471 = vld [vmem:[%s419 + $0x120] sm:$0xff]
      %v2472 = vld [vmem:[%s419 + $0x128] sm:$0xff]
      %v2473 = vld [vmem:[%s419 + $0x138] sm:$0xff]
      %v2474 = vld [vmem:[%s419 + $0x140] sm:$0xff]
      %v2475 = vld [vmem:[%s419 + $0x150] sm:$0xff]
      %v2476 = vld [vmem:[%s419 + $0x158] sm:$0xff]
      %v2477 = vld [vmem:[%s419 + $0x168] sm:$0xff]
      %v2478 = vld [vmem:[%s419 + $0x170] sm:$0xff]
      %v2479 = vld [vmem:[%s419 + $0x1] sm:$0xff]
      %v2480 = vld [vmem:[%s419 + $0x9] sm:$0xff]
      %v2481 = vld [vmem:[%s419 + $0x19] sm:$0xff]
      %v2482 = vld [vmem:[%s419 + $0x21] sm:$0xff]
      %v2483 = vld [vmem:[%s419 + $0x31] sm:$0xff]
      %v2484 = vld [vmem:[%s419 + $0x39] sm:$0xff]
      %v2485 = vld [vmem:[%s419 + $0x49] sm:$0xff]
      %v2486 = vld [vmem:[%s419 + $0x51] sm:$0xff]
      %v2487 = vld [vmem:[%s419 + $0x61] sm:$0xff]
      %v2488 = vld [vmem:[%s419 + $0x69] sm:$0xff]
      %v2489 = vld [vmem:[%s419 + $0x79] sm:$0xff]
      %v2490 = vld [vmem:[%s419 + $0x81] sm:$0xff]
      %v2491 = vld [vmem:[%s419 + $0x91] sm:$0xff]
      %v2492 = vld [vmem:[%s419 + $0x99] sm:$0xff]
      %v2493 = vld [vmem:[%s419 + $0xa9] sm:$0xff]
      %v2494 = vld [vmem:[%s419 + $0xb1] sm:$0xff]
      %v2495 = vld [vmem:[%s419 + $0xc1] sm:$0xff]
      %v2496 = vld [vmem:[%s419 + $0xc9] sm:$0xff]
      %v2497 = vld [vmem:[%s419 + $0xd9] sm:$0xff]
      %v2498 = vld [vmem:[%s419 + $0xe1] sm:$0xff]
      %v2499 = vld [vmem:[%s419 + $0xf1] sm:$0xff]
      %v2500 = vld [vmem:[%s419 + $0xf9] sm:$0xff]
      %v2501 = vld [vmem:[%s419 + $0x109] sm:$0xff]
      %v2502 = vld [vmem:[%s419 + $0x111] sm:$0xff]
      %v2503 = vld [vmem:[%s419 + $0x121] sm:$0xff]
      %v2504 = vld [vmem:[%s419 + $0x129] sm:$0xff]
      %v2505 = vld [vmem:[%s419 + $0x139] sm:$0xff]
      %v2506 = vld [vmem:[%s419 + $0x141] sm:$0xff]
      %v2507 = vld [vmem:[%s419 + $0x151] sm:$0xff]
      %v2508 = vld [vmem:[%s419 + $0x159] sm:$0xff]
      %v2509 = vld [vmem:[%s419 + $0x169] sm:$0xff]
      %v2510 = vld [vmem:[%s419 + $0x171] sm:$0xff]
      %v2511 = vld [vmem:[%s419 + $0x2] sm:$0xff]
      %v2512 = vld [vmem:[%s419 + $0xa] sm:$0xff]
      %v2513 = vld [vmem:[%s419 + $0x1a] sm:$0xff]
      %v2514 = vld [vmem:[%s419 + $0x22] sm:$0xff]
      %v2515 = vld [vmem:[%s419 + $0x32] sm:$0xff]
      %v2516 = vld [vmem:[%s419 + $0x3a] sm:$0xff]
      %v2517 = vld [vmem:[%s419 + $0x4a] sm:$0xff]
      %v2518 = vld [vmem:[%s419 + $0x52] sm:$0xff]
      %v2519 = vld [vmem:[%s419 + $0x62] sm:$0xff]
      %v2520 = vld [vmem:[%s419 + $0x6a] sm:$0xff]
      %v2521 = vld [vmem:[%s419 + $0x7a] sm:$0xff]
      %v2522 = vld [vmem:[%s419 + $0x82] sm:$0xff]
      %v2523 = vld [vmem:[%s419 + $0x92] sm:$0xff]
      %v2524 = vld [vmem:[%s419 + $0x9a] sm:$0xff]
      %v2525 = vld [vmem:[%s419 + $0xaa] sm:$0xff]
      %v2526 = vld [vmem:[%s419 + $0xb2] sm:$0xff]
      %v2527 = vld [vmem:[%s419 + $0xc2] sm:$0xff]
      %v2528 = vld [vmem:[%s419 + $0xca] sm:$0xff]
      %v2529 = vld [vmem:[%s419 + $0xda] sm:$0xff]
      %v2530 = vld [vmem:[%s419 + $0xe2] sm:$0xff]
      %v2531 = vld [vmem:[%s419 + $0xf2] sm:$0xff]
      %v2532 = vld [vmem:[%s419 + $0xfa] sm:$0xff]
      %v2533 = vld [vmem:[%s419 + $0x10a] sm:$0xff]
      %v2534 = vld [vmem:[%s419 + $0x112] sm:$0xff]
      %v2535 = vld [vmem:[%s419 + $0x122] sm:$0xff]
      %v2536 = vld [vmem:[%s419 + $0x12a] sm:$0xff]
      %v2537 = vld [vmem:[%s419 + $0x13a] sm:$0xff]
      %v2538 = vld [vmem:[%s419 + $0x142] sm:$0xff]
      %v2539 = vld [vmem:[%s419 + $0x152] sm:$0xff]
      %v2540 = vld [vmem:[%s419 + $0x15a] sm:$0xff]
      %v2541 = vld [vmem:[%s419 + $0x16a] sm:$0xff]
      %v2542 = vld [vmem:[%s419 + $0x172] sm:$0xff]
      %v2543 = vld [vmem:[%s644] sm:$0xff]
      %v2544 = vld [vmem:[%s644 + $0x8] sm:$0xff]
      %v2545 = vld [vmem:[%s644 + $0x18] sm:$0xff]
      %v2546 = vld [vmem:[%s644 + $0x20] sm:$0xff]
      %v2547 = vld [vmem:[%s644 + $0x30] sm:$0xff]
      %v2548 = vld [vmem:[%s644 + $0x38] sm:$0xff]
      %v2549 = vld [vmem:[%s644 + $0x48] sm:$0xff]
      %v2550 = vld [vmem:[%s644 + $0x50] sm:$0xff]
      %v2551 = vld [vmem:[%s644 + $0x60] sm:$0xff]
      %v2552 = vld [vmem:[%s644 + $0x68] sm:$0xff]
      %v2553 = vld [vmem:[%s644 + $0x78] sm:$0xff]
      %v2554 = vld [vmem:[%s644 + $0x80] sm:$0xff]
      %v2555 = vld [vmem:[%s644 + $0x90] sm:$0xff]
      %v2556 = vld [vmem:[%s644 + $0x98] sm:$0xff]
      %v2557 = vld [vmem:[%s644 + $0xa8] sm:$0xff]
      %v2558 = vld [vmem:[%s644 + $0xb0] sm:$0xff]
      %v2559 = vld [vmem:[%s644 + $0xc0] sm:$0xff]
      %v2560 = vld [vmem:[%s644 + $0xc8] sm:$0xff]
      %v2561 = vld [vmem:[%s644 + $0xd8] sm:$0xff]
      %v2562 = vld [vmem:[%s644 + $0xe0] sm:$0xff]
      %v2563 = vld [vmem:[%s644 + $0xf0] sm:$0xff]
      %v2564 = vld [vmem:[%s644 + $0xf8] sm:$0xff]
      %v2565 = vld [vmem:[%s644 + $0x108] sm:$0xff]
      %v2566 = vld [vmem:[%s644 + $0x110] sm:$0xff]
      %v2567 = vld [vmem:[%s644 + $0x120] sm:$0xff]
      %v2568 = vld [vmem:[%s644 + $0x128] sm:$0xff]
      %v2569 = vld [vmem:[%s644 + $0x138] sm:$0xff]
      %v2570 = vld [vmem:[%s644 + $0x140] sm:$0xff]
      %v2571 = vld [vmem:[%s644 + $0x150] sm:$0xff]
      %v2572 = vld [vmem:[%s644 + $0x158] sm:$0xff]
      %v2573 = vld [vmem:[%s644 + $0x168] sm:$0xff]
      %v2574 = vld [vmem:[%s644 + $0x170] sm:$0xff]
      %v2575 = vld [vmem:[%s644 + $0x1] sm:$0xff]
      %v2576 = vld [vmem:[%s644 + $0x9] sm:$0xff]
      %v2577 = vld [vmem:[%s644 + $0x19] sm:$0xff]
      %v2578 = vld [vmem:[%s644 + $0x21] sm:$0xff]
      %v2579 = vld [vmem:[%s644 + $0x31] sm:$0xff]
      %v2580 = vld [vmem:[%s644 + $0x39] sm:$0xff]
      %v2581 = vld [vmem:[%s644 + $0x49] sm:$0xff]
      %v2582 = vld [vmem:[%s644 + $0x51] sm:$0xff]
      %v2583 = vld [vmem:[%s644 + $0x61] sm:$0xff]
      %v2584 = vld [vmem:[%s644 + $0x69] sm:$0xff]
      %v2585 = vld [vmem:[%s644 + $0x79] sm:$0xff]
      %v2586 = vld [vmem:[%s644 + $0x81] sm:$0xff]
      %v2587 = vld [vmem:[%s644 + $0x91] sm:$0xff]
      %v2588 = vld [vmem:[%s644 + $0x99] sm:$0xff]
      %v2589 = vld [vmem:[%s644 + $0xa9] sm:$0xff]
      %v2590 = vld [vmem:[%s644 + $0xb1] sm:$0xff]
      %v2591 = vld [vmem:[%s644 + $0xc1] sm:$0xff]
      %v2592 = vld [vmem:[%s644 + $0xc9] sm:$0xff]
      %v2593 = vld [vmem:[%s644 + $0xd9] sm:$0xff]
      %v2594 = vld [vmem:[%s644 + $0xe1] sm:$0xff]
      %v2595 = vld [vmem:[%s644 + $0xf1] sm:$0xff]
      %v2596 = vld [vmem:[%s644 + $0xf9] sm:$0xff]
      %v2597 = vld [vmem:[%s644 + $0x109] sm:$0xff]
      %v2598 = vld [vmem:[%s644 + $0x111] sm:$0xff]
      %v2599 = vld [vmem:[%s644 + $0x121] sm:$0xff]
      %v2600 = vld [vmem:[%s644 + $0x129] sm:$0xff]
      %v2601 = vld [vmem:[%s644 + $0x139] sm:$0xff]
      %v2602 = vld [vmem:[%s644 + $0x141] sm:$0xff]
      %v2603 = vld [vmem:[%s644 + $0x151] sm:$0xff]
      %v2604 = vld [vmem:[%s644 + $0x159] sm:$0xff]
      %v2605 = vld [vmem:[%s644 + $0x169] sm:$0xff]
      %v2606 = vld [vmem:[%s644 + $0x171] sm:$0xff]
      %v2607 = vld [vmem:[%s644 + $0x2] sm:$0xff]
      %v2608 = vld [vmem:[%s644 + $0xa] sm:$0xff]
      %v2609 = vld [vmem:[%s644 + $0x1a] sm:$0xff]
      %v2610 = vld [vmem:[%s644 + $0x22] sm:$0xff]
      %v2611 = vld [vmem:[%s644 + $0x32] sm:$0xff]
      %v2612 = vld [vmem:[%s644 + $0x3a] sm:$0xff]
      %v2613 = vld [vmem:[%s644 + $0x4a] sm:$0xff]
      %v2614 = vld [vmem:[%s644 + $0x52] sm:$0xff]
      %v2615 = vld [vmem:[%s644 + $0x62] sm:$0xff]
      %v2616 = vld [vmem:[%s644 + $0x6a] sm:$0xff]
      %v2617 = vld [vmem:[%s644 + $0x7a] sm:$0xff]
      %v2618 = vld [vmem:[%s644 + $0x82] sm:$0xff]
      %v2619 = vld [vmem:[%s644 + $0x92] sm:$0xff]
      %v2620 = vld [vmem:[%s644 + $0x9a] sm:$0xff]
      %v2621 = vld [vmem:[%s644 + $0xaa] sm:$0xff]
      %v2622 = vld [vmem:[%s644 + $0xb2] sm:$0xff]
      %v2623 = vld [vmem:[%s644 + $0xc2] sm:$0xff]
      %v2624 = vld [vmem:[%s644 + $0xca] sm:$0xff]
      %v2625 = vld [vmem:[%s644 + $0xda] sm:$0xff]
      %v2626 = vld [vmem:[%s644 + $0xe2] sm:$0xff]
      %v2627 = vld [vmem:[%s644 + $0xf2] sm:$0xff]
      %v2628 = vld [vmem:[%s644 + $0xfa] sm:$0xff]
      %v2629 = vld [vmem:[%s644 + $0x10a] sm:$0xff]
      %v2630 = vld [vmem:[%s644 + $0x112] sm:$0xff]
      %v2631 = vld [vmem:[%s644 + $0x122] sm:$0xff]
      %v2632 = vld [vmem:[%s644 + $0x12a] sm:$0xff]
      %v2633 = vld [vmem:[%s644 + $0x13a] sm:$0xff]
      %v2634 = vld [vmem:[%s644 + $0x142] sm:$0xff]
      %v2635 = vld [vmem:[%s644 + $0x152] sm:$0xff]
      %v2636 = vld [vmem:[%s644 + $0x15a] sm:$0xff]
      %v2637 = vld [vmem:[%s644 + $0x16a] sm:$0xff]
      %v2638 = vld [vmem:[%s644 + $0x172] sm:$0xff]
      %2671 = vrot.lane.b32.xlu0 %v2383, 64
      %v2672 = vpop.permute.xlu0 %2671
      %2673 = vrot.lane.b32.xlu0 %v2384, 64
      %v2674 = vpop.permute.xlu0 %2673
      %2675 = vrot.lane.b32.xlu0 %v2385, 64
      %v2676 = vpop.permute.xlu0 %2675
      %2677 = vrot.lane.b32.xlu0 %v2386, 64
      %v2678 = vpop.permute.xlu0 %2677
      %2679 = vrot.lane.b32.xlu0 %v2387, 64
      %v2680 = vpop.permute.xlu0 %2679
      %2681 = vrot.lane.b32.xlu0 %v2388, 64
      %v2682 = vpop.permute.xlu0 %2681
      %2683 = vrot.lane.b32.xlu0 %v2389, 64
      %v2684 = vpop.permute.xlu0 %2683
      %2685 = vrot.lane.b32.xlu0 %v2390, 64
      %v2686 = vpop.permute.xlu0 %2685
      %2687 = vrot.lane.b32.xlu0 %v2391, 64
      %v2688 = vpop.permute.xlu0 %2687
      %2689 = vrot.lane.b32.xlu0 %v2392, 64
      %v2690 = vpop.permute.xlu0 %2689
      %2691 = vrot.lane.b32.xlu0 %v2393, 64
      %v2692 = vpop.permute.xlu0 %2691
      %2693 = vrot.lane.b32.xlu0 %v2394, 64
      %v2694 = vpop.permute.xlu0 %2693
      %2695 = vrot.lane.b32.xlu0 %v2395, 64
      %v2696 = vpop.permute.xlu0 %2695
      %2697 = vrot.lane.b32.xlu0 %v2396, 64
      %v2698 = vpop.permute.xlu0 %2697
      %2699 = vrot.lane.b32.xlu0 %v2397, 64
      %v2700 = vpop.permute.xlu0 %2699
      %2701 = vrot.lane.b32.xlu0 %v2398, 64
      %v2702 = vpop.permute.xlu0 %2701
      %2703 = vrot.lane.b32.xlu0 %v2399, 64
      %v2704 = vpop.permute.xlu0 %2703
      %2705 = vrot.lane.b32.xlu0 %v2400, 64
      %v2706 = vpop.permute.xlu0 %2705
      %2707 = vrot.lane.b32.xlu0 %v2401, 64
      %v2708 = vpop.permute.xlu0 %2707
      %2709 = vrot.lane.b32.xlu0 %v2402, 64
      %v2710 = vpop.permute.xlu0 %2709
      %2711 = vrot.lane.b32.xlu0 %v2403, 64
      %v2712 = vpop.permute.xlu0 %2711
      %2713 = vrot.lane.b32.xlu0 %v2404, 64
      %v2714 = vpop.permute.xlu0 %2713
      %2715 = vrot.lane.b32.xlu0 %v2405, 64
      %v2716 = vpop.permute.xlu0 %2715
      %2717 = vrot.lane.b32.xlu0 %v2406, 64
      %v2718 = vpop.permute.xlu0 %2717
      %2719 = vrot.lane.b32.xlu0 %v2407, 64
      %v2720 = vpop.permute.xlu0 %2719
      %2721 = vrot.lane.b32.xlu0 %v2408, 64
      %v2722 = vpop.permute.xlu0 %2721
      %2723 = vrot.lane.b32.xlu0 %v2409, 64
      %v2724 = vpop.permute.xlu0 %2723
      %2725 = vrot.lane.b32.xlu0 %v2410, 64
      %v2726 = vpop.permute.xlu0 %2725
      %2727 = vrot.lane.b32.xlu0 %v2411, 64
      %v2728 = vpop.permute.xlu0 %2727
      %2729 = vrot.lane.b32.xlu0 %v2412, 64
      %v2730 = vpop.permute.xlu0 %2729
      %2731 = vrot.lane.b32.xlu0 %v2413, 64
      %v2732 = vpop.permute.xlu0 %2731
      %2733 = vrot.lane.b32.xlu0 %v2414, 64
      %v2734 = vpop.permute.xlu0 %2733
      %2799 = vrot.lane.b32.xlu0 %v2447, 64
      %v2800 = vpop.permute.xlu0 %2799
      %2801 = vrot.lane.b32.xlu0 %v2448, 64
      %v2802 = vpop.permute.xlu0 %2801
      %2803 = vrot.lane.b32.xlu0 %v2449, 64
      %v2804 = vpop.permute.xlu0 %2803
      %2805 = vrot.lane.b32.xlu0 %v2450, 64
      %v2806 = vpop.permute.xlu0 %2805
      %2807 = vrot.lane.b32.xlu0 %v2451, 64
      %v2808 = vpop.permute.xlu0 %2807
      %2809 = vrot.lane.b32.xlu0 %v2452, 64
      %v2810 = vpop.permute.xlu0 %2809
      %2811 = vrot.lane.b32.xlu0 %v2453, 64
      %v2812 = vpop.permute.xlu0 %2811
      %2813 = vrot.lane.b32.xlu0 %v2454, 64
      %v2814 = vpop.permute.xlu0 %2813
      %2815 = vrot.lane.b32.xlu0 %v2455, 64
      %v2816 = vpop.permute.xlu0 %2815
      %2817 = vrot.lane.b32.xlu0 %v2456, 64
      %v2818 = vpop.permute.xlu0 %2817
      %2819 = vrot.lane.b32.xlu0 %v2457, 64
      %v2820 = vpop.permute.xlu0 %2819
      %2821 = vrot.lane.b32.xlu0 %v2458, 64
      %v2822 = vpop.permute.xlu0 %2821
      %2823 = vrot.lane.b32.xlu0 %v2459, 64
      %v2824 = vpop.permute.xlu0 %2823
      %2825 = vrot.lane.b32.xlu0 %v2460, 64
      %v2826 = vpop.permute.xlu0 %2825
      %2827 = vrot.lane.b32.xlu0 %v2461, 64
      %v2828 = vpop.permute.xlu0 %2827
      %2829 = vrot.lane.b32.xlu0 %v2462, 64
      %v2830 = vpop.permute.xlu0 %2829
      %2831 = vrot.lane.b32.xlu0 %v2463, 64
      %v2832 = vpop.permute.xlu0 %2831
      %2833 = vrot.lane.b32.xlu0 %v2464, 64
      %v2834 = vpop.permute.xlu0 %2833
      %2835 = vrot.lane.b32.xlu0 %v2465, 64
      %v2836 = vpop.permute.xlu0 %2835
      %2837 = vrot.lane.b32.xlu0 %v2466, 64
      %v2838 = vpop.permute.xlu0 %2837
      %2839 = vrot.lane.b32.xlu0 %v2467, 64
      %v2840 = vpop.permute.xlu0 %2839
      %2841 = vrot.lane.b32.xlu0 %v2468, 64
      %v2842 = vpop.permute.xlu0 %2841
      %2843 = vrot.lane.b32.xlu0 %v2469, 64
      %v2844 = vpop.permute.xlu0 %2843
      %2845 = vrot.lane.b32.xlu0 %v2470, 64
      %v2846 = vpop.permute.xlu0 %2845
      %2847 = vrot.lane.b32.xlu0 %v2471, 64
      %v2848 = vpop.permute.xlu0 %2847
      %2849 = vrot.lane.b32.xlu0 %v2472, 64
      %v2850 = vpop.permute.xlu0 %2849
      %2851 = vrot.lane.b32.xlu0 %v2473, 64
      %v2852 = vpop.permute.xlu0 %2851
      %2853 = vrot.lane.b32.xlu0 %v2474, 64
      %v2854 = vpop.permute.xlu0 %2853
      %2855 = vrot.lane.b32.xlu0 %v2475, 64
      %v2856 = vpop.permute.xlu0 %2855
      %2857 = vrot.lane.b32.xlu0 %v2476, 64
      %v2858 = vpop.permute.xlu0 %2857
      %2859 = vrot.lane.b32.xlu0 %v2477, 64
      %v2860 = vpop.permute.xlu0 %2859
      %2861 = vrot.lane.b32.xlu0 %v2478, 64
      %v2862 = vpop.permute.xlu0 %2861
      %2927 = vrot.lane.b32.xlu0 %v2511, 64
      %v2928 = vpop.permute.xlu0 %2927
      %2929 = vrot.lane.b32.xlu0 %v2512, 64
      %v2930 = vpop.permute.xlu0 %2929
      %2931 = vrot.lane.b32.xlu0 %v2513, 64
      %v2932 = vpop.permute.xlu0 %2931
      %2933 = vrot.lane.b32.xlu0 %v2514, 64
      %v2934 = vpop.permute.xlu0 %2933
      %2935 = vrot.lane.b32.xlu0 %v2515, 64
      %v2936 = vpop.permute.xlu0 %2935
      %2937 = vrot.lane.b32.xlu0 %v2516, 64
      %v2938 = vpop.permute.xlu0 %2937
      %2939 = vrot.lane.b32.xlu0 %v2517, 64
      %v2940 = vpop.permute.xlu0 %2939
      %2941 = vrot.lane.b32.xlu0 %v2518, 64
      %v2942 = vpop.permute.xlu0 %2941
      %2943 = vrot.lane.b32.xlu0 %v2519, 64
      %v2944 = vpop.permute.xlu0 %2943
      %2945 = vrot.lane.b32.xlu0 %v2520, 64
      %v2946 = vpop.permute.xlu0 %2945
      %2947 = vrot.lane.b32.xlu0 %v2521, 64
      %v2948 = vpop.permute.xlu0 %2947
      %2949 = vrot.lane.b32.xlu0 %v2522, 64
      %v2950 = vpop.permute.xlu0 %2949
      %2951 = vrot.lane.b32.xlu0 %v2523, 64
      %v2952 = vpop.permute.xlu0 %2951
      %2953 = vrot.lane.b32.xlu0 %v2524, 64
      %v2954 = vpop.permute.xlu0 %2953
      %2955 = vrot.lane.b32.xlu0 %v2525, 64
      %v2956 = vpop.permute.xlu0 %2955
      %2957 = vrot.lane.b32.xlu0 %v2526, 64
      %v2958 = vpop.permute.xlu0 %2957
      %2959 = vrot.lane.b32.xlu0 %v2527, 64
      %v2960 = vpop.permute.xlu0 %2959
      %2961 = vrot.lane.b32.xlu0 %v2528, 64
      %v2962 = vpop.permute.xlu0 %2961
      %2963 = vrot.lane.b32.xlu0 %v2529, 64
      %v2964 = vpop.permute.xlu0 %2963
      %2965 = vrot.lane.b32.xlu0 %v2530, 64
      %v2966 = vpop.permute.xlu0 %2965
      %2967 = vrot.lane.b32.xlu0 %v2531, 64
      %v2968 = vpop.permute.xlu0 %2967
      %2969 = vrot.lane.b32.xlu0 %v2532, 64
      %v2970 = vpop.permute.xlu0 %2969
      %2971 = vrot.lane.b32.xlu0 %v2533, 64
      %v2972 = vpop.permute.xlu0 %2971
      %2973 = vrot.lane.b32.xlu0 %v2534, 64
      %v2974 = vpop.permute.xlu0 %2973
      %2975 = vrot.lane.b32.xlu0 %v2535, 64
      %v2976 = vpop.permute.xlu0 %2975
      %2977 = vrot.lane.b32.xlu0 %v2536, 64
      %v2978 = vpop.permute.xlu0 %2977
      %2979 = vrot.lane.b32.xlu0 %v2537, 64
      %v2980 = vpop.permute.xlu0 %2979
      %2981 = vrot.lane.b32.xlu0 %v2538, 64
      %v2982 = vpop.permute.xlu0 %2981
      %2983 = vrot.lane.b32.xlu0 %v2539, 64
      %v2984 = vpop.permute.xlu0 %2983
      %2985 = vrot.lane.b32.xlu0 %v2540, 64
      %v2986 = vpop.permute.xlu0 %2985
      %2987 = vrot.lane.b32.xlu0 %v2541, 64
      %v2988 = vpop.permute.xlu0 %2987
      %2989 = vrot.lane.b32.xlu0 %v2542, 64
      %v2990 = vpop.permute.xlu0 %2989
      %3055 = vrot.lane.b32.xlu0 %v2575, 64
      %v3056 = vpop.permute.xlu0 %3055
      %3057 = vrot.lane.b32.xlu0 %v2576, 64
      %v3058 = vpop.permute.xlu0 %3057
      %3059 = vrot.lane.b32.xlu0 %v2577, 64
      %v3060 = vpop.permute.xlu0 %3059
      %3061 = vrot.lane.b32.xlu0 %v2578, 64
      %v3062 = vpop.permute.xlu0 %3061
      %3063 = vrot.lane.b32.xlu0 %v2579, 64
      %v3064 = vpop.permute.xlu0 %3063
      %3065 = vrot.lane.b32.xlu0 %v2580, 64
      %v3066 = vpop.permute.xlu0 %3065
      %3067 = vrot.lane.b32.xlu0 %v2581, 64
      %v3068 = vpop.permute.xlu0 %3067
      %3069 = vrot.lane.b32.xlu0 %v2582, 64
      %v3070 = vpop.permute.xlu0 %3069
      %3071 = vrot.lane.b32.xlu0 %v2583, 64
      %v3072 = vpop.permute.xlu0 %3071
      %3073 = vrot.lane.b32.xlu0 %v2584, 64
      %v3074 = vpop.permute.xlu0 %3073
      %3075 = vrot.lane.b32.xlu0 %v2585, 64
      %v3076 = vpop.permute.xlu0 %3075
      %3077 = vrot.lane.b32.xlu0 %v2586, 64
      %v3078 = vpop.permute.xlu0 %3077
      %3079 = vrot.lane.b32.xlu0 %v2587, 64
      %v3080 = vpop.permute.xlu0 %3079
      %3081 = vrot.lane.b32.xlu0 %v2588, 64
      %v3082 = vpop.permute.xlu0 %3081
      %3083 = vrot.lane.b32.xlu0 %v2589, 64
      %v3084 = vpop.permute.xlu0 %3083
      %3085 = vrot.lane.b32.xlu0 %v2590, 64
      %v3086 = vpop.permute.xlu0 %3085
      %3087 = vrot.lane.b32.xlu0 %v2591, 64
      %v3088 = vpop.permute.xlu0 %3087
      %3089 = vrot.lane.b32.xlu0 %v2592, 64
      %v3090 = vpop.permute.xlu0 %3089
      %3091 = vrot.lane.b32.xlu0 %v2593, 64
      %v3092 = vpop.permute.xlu0 %3091
      %3093 = vrot.lane.b32.xlu0 %v2594, 64
      %v3094 = vpop.permute.xlu0 %3093
      %3095 = vrot.lane.b32.xlu0 %v2595, 64
      %v3096 = vpop.permute.xlu0 %3095
      %3097 = vrot.lane.b32.xlu0 %v2596, 64
      %v3098 = vpop.permute.xlu0 %3097
      %3099 = vrot.lane.b32.xlu0 %v2597, 64
      %v3100 = vpop.permute.xlu0 %3099
      %3101 = vrot.lane.b32.xlu0 %v2598, 64
      %v3102 = vpop.permute.xlu0 %3101
      %3103 = vrot.lane.b32.xlu0 %v2599, 64
      %v3104 = vpop.permute.xlu0 %3103
      %3105 = vrot.lane.b32.xlu0 %v2600, 64
      %v3106 = vpop.permute.xlu0 %3105
      %3107 = vrot.lane.b32.xlu0 %v2601, 64
      %v3108 = vpop.permute.xlu0 %3107
      %3109 = vrot.lane.b32.xlu0 %v2602, 64
      %v3110 = vpop.permute.xlu0 %3109
      %3111 = vrot.lane.b32.xlu0 %v2603, 64
      %v3112 = vpop.permute.xlu0 %3111
      %3113 = vrot.lane.b32.xlu0 %v2604, 64
      %v3114 = vpop.permute.xlu0 %3113
      %3115 = vrot.lane.b32.xlu0 %v2605, 64
      %v3116 = vpop.permute.xlu0 %3115
      %3117 = vrot.lane.b32.xlu0 %v2606, 64
      %v3118 = vpop.permute.xlu0 %3117
      %v3151 = vsel %vm226, %v2351, %v2672
      %v3152 = vsel %vm226, %v2352, %v2674
      %v3153 = vsel %vm226, %v2353, %v2676
      %v3154 = vsel %vm226, %v2354, %v2678
      %v3155 = vsel %vm226, %v2355, %v2680
      %v3156 = vsel %vm226, %v2356, %v2682
      %v3157 = vsel %vm226, %v2357, %v2684
      %v3158 = vsel %vm226, %v2358, %v2686
      %v3159 = vsel %vm226, %v2359, %v2688
      %v3160 = vsel %vm226, %v2360, %v2690
      %v3161 = vsel %vm226, %v2361, %v2692
      %v3162 = vsel %vm226, %v2362, %v2694
      %v3163 = vsel %vm226, %v2363, %v2696
      %v3164 = vsel %vm226, %v2364, %v2698
      %v3165 = vsel %vm226, %v2365, %v2700
      %v3166 = vsel %vm226, %v2366, %v2702
      %v3167 = vsel %vm226, %v2367, %v2704
      %v3168 = vsel %vm226, %v2368, %v2706
      %v3169 = vsel %vm226, %v2369, %v2708
      %v3170 = vsel %vm226, %v2370, %v2710
      %v3171 = vsel %vm226, %v2371, %v2712
      %v3172 = vsel %vm226, %v2372, %v2714
      %v3173 = vsel %vm226, %v2373, %v2716
      %v3174 = vsel %vm226, %v2374, %v2718
      %v3175 = vsel %vm226, %v2375, %v2720
      %v3176 = vsel %vm226, %v2376, %v2722
      %v3177 = vsel %vm226, %v2377, %v2724
      %v3178 = vsel %vm226, %v2378, %v2726
      %v3179 = vsel %vm226, %v2379, %v2728
      %v3180 = vsel %vm226, %v2380, %v2730
      %v3181 = vsel %vm226, %v2381, %v2732
      %v3182 = vsel %vm226, %v2382, %v2734
      %v3183 = vsel %vm226, %v2415, %v2800
      %v3184 = vsel %vm226, %v2416, %v2802
      %v3185 = vsel %vm226, %v2417, %v2804
      %v3186 = vsel %vm226, %v2418, %v2806
      %v3187 = vsel %vm226, %v2419, %v2808
      %v3188 = vsel %vm226, %v2420, %v2810
      %v3189 = vsel %vm226, %v2421, %v2812
      %v3190 = vsel %vm226, %v2422, %v2814
      %v3191 = vsel %vm226, %v2423, %v2816
      %v3192 = vsel %vm226, %v2424, %v2818
      %v3193 = vsel %vm226, %v2425, %v2820
      %v3194 = vsel %vm226, %v2426, %v2822
      %v3195 = vsel %vm226, %v2427, %v2824
      %v3196 = vsel %vm226, %v2428, %v2826
      %v3197 = vsel %vm226, %v2429, %v2828
      %v3198 = vsel %vm226, %v2430, %v2830
      %v3199 = vsel %vm226, %v2431, %v2832
      %v3200 = vsel %vm226, %v2432, %v2834
      %v3201 = vsel %vm226, %v2433, %v2836
      %v3202 = vsel %vm226, %v2434, %v2838
      %v3203 = vsel %vm226, %v2435, %v2840
      %v3204 = vsel %vm226, %v2436, %v2842
      %v3205 = vsel %vm226, %v2437, %v2844
      %v3206 = vsel %vm226, %v2438, %v2846
      %v3207 = vsel %vm226, %v2439, %v2848
      %v3208 = vsel %vm226, %v2440, %v2850
      %v3209 = vsel %vm226, %v2441, %v2852
      %v3210 = vsel %vm226, %v2442, %v2854
      %v3211 = vsel %vm226, %v2443, %v2856
      %v3212 = vsel %vm226, %v2444, %v2858
      %v3213 = vsel %vm226, %v2445, %v2860
      %v3214 = vsel %vm226, %v2446, %v2862
      %v3215 = vsel %vm226, %v2479, %v2928
      %v3216 = vsel %vm226, %v2480, %v2930
      %v3217 = vsel %vm226, %v2481, %v2932
      %v3218 = vsel %vm226, %v2482, %v2934
      %v3219 = vsel %vm226, %v2483, %v2936
      %v3220 = vsel %vm226, %v2484, %v2938
      %v3221 = vsel %vm226, %v2485, %v2940
      %v3222 = vsel %vm226, %v2486, %v2942
      %v3223 = vsel %vm226, %v2487, %v2944
      %v3224 = vsel %vm226, %v2488, %v2946
      %v3225 = vsel %vm226, %v2489, %v2948
      %v3226 = vsel %vm226, %v2490, %v2950
      %v3227 = vsel %vm226, %v2491, %v2952
      %v3228 = vsel %vm226, %v2492, %v2954
      %v3229 = vsel %vm226, %v2493, %v2956
      %v3230 = vsel %vm226, %v2494, %v2958
      %v3231 = vsel %vm226, %v2495, %v2960
      %v3232 = vsel %vm226, %v2496, %v2962
      %v3233 = vsel %vm226, %v2497, %v2964
      %v3234 = vsel %vm226, %v2498, %v2966
      %v3235 = vsel %vm226, %v2499, %v2968
      %v3236 = vsel %vm226, %v2500, %v2970
      %v3237 = vsel %vm226, %v2501, %v2972
      %v3238 = vsel %vm226, %v2502, %v2974
      %v3239 = vsel %vm226, %v2503, %v2976
      %v3240 = vsel %vm226, %v2504, %v2978
      %v3241 = vsel %vm226, %v2505, %v2980
      %v3242 = vsel %vm226, %v2506, %v2982
      %v3243 = vsel %vm226, %v2507, %v2984
      %v3244 = vsel %vm226, %v2508, %v2986
      %v3245 = vsel %vm226, %v2509, %v2988
      %v3246 = vsel %vm226, %v2510, %v2990
      %v3247 = vsel %vm226, %v2543, %v3056
      %v3248 = vsel %vm226, %v2544, %v3058
      %v3249 = vsel %vm226, %v2545, %v3060
      %v3250 = vsel %vm226, %v2546, %v3062
      %v3251 = vsel %vm226, %v2547, %v3064
      %v3252 = vsel %vm226, %v2548, %v3066
      %v3253 = vsel %vm226, %v2549, %v3068
      %v3254 = vsel %vm226, %v2550, %v3070
      %v3255 = vsel %vm226, %v2551, %v3072
      %v3256 = vsel %vm226, %v2552, %v3074
      %v3257 = vsel %vm226, %v2553, %v3076
      %v3258 = vsel %vm226, %v2554, %v3078
      %v3259 = vsel %vm226, %v2555, %v3080
      %v3260 = vsel %vm226, %v2556, %v3082
      %v3261 = vsel %vm226, %v2557, %v3084
      %v3262 = vsel %vm226, %v2558, %v3086
      %v3263 = vsel %vm226, %v2559, %v3088
      %v3264 = vsel %vm226, %v2560, %v3090
      %v3265 = vsel %vm226, %v2561, %v3092
      %v3266 = vsel %vm226, %v2562, %v3094
      %v3267 = vsel %vm226, %v2563, %v3096
      %v3268 = vsel %vm226, %v2564, %v3098
      %v3269 = vsel %vm226, %v2565, %v3100
      %v3270 = vsel %vm226, %v2566, %v3102
      %v3271 = vsel %vm226, %v2567, %v3104
      %v3272 = vsel %vm226, %v2568, %v3106
      %v3273 = vsel %vm226, %v2569, %v3108
      %v3274 = vsel %vm226, %v2570, %v3110
      %v3275 = vsel %vm226, %v2571, %v3112
      %v3276 = vsel %vm226, %v2572, %v3114
      %v3277 = vsel %vm226, %v2573, %v3116
      %v3278 = vsel %vm226, %v2574, %v3118
      %v3279 = vpack.c.bf16 %v3152, %v3151
      %v3280 = vpack.c.bf16 %v3184, %v3183
      %v3281 = vpack.c.bf16 %v3216, %v3215
      %v3282 = vpack.c.bf16 %v3248, %v3247
      %v3283 = vpack.c.bf16 %v2608, %v2607
      %v3284 = vpack.c.bf16 %v3154, %v3153
      %v3285 = vpack.c.bf16 %v3186, %v3185
      %v3286 = vpack.c.bf16 %v3218, %v3217
      %v3287 = vpack.c.bf16 %v3250, %v3249
      %v3288 = vpack.c.bf16 %v2610, %v2609
      %v3289 = vpack.c.bf16 %v3156, %v3155
      %v3290 = vpack.c.bf16 %v3188, %v3187
      %v3291 = vpack.c.bf16 %v3220, %v3219
      %v3292 = vpack.c.bf16 %v3252, %v3251
      %v3293 = vpack.c.bf16 %v2612, %v2611
      %v3294 = vpack.c.bf16 %v3158, %v3157
      %v3295 = vpack.c.bf16 %v3190, %v3189
      %v3296 = vpack.c.bf16 %v3222, %v3221
      %v3297 = vpack.c.bf16 %v3254, %v3253
      %v3298 = vpack.c.bf16 %v2614, %v2613
      %v3299 = vpack.c.bf16 %v3160, %v3159
      %v3300 = vpack.c.bf16 %v3192, %v3191
      %v3301 = vpack.c.bf16 %v3224, %v3223
      %v3302 = vpack.c.bf16 %v3256, %v3255
      %v3303 = vpack.c.bf16 %v2616, %v2615
      %v3304 = vpack.c.bf16 %v3162, %v3161
      %v3305 = vpack.c.bf16 %v3194, %v3193
      %v3306 = vpack.c.bf16 %v3226, %v3225
      %v3307 = vpack.c.bf16 %v3258, %v3257
      %v3308 = vpack.c.bf16 %v2618, %v2617
      %v3309 = vpack.c.bf16 %v3164, %v3163
      %v3310 = vpack.c.bf16 %v3196, %v3195
      %v3311 = vpack.c.bf16 %v3228, %v3227
      %v3312 = vpack.c.bf16 %v3260, %v3259
      %v3313 = vpack.c.bf16 %v2620, %v2619
      %v3314 = vpack.c.bf16 %v3166, %v3165
      %v3315 = vpack.c.bf16 %v3198, %v3197
      %v3316 = vpack.c.bf16 %v3230, %v3229
      %v3317 = vpack.c.bf16 %v3262, %v3261
      %v3318 = vpack.c.bf16 %v2622, %v2621
      %v3319 = vpack.c.bf16 %v3168, %v3167
      %v3320 = vpack.c.bf16 %v3200, %v3199
      %v3321 = vpack.c.bf16 %v3232, %v3231
      %v3322 = vpack.c.bf16 %v3264, %v3263
      %v3323 = vpack.c.bf16 %v2624, %v2623
      %v3324 = vpack.c.bf16 %v3170, %v3169
      %v3325 = vpack.c.bf16 %v3202, %v3201
      %v3326 = vpack.c.bf16 %v3234, %v3233
      %v3327 = vpack.c.bf16 %v3266, %v3265
      %v3328 = vpack.c.bf16 %v2626, %v2625
      %v3329 = vpack.c.bf16 %v3172, %v3171
      %v3330 = vpack.c.bf16 %v3204, %v3203
      %v3331 = vpack.c.bf16 %v3236, %v3235
      %v3332 = vpack.c.bf16 %v3268, %v3267
      %v3333 = vpack.c.bf16 %v2628, %v2627
      %v3334 = vpack.c.bf16 %v3174, %v3173
      %v3335 = vpack.c.bf16 %v3206, %v3205
      %v3336 = vpack.c.bf16 %v3238, %v3237
      %v3337 = vpack.c.bf16 %v3270, %v3269
      %v3338 = vpack.c.bf16 %v2630, %v2629
      %v3339 = vpack.c.bf16 %v3176, %v3175
      %v3340 = vpack.c.bf16 %v3208, %v3207
      %v3341 = vpack.c.bf16 %v3240, %v3239
      %v3342 = vpack.c.bf16 %v3272, %v3271
      %v3343 = vpack.c.bf16 %v2632, %v2631
      %v3344 = vpack.c.bf16 %v3178, %v3177
      %v3345 = vpack.c.bf16 %v3210, %v3209
      %v3346 = vpack.c.bf16 %v3242, %v3241
      %v3347 = vpack.c.bf16 %v3274, %v3273
      %v3348 = vpack.c.bf16 %v2634, %v2633
      %v3349 = vpack.c.bf16 %v3180, %v3179
      %v3350 = vpack.c.bf16 %v3212, %v3211
      %v3351 = vpack.c.bf16 %v3244, %v3243
      %v3352 = vpack.c.bf16 %v3276, %v3275
      %v3353 = vpack.c.bf16 %v2636, %v2635
      %v3354 = vpack.c.bf16 %v3182, %v3181
      %v3355 = vpack.c.bf16 %v3214, %v3213
      %v3356 = vpack.c.bf16 %v3246, %v3245
      %v3357 = vpack.c.bf16 %v3278, %v3277
      %v3358 = vpack.c.bf16 %v2638, %v2637
      %v3360 = vlaneseq
      %v3361 = vshrl.u32 %v3360, 7
      %v3362 = vsub.s32 0, %v3361
      %v3363 = vrot.slane %v2286, %v3362
      %v3437 = vunpack.c.l.b16 %v2214
      %v3438 = vunpack.c.l.b16 %v2215
      %v3439 = vunpack.c.l.b16 %v2216
      %v3440 = vunpack.c.l.b16 %v2217
      %v3441 = vunpack.c.l.b16 %v2218
      %v3442 = vunpack.c.l.b16 %v2219
      %v3443 = vunpack.c.l.b16 %v2220
      %v3444 = vunpack.c.l.b16 %v2221
      %v3445 = vunpack.c.l.b16 %v2222
      %v3446 = vunpack.c.l.b16 %v2223
      %v3447 = vunpack.c.l.b16 %v2224
      %v3448 = vunpack.c.l.b16 %v2225
      %v3449 = vunpack.c.l.b16 %v2226
      %v3450 = vunpack.c.l.b16 %v2227
      %v3451 = vunpack.c.l.b16 %v2228
      %v3452 = vunpack.c.l.b16 %v2229
      %v3453 = vunpack.c.l.b16 %v2230
      %v3454 = vunpack.c.l.b16 %v2231
      %v3455 = vunpack.c.l.b16 %v2232
      %v3456 = vunpack.c.l.b16 %v2233
      %v3457 = vunpack.c.l.b16 %v2234
      %v3458 = vunpack.c.l.b16 %v2235
      %v3459 = vunpack.c.l.b16 %v2236
      %v3460 = vunpack.c.l.b16 %v2237
      %v3461 = vunpack.c.l.b16 %v2238
      %v3462 = vunpack.c.l.b16 %v2239
      %v3463 = vunpack.c.l.b16 %v2240
      %v3464 = vunpack.c.l.b16 %v2241
      %v3465 = vunpack.c.l.b16 %v2242
      %v3466 = vunpack.c.l.b16 %v2243
      %v3467 = vunpack.c.l.b16 %v2244
      %v3468 = vunpack.c.l.b16 %v2245
      %v3469 = vunpack.c.l.b16 %v2246
      %v3470 = vunpack.c.l.b16 %v2247
      %v3471 = vunpack.c.l.b16 %v2248
      %v3472 = vunpack.c.l.b16 %v2249
      %v3473 = vunpack.c.l.b16 %v2250
      %v3474 = vunpack.c.l.b16 %v2251
      %v3475 = vunpack.c.l.b16 %v2252
      %v3476 = vunpack.c.l.b16 %v2253
      %v3477 = vunpack.c.l.b16 %v2254
      %v3478 = vunpack.c.l.b16 %v2255
      %v3479 = vunpack.c.l.b16 %v2256
      %v3480 = vunpack.c.l.b16 %v2257
      %v3481 = vunpack.c.l.b16 %v2258
      %v3482 = vunpack.c.l.b16 %v2259
      %v3483 = vunpack.c.l.b16 %v2260
      %v3484 = vunpack.c.l.b16 %v2261
      %v3485 = vunpack.c.l.b16 %v2262
      %v3486 = vunpack.c.l.b16 %v2263
      %v3487 = vunpack.c.l.b16 %v2264
      %v3488 = vunpack.c.l.b16 %v2265
      %v3489 = vunpack.c.l.b16 %v2266
      %v3490 = vunpack.c.l.b16 %v2267
      %v3491 = vunpack.c.l.b16 %v2268
      %v3492 = vunpack.c.l.b16 %v2269
      %v3493 = vunpack.c.l.b16 %v2270
      %v3494 = vunpack.c.l.b16 %v2271
      %v3495 = vunpack.c.l.b16 %v2272
      %v3496 = vunpack.c.l.b16 %v2273
      %v3497 = vunpack.c.l.b16 %v2274
      %v3498 = vunpack.c.l.b16 %v2275
      %v3499 = vunpack.c.l.b16 %v2276
      %v3500 = vunpack.c.l.b16 %v2277
      %v3501 = vunpack.c.l.b16 %v2278
      %v3502 = vunpack.c.l.b16 %v2279
      %v3503 = vunpack.c.l.b16 %v2280
      %v3504 = vunpack.c.l.b16 %v2281
      %v3505 = vunpack.c.l.b16 %v2282
      %v3506 = vunpack.c.l.b16 %v2283
      %v3507 = vunpack.c.l.b16 %v2284
      %v3508 = vunpack.c.l.b16 %v2285
      %v3509 = vpack.c.b16 %v3438, %v3437
      %v3510 = vpack.c.b16 %v3440, %v3439
      %v3511 = vpack.c.b16 %v3442, %v3441
      %v3512 = vpack.c.b16 %v3444, %v3443
      %v3513 = vpack.c.b16 %v3446, %v3445
      %v3514 = vpack.c.b16 %v3448, %v3447
      %v3515 = vpack.c.b16 %v3450, %v3449
      %v3516 = vpack.c.b16 %v3452, %v3451
      %v3517 = vpack.c.b16 %v3454, %v3453
      %v3518 = vpack.c.b16 %v3456, %v3455
      %v3519 = vpack.c.b16 %v3458, %v3457
      %v3520 = vpack.c.b16 %v3460, %v3459
      %v3521 = vpack.c.b16 %v3462, %v3461
      %v3522 = vpack.c.b16 %v3464, %v3463
      %v3523 = vpack.c.b16 %v3466, %v3465
      %v3524 = vpack.c.b16 %v3468, %v3467
      %v3525 = vpack.c.b16 %v3470, %v3469
      %v3526 = vpack.c.b16 %v3472, %v3471
      %v3527 = vpack.c.b16 %v3474, %v3473
      %v3528 = vpack.c.b16 %v3476, %v3475
      %v3529 = vpack.c.b16 %v3478, %v3477
      %v3530 = vpack.c.b16 %v3480, %v3479
      %v3531 = vpack.c.b16 %v3482, %v3481
      %v3532 = vpack.c.b16 %v3484, %v3483
      %v3533 = vpack.c.b16 %v3486, %v3485
      %v3534 = vpack.c.b16 %v3488, %v3487
      %v3535 = vpack.c.b16 %v3490, %v3489
      %v3536 = vpack.c.b16 %v3492, %v3491
      %v3537 = vpack.c.b16 %v3494, %v3493
      %v3538 = vpack.c.b16 %v3496, %v3495
      %v3539 = vpack.c.b16 %v3498, %v3497
      %v3540 = vpack.c.b16 %v3500, %v3499
      %v3541 = vpack.c.b16 %v3502, %v3501
      %v3542 = vpack.c.b16 %v3504, %v3503
      %v3543 = vpack.c.b16 %v3506, %v3505
      %v3544 = vpack.c.b16 %v3508, %v3507
      %v3582 = vsel %vm226, %v3283, 0
      %v3585 = vsel %vm226, %v3288, 0
      %v3588 = vsel %vm226, %v3293, 0
      %v3591 = vsel %vm226, %v3298, 0
      %v3594 = vsel %vm226, %v3303, 0
      %v3597 = vsel %vm226, %v3308, 0
      %v3600 = vsel %vm226, %v3313, 0
      %v3603 = vsel %vm226, %v3318, 0
      %v3606 = vsel %vm226, %v3323, 0
      %v3609 = vsel %vm226, %v3328, 0
      %v3612 = vsel %vm226, %v3333, 0
      %v3615 = vsel %vm226, %v3338, 0
      %v3618 = vsel %vm226, %v3343, 0
      %v3621 = vsel %vm226, %v3348, 0
      %v3624 = vsel %vm226, %v3353, 0
      %v3627 = vsel %vm226, %v3358, 0
      %3629 = vmatprep.subr.bf16.mxu0 0
      %3630 = vmatpush1.bf16.msra.mxu0 %v3509
      %3631 = vmatprep.subr.bf16.mxu0 0
      %3632 = vmatpush1.bf16.msra.mxu0 %v3510
      %3633 = vmatprep.subr.bf16.mxu0 0
      %3634 = vmatpush1.bf16.msra.mxu0 %v3511
      %3635 = vmatprep.subr.bf16.mxu0 0
      %3636 = vmatpush1.bf16.msra.mxu0 %v3512
      %3637 = vmatprep.subr.bf16.mxu0 0
      %3638 = vmatpush1.bf16.msra.mxu0 %v3513
      %3639 = vmatprep.subr.bf16.mxu0 0
      %3640 = vmatpush1.bf16.msra.mxu0 %v3514
      %3641 = vmatprep.subr.bf16.mxu0 0
      %3642 = vmatpush1.bf16.msra.mxu0 %v3515
      %3643 = vmatprep.subr.bf16.mxu0 0
      %3644 = vmatpush1.bf16.msra.mxu0 %v3516
      %3645 = vmatprep.subr.bf16.mxu0 0
      %3646 = vmatpush1.bf16.msra.mxu0 %v3517
      %3647 = vmatprep.subr.bf16.mxu0 0
      %3648 = vmatpush1.bf16.msra.mxu0 %v3518
      %3649 = vmatprep.subr.bf16.mxu0 0
      %3650 = vmatpush1.bf16.msra.mxu0 %v3519
      %3651 = vmatprep.subr.bf16.mxu0 0
      %3652 = vmatpush1.bf16.msra.mxu0 %v3520
      %3653 = vmatprep.subr.bf16.mxu0 0
      %3654 = vmatpush1.bf16.msra.mxu0 %v3521
      %3655 = vmatprep.subr.bf16.mxu0 0
      %3656 = vmatpush1.bf16.msra.mxu0 %v3522
      %3657 = vmatprep.subr.bf16.mxu0 0
      %3658 = vmatpush1.bf16.msra.mxu0 %v3523
      %3659 = vmatprep.subr.bf16.mxu0 0
      %3660 = vmatpush1.bf16.msra.mxu0 %v3524
      %3661 = vmatprep.mubr.bf16.mxu0 %v3280
      %3662 = vmatmul.mubr.bf16.gmra.mrb[0].mxu0 %v3279
      %v3663 = vpop.f32.mrb[0].mxu0
      %v3664 = vadd.f32 %v3363, %v3663
      %v3665 = vpop.f32.mrb[0].mxu0
      %v3666 = vpop.f32.mrb[0].mxu0
      %v3667 = vadd.f32 %v3363, %v3666
      %v3668 = vpop.f32.mrb[0].mxu0
      %3669 = vmatprep.mubr.bf16.mxu0 %v3285
      %3670 = vmatmul.mubr.bf16.gmra.mrb[0].mxu0 %v3284
      %v3671 = vpop.f32.mrb[0].mxu0
      %v3672 = vadd.f32 %v3363, %v3671
      %v3673 = vpop.f32.mrb[0].mxu0
      %v3674 = vpop.f32.mrb[0].mxu0
      %v3675 = vadd.f32 %v3363, %v3674
      %v3676 = vpop.f32.mrb[0].mxu0
      %3677 = vmatprep.mubr.bf16.mxu0 %v3290
      %3678 = vmatmul.mubr.bf16.gmra.mrb[0].mxu0 %v3289
      %v3679 = vpop.f32.mrb[0].mxu0
      %v3680 = vadd.f32 %v3363, %v3679
      %v3681 = vpop.f32.mrb[0].mxu0
      %v3682 = vpop.f32.mrb[0].mxu0
      %v3683 = vadd.f32 %v3363, %v3682
      %v3684 = vpop.f32.mrb[0].mxu0
      %3685 = vmatprep.mubr.bf16.mxu0 %v3295
      %3686 = vmatmul.mubr.bf16.gmra.mrb[0].mxu0 %v3294
      %v3687 = vpop.f32.mrb[0].mxu0
      %v3688 = vadd.f32 %v3363, %v3687
      %v3689 = vpop.f32.mrb[0].mxu0
      %v3690 = vpop.f32.mrb[0].mxu0
      %v3691 = vadd.f32 %v3363, %v3690
      %v3692 = vpop.f32.mrb[0].mxu0
      %3693 = vmatprep.mubr.bf16.mxu0 %v3300
      %3694 = vmatmul.mubr.bf16.gmra.mrb[0].mxu0 %v3299
      %v3695 = vpop.f32.mrb[0].mxu0
      %v3696 = vadd.f32 %v3363, %v3695
      %v3697 = vpop.f32.mrb[0].mxu0
      %v3698 = vpop.f32.mrb[0].mxu0
      %v3699 = vadd.f32 %v3363, %v3698
      %v3700 = vpop.f32.mrb[0].mxu0
      %3701 = vmatprep.mubr.bf16.mxu0 %v3305
      %3702 = vmatmul.mubr.bf16.gmra.mrb[0].mxu0 %v3304
      %v3703 = vpop.f32.mrb[0].mxu0
      %v3704 = vadd.f32 %v3363, %v3703
      %v3705 = vpop.f32.mrb[0].mxu0
      %v3706 = vpop.f32.mrb[0].mxu0
      %v3707 = vadd.f32 %v3363, %v3706
      %v3708 = vpop.f32.mrb[0].mxu0
      %3709 = vmatprep.mubr.bf16.mxu0 %v3310
      %3710 = vmatmul.mubr.bf16.gmra.mrb[0].mxu0 %v3309
      %v3711 = vpop.f32.mrb[0].mxu0
      %v3712 = vadd.f32 %v3363, %v3711
      %v3713 = vpop.f32.mrb[0].mxu0
      %v3714 = vpop.f32.mrb[0].mxu0
      %v3715 = vadd.f32 %v3363, %v3714
      %v3716 = vpop.f32.mrb[0].mxu0
      %3717 = vmatprep.mubr.bf16.mxu0 %v3315
      %3718 = vmatmul.mubr.bf16.gmra.mrb[0].mxu0 %v3314
      %v3719 = vpop.f32.mrb[0].mxu0
      %v3720 = vadd.f32 %v3363, %v3719
      %v3721 = vpop.f32.mrb[0].mxu0
      %v3722 = vpop.f32.mrb[0].mxu0
      %v3723 = vadd.f32 %v3363, %v3722
      %v3724 = vpop.f32.mrb[0].mxu0
      %3725 = vmatprep.mubr.bf16.mxu0 %v3320
      %3726 = vmatmul.mubr.bf16.gmra.mrb[0].mxu0 %v3319
      %v3727 = vpop.f32.mrb[0].mxu0
      %v3728 = vadd.f32 %v3363, %v3727
      %v3729 = vpop.f32.mrb[0].mxu0
      %v3730 = vpop.f32.mrb[0].mxu0
      %v3731 = vadd.f32 %v3363, %v3730
      %v3732 = vpop.f32.mrb[0].mxu0
      %3733 = vmatprep.mubr.bf16.mxu0 %v3325
      %3734 = vmatmul.mubr.bf16.gmra.mrb[0].mxu0 %v3324
      %v3735 = vpop.f32.mrb[0].mxu0
      %v3736 = vadd.f32 %v3363, %v3735
      %v3737 = vpop.f32.mrb[0].mxu0
      %v3738 = vpop.f32.mrb[0].mxu0
      %v3739 = vadd.f32 %v3363, %v3738
      %v3740 = vpop.f32.mrb[0].mxu0
      %3741 = vmatprep.mubr.bf16.mxu0 %v3330
      %3742 = vmatmul.mubr.bf16.gmra.mrb[0].mxu0 %v3329
      %v3743 = vpop.f32.mrb[0].mxu0
      %v3744 = vadd.f32 %v3363, %v3743
      %v3745 = vpop.f32.mrb[0].mxu0
      %v3746 = vpop.f32.mrb[0].mxu0
      %v3747 = vadd.f32 %v3363, %v3746
      %v3748 = vpop.f32.mrb[0].mxu0
      %3749 = vmatprep.mubr.bf16.mxu0 %v3335
      %3750 = vmatmul.mubr.bf16.gmra.mrb[0].mxu0 %v3334
      %v3751 = vpop.f32.mrb[0].mxu0
      %v3752 = vadd.f32 %v3363, %v3751
      %v3753 = vpop.f32.mrb[0].mxu0
      %v3754 = vpop.f32.mrb[0].mxu0
      %v3755 = vadd.f32 %v3363, %v3754
      %v3756 = vpop.f32.mrb[0].mxu0
      %3757 = vmatprep.mubr.bf16.mxu0 %v3340
      %3758 = vmatmul.mubr.bf16.gmra.mrb[0].mxu0 %v3339
      %v3759 = vpop.f32.mrb[0].mxu0
      %v3760 = vadd.f32 %v3363, %v3759
      %v3761 = vpop.f32.mrb[0].mxu0
      %v3762 = vpop.f32.mrb[0].mxu0
      %v3763 = vadd.f32 %v3363, %v3762
      %v3764 = vpop.f32.mrb[0].mxu0
      %3765 = vmatprep.mubr.bf16.mxu0 %v3345
      %3766 = vmatmul.mubr.bf16.gmra.mrb[0].mxu0 %v3344
      %v3767 = vpop.f32.mrb[0].mxu0
      %v3768 = vadd.f32 %v3363, %v3767
      %v3769 = vpop.f32.mrb[0].mxu0
      %v3770 = vpop.f32.mrb[0].mxu0
      %v3771 = vadd.f32 %v3363, %v3770
      %v3772 = vpop.f32.mrb[0].mxu0
      %3773 = vmatprep.mubr.bf16.mxu0 %v3350
      %3774 = vmatmul.mubr.bf16.gmra.mrb[0].mxu0 %v3349
      %v3775 = vpop.f32.mrb[0].mxu0
      %v3776 = vadd.f32 %v3363, %v3775
      %v3777 = vpop.f32.mrb[0].mxu0
      %v3778 = vpop.f32.mrb[0].mxu0
      %v3779 = vadd.f32 %v3363, %v3778
      %v3780 = vpop.f32.mrb[0].mxu0
      %3781 = vmatprep.mubr.bf16.mxu0 %v3355
      %3782 = vmatmul.mubr.bf16.gmra.mrb[0].mxu0 %v3354
      %v3783 = vpop.f32.mrb[0].mxu0
      %v3784 = vadd.f32 %v3363, %v3783
      %v3785 = vpop.f32.mrb[0].mxu0
      %v3786 = vpop.f32.mrb[0].mxu0
      %v3787 = vadd.f32 %v3363, %v3786
      %v3788 = vpop.f32.mrb[0].mxu0
      %3789 = vdwg.mxu0
      %3790 = vmatprep.subr.bf16.mxu0 0
      %3791 = vmatpush1.bf16.msra.mxu0 %v3525
      %3792 = vmatprep.subr.bf16.mxu0 0
      %3793 = vmatpush1.bf16.msra.mxu0 %v3526
      %3794 = vmatprep.subr.bf16.mxu0 0
      %3795 = vmatpush1.bf16.msra.mxu0 %v3527
      %3796 = vmatprep.subr.bf16.mxu0 0
      %3797 = vmatpush1.bf16.msra.mxu0 %v3528
      %3798 = vmatprep.subr.bf16.mxu0 0
      %3799 = vmatpush1.bf16.msra.mxu0 %v3529
      %3800 = vmatprep.subr.bf16.mxu0 0
      %3801 = vmatpush1.bf16.msra.mxu0 %v3530
      %3802 = vmatprep.subr.bf16.mxu0 0
      %3803 = vmatpush1.bf16.msra.mxu0 %v3531
      %3804 = vmatprep.subr.bf16.mxu0 0
      %3805 = vmatpush1.bf16.msra.mxu0 %v3532
      %3806 = vmatprep.subr.bf16.mxu0 0
      %3807 = vmatpush1.bf16.msra.mxu0 %v3533
      %3808 = vmatprep.subr.bf16.mxu0 0
      %3809 = vmatpush1.bf16.msra.mxu0 %v3534
      %3810 = vmatprep.subr.bf16.mxu0 0
      %3811 = vmatpush1.bf16.msra.mxu0 %v3535
      %3812 = vmatprep.subr.bf16.mxu0 0
      %3813 = vmatpush1.bf16.msra.mxu0 %v3536
      %3814 = vmatprep.subr.bf16.mxu0 0
      %3815 = vmatpush1.bf16.msra.mxu0 %v3537
      %3816 = vmatprep.subr.bf16.mxu0 0
      %3817 = vmatpush1.bf16.msra.mxu0 %v3538
      %3818 = vmatprep.subr.bf16.mxu0 0
      %3819 = vmatpush1.bf16.msra.mxu0 %v3539
      %3820 = vmatprep.subr.bf16.mxu0 0
      %3821 = vmatpush1.bf16.msra.mxu0 %v3540
      %3822 = vmatprep.mubr.bf16.mxu0 %v3282
      %3823 = vmatmul.mubr.bf16.gmra.mrb[0].mxu0 %v3281
      %v3824 = vpop.f32.mrb[0].mxu0
      %v3825 = vadd.f32 %v3664, %v3824
      %v3826 = vpop.f32.mrb[0].mxu0
      %v3827 = vpop.f32.mrb[0].mxu0
      %v3828 = vadd.f32 %v3667, %v3827
      %v3829 = vpop.f32.mrb[0].mxu0
      %3830 = vmatprep.mubr.bf16.mxu0 %v3287
      %3831 = vmatmul.mubr.bf16.gmra.mrb[0].mxu0 %v3286
      %v3832 = vpop.f32.mrb[0].mxu0
      %v3833 = vadd.f32 %v3672, %v3832
      %v3834 = vpop.f32.mrb[0].mxu0
      %v3835 = vpop.f32.mrb[0].mxu0
      %v3836 = vadd.f32 %v3675, %v3835
      %v3837 = vpop.f32.mrb[0].mxu0
      %3838 = vmatprep.mubr.bf16.mxu0 %v3292
      %3839 = vmatmul.mubr.bf16.gmra.mrb[0].mxu0 %v3291
      %v3840 = vpop.f32.mrb[0].mxu0
      %v3841 = vadd.f32 %v3680, %v3840
      %v3842 = vpop.f32.mrb[0].mxu0
      %v3843 = vpop.f32.mrb[0].mxu0
      %v3844 = vadd.f32 %v3683, %v3843
      %v3845 = vpop.f32.mrb[0].mxu0
      %3846 = vmatprep.mubr.bf16.mxu0 %v3297
      %3847 = vmatmul.mubr.bf16.gmra.mrb[0].mxu0 %v3296
      %v3848 = vpop.f32.mrb[0].mxu0
      %v3849 = vadd.f32 %v3688, %v3848
      %v3850 = vpop.f32.mrb[0].mxu0
      %v3851 = vpop.f32.mrb[0].mxu0
      %v3852 = vadd.f32 %v3691, %v3851
      %v3853 = vpop.f32.mrb[0].mxu0
      %3854 = vmatprep.mubr.bf16.mxu0 %v3302
      %3855 = vmatmul.mubr.bf16.gmra.mrb[0].mxu0 %v3301
      %v3856 = vpop.f32.mrb[0].mxu0
      %v3857 = vadd.f32 %v3696, %v3856
      %v3858 = vpop.f32.mrb[0].mxu0
      %v3859 = vpop.f32.mrb[0].mxu0
      %v3860 = vadd.f32 %v3699, %v3859
      %v3861 = vpop.f32.mrb[0].mxu0
      %3862 = vmatprep.mubr.bf16.mxu0 %v3307
      %3863 = vmatmul.mubr.bf16.gmra.mrb[0].mxu0 %v3306
      %v3864 = vpop.f32.mrb[0].mxu0
      %v3865 = vadd.f32 %v3704, %v3864
      %v3866 = vpop.f32.mrb[0].mxu0
      %v3867 = vpop.f32.mrb[0].mxu0
      %v3868 = vadd.f32 %v3707, %v3867
      %v3869 = vpop.f32.mrb[0].mxu0
      %3870 = vmatprep.mubr.bf16.mxu0 %v3312
      %3871 = vmatmul.mubr.bf16.gmra.mrb[0].mxu0 %v3311
      %v3872 = vpop.f32.mrb[0].mxu0
      %v3873 = vadd.f32 %v3712, %v3872
      %v3874 = vpop.f32.mrb[0].mxu0
      %v3875 = vpop.f32.mrb[0].mxu0
      %v3876 = vadd.f32 %v3715, %v3875
      %v3877 = vpop.f32.mrb[0].mxu0
      %3878 = vmatprep.mubr.bf16.mxu0 %v3317
      %3879 = vmatmul.mubr.bf16.gmra.mrb[0].mxu0 %v3316
      %v3880 = vpop.f32.mrb[0].mxu0
      %v3881 = vadd.f32 %v3720, %v3880
      %v3882 = vpop.f32.mrb[0].mxu0
      %v3883 = vpop.f32.mrb[0].mxu0
      %v3884 = vadd.f32 %v3723, %v3883
      %v3885 = vpop.f32.mrb[0].mxu0
      %3886 = vmatprep.mubr.bf16.mxu0 %v3322
      %3887 = vmatmul.mubr.bf16.gmra.mrb[0].mxu0 %v3321
      %v3888 = vpop.f32.mrb[0].mxu0
      %v3889 = vadd.f32 %v3728, %v3888
      %v3890 = vpop.f32.mrb[0].mxu0
      %v3891 = vpop.f32.mrb[0].mxu0
      %v3892 = vadd.f32 %v3731, %v3891
      %v3893 = vpop.f32.mrb[0].mxu0
      %3894 = vmatprep.mubr.bf16.mxu0 %v3327
      %3895 = vmatmul.mubr.bf16.gmra.mrb[0].mxu0 %v3326
      %v3896 = vpop.f32.mrb[0].mxu0
      %v3897 = vadd.f32 %v3736, %v3896
      %v3898 = vpop.f32.mrb[0].mxu0
      %v3899 = vpop.f32.mrb[0].mxu0
      %v3900 = vadd.f32 %v3739, %v3899
      %v3901 = vpop.f32.mrb[0].mxu0
      %3902 = vmatprep.mubr.bf16.mxu0 %v3332
      %3903 = vmatmul.mubr.bf16.gmra.mrb[0].mxu0 %v3331
      %v3904 = vpop.f32.mrb[0].mxu0
      %v3905 = vadd.f32 %v3744, %v3904
      %v3906 = vpop.f32.mrb[0].mxu0
      %v3907 = vpop.f32.mrb[0].mxu0
      %v3908 = vadd.f32 %v3747, %v3907
      %v3909 = vpop.f32.mrb[0].mxu0
      %3910 = vmatprep.mubr.bf16.mxu0 %v3337
      %3911 = vmatmul.mubr.bf16.gmra.mrb[0].mxu0 %v3336
      %v3912 = vpop.f32.mrb[0].mxu0
      %v3913 = vadd.f32 %v3752, %v3912
      %v3914 = vpop.f32.mrb[0].mxu0
      %v3915 = vpop.f32.mrb[0].mxu0
      %v3916 = vadd.f32 %v3755, %v3915
      %v3917 = vpop.f32.mrb[0].mxu0
      %3918 = vmatprep.mubr.bf16.mxu0 %v3342
      %3919 = vmatmul.mubr.bf16.gmra.mrb[0].mxu0 %v3341
      %v3920 = vpop.f32.mrb[0].mxu0
      %v3921 = vadd.f32 %v3760, %v3920
      %v3922 = vpop.f32.mrb[0].mxu0
      %v3923 = vpop.f32.mrb[0].mxu0
      %v3924 = vadd.f32 %v3763, %v3923
      %v3925 = vpop.f32.mrb[0].mxu0
      %3926 = vmatprep.mubr.bf16.mxu0 %v3347
      %3927 = vmatmul.mubr.bf16.gmra.mrb[0].mxu0 %v3346
      %v3928 = vpop.f32.mrb[0].mxu0
      %v3929 = vadd.f32 %v3768, %v3928
      %v3930 = vpop.f32.mrb[0].mxu0
      %v3931 = vpop.f32.mrb[0].mxu0
      %v3932 = vadd.f32 %v3771, %v3931
      %v3933 = vpop.f32.mrb[0].mxu0
      %3934 = vmatprep.mubr.bf16.mxu0 %v3352
      %3935 = vmatmul.mubr.bf16.gmra.mrb[0].mxu0 %v3351
      %v3936 = vpop.f32.mrb[0].mxu0
      %v3937 = vadd.f32 %v3776, %v3936
      %v3938 = vpop.f32.mrb[0].mxu0
      %v3939 = vpop.f32.mrb[0].mxu0
      %v3940 = vadd.f32 %v3779, %v3939
      %v3941 = vpop.f32.mrb[0].mxu0
      %3942 = vmatprep.mubr.bf16.mxu0 %v3357
      %3943 = vmatmul.mubr.bf16.gmra.mrb[0].mxu0 %v3356
      %v3944 = vpop.f32.mrb[0].mxu0
      %v3945 = vadd.f32 %v3784, %v3944
      %v3946 = vpop.f32.mrb[0].mxu0
      %v3947 = vpop.f32.mrb[0].mxu0
      %v3948 = vadd.f32 %v3787, %v3947
      %v3949 = vpop.f32.mrb[0].mxu0
      %3950 = vdwg.mxu0
      %3951 = vmatprep.subr.bf16.mxu0 0
      %3952 = vmatpush1.bf16.msra.mxu0 %v3541
      %3953 = vmatprep.subr.bf16.mxu0 0
      %3954 = vmatpush1.bf16.msra.mxu0 %v3542
      %3955 = vmatprep.subr.bf16.mxu0 0
      %3956 = vmatpush1.bf16.msra.mxu0 %v3543
      %3957 = vmatprep.subr.bf16.mxu0 0
      %3958 = vmatpush1.bf16.msra.mxu0 %v3544
      %3959 = vmatprep.subr.bf16.mxu0 0
      %3960 = vmatpush1.bf16.msra.mxu0 0
      %3961 = vmatprep.subr.bf16.mxu0 0
      %3962 = vmatpush1.bf16.msra.mxu0 0
      %3963 = vmatprep.subr.bf16.mxu0 0
      %3964 = vmatpush1.bf16.msra.mxu0 0
      %3965 = vmatprep.subr.bf16.mxu0 0
      %3966 = vmatpush1.bf16.msra.mxu0 0
      %3967 = vmatprep.subr.bf16.mxu0 0
      %3968 = vmatpush1.bf16.msra.mxu0 0
      %3969 = vmatprep.subr.bf16.mxu0 0
      %3970 = vmatpush1.bf16.msra.mxu0 0
      %3971 = vmatprep.subr.bf16.mxu0 0
      %3972 = vmatpush1.bf16.msra.mxu0 0
      %3973 = vmatprep.subr.bf16.mxu0 0
      %3974 = vmatpush1.bf16.msra.mxu0 0
      %3975 = vmatprep.subr.bf16.mxu0 0
      %3976 = vmatpush1.bf16.msra.mxu0 0
      %3977 = vmatprep.subr.bf16.mxu0 0
      %3978 = vmatpush1.bf16.msra.mxu0 0
      %3979 = vmatprep.subr.bf16.mxu0 0
      %3980 = vmatpush1.bf16.msra.mxu0 0
      %3981 = vmatprep.subr.bf16.mxu0 0
      %3982 = vmatpush1.bf16.msra.mxu0 0
      %3983 = vmatprep.mubr.bf16.mxu0 0
      %3984 = vmatmul.mubr.bf16.gmra.mrb[0].mxu0 %v3582
      %v3985 = vpop.f32.mrb[0].mxu0
      %v3986 = vadd.f32 %v3825, %v3985
      %v3987 = vpop.f32.mrb[0].mxu0
      %v3988 = vpop.f32.mrb[0].mxu0
      %v3989 = vadd.f32 %v3828, %v3988
      %v3990 = vpop.f32.mrb[0].mxu0
      %3991 = vmatprep.mubr.bf16.mxu0 0
      %3992 = vmatmul.mubr.bf16.gmra.mrb[0].mxu0 %v3585
      %v3993 = vpop.f32.mrb[0].mxu0
      %v3994 = vadd.f32 %v3833, %v3993
      %v3995 = vpop.f32.mrb[0].mxu0
      %v3996 = vpop.f32.mrb[0].mxu0
      %v3997 = vadd.f32 %v3836, %v3996
      %v3998 = vpop.f32.mrb[0].mxu0
      %3999 = vmatprep.mubr.bf16.mxu0 0
      %4000 = vmatmul.mubr.bf16.gmra.mrb[0].mxu0 %v3588
      %v4001 = vpop.f32.mrb[0].mxu0
      %v4002 = vadd.f32 %v3841, %v4001
      %v4003 = vpop.f32.mrb[0].mxu0
      %v4004 = vpop.f32.mrb[0].mxu0
      %v4005 = vadd.f32 %v3844, %v4004
      %v4006 = vpop.f32.mrb[0].mxu0
      %4007 = vmatprep.mubr.bf16.mxu0 0
      %4008 = vmatmul.mubr.bf16.gmra.mrb[0].mxu0 %v3591
      %v4009 = vpop.f32.mrb[0].mxu0
      %v4010 = vadd.f32 %v3849, %v4009
      %v4011 = vpop.f32.mrb[0].mxu0
      %v4012 = vpop.f32.mrb[0].mxu0
      %v4013 = vadd.f32 %v3852, %v4012
      %v4014 = vpop.f32.mrb[0].mxu0
      %4015 = vmatprep.mubr.bf16.mxu0 0
      %4016 = vmatmul.mubr.bf16.gmra.mrb[0].mxu0 %v3594
      %v4017 = vpop.f32.mrb[0].mxu0
      %v4018 = vadd.f32 %v3857, %v4017
      %v4019 = vpop.f32.mrb[0].mxu0
      %v4020 = vpop.f32.mrb[0].mxu0
      %v4021 = vadd.f32 %v3860, %v4020
      %v4022 = vpop.f32.mrb[0].mxu0
      %4023 = vmatprep.mubr.bf16.mxu0 0
      %4024 = vmatmul.mubr.bf16.gmra.mrb[0].mxu0 %v3597
      %v4025 = vpop.f32.mrb[0].mxu0
      %v4026 = vadd.f32 %v3865, %v4025
      %v4027 = vpop.f32.mrb[0].mxu0
      %v4028 = vpop.f32.mrb[0].mxu0
      %v4029 = vadd.f32 %v3868, %v4028
      %v4030 = vpop.f32.mrb[0].mxu0
      %4031 = vmatprep.mubr.bf16.mxu0 0
      %4032 = vmatmul.mubr.bf16.gmra.mrb[0].mxu0 %v3600
      %v4033 = vpop.f32.mrb[0].mxu0
      %v4034 = vadd.f32 %v3873, %v4033
      %v4035 = vpop.f32.mrb[0].mxu0
      %v4036 = vpop.f32.mrb[0].mxu0
      %v4037 = vadd.f32 %v3876, %v4036
      %v4038 = vpop.f32.mrb[0].mxu0
      %4039 = vmatprep.mubr.bf16.mxu0 0
      %4040 = vmatmul.mubr.bf16.gmra.mrb[0].mxu0 %v3603
      %v4041 = vpop.f32.mrb[0].mxu0
      %v4042 = vadd.f32 %v3881, %v4041
      %v4043 = vpop.f32.mrb[0].mxu0
      %v4044 = vpop.f32.mrb[0].mxu0
      %v4045 = vadd.f32 %v3884, %v4044
      %v4046 = vpop.f32.mrb[0].mxu0
      %4047 = vmatprep.mubr.bf16.mxu0 0
      %4048 = vmatmul.mubr.bf16.gmra.mrb[0].mxu0 %v3606
      %v4049 = vpop.f32.mrb[0].mxu0
      %v4050 = vadd.f32 %v3889, %v4049
      %v4051 = vpop.f32.mrb[0].mxu0
      %v4052 = vpop.f32.mrb[0].mxu0
      %v4053 = vadd.f32 %v3892, %v4052
      %v4054 = vpop.f32.mrb[0].mxu0
      %4055 = vmatprep.mubr.bf16.mxu0 0
      %4056 = vmatmul.mubr.bf16.gmra.mrb[0].mxu0 %v3609
      %v4057 = vpop.f32.mrb[0].mxu0
      %v4058 = vadd.f32 %v3897, %v4057
      %v4059 = vpop.f32.mrb[0].mxu0
      %v4060 = vpop.f32.mrb[0].mxu0
      %v4061 = vadd.f32 %v3900, %v4060
      %v4062 = vpop.f32.mrb[0].mxu0
      %4063 = vmatprep.mubr.bf16.mxu0 0
      %4064 = vmatmul.mubr.bf16.gmra.mrb[0].mxu0 %v3612
      %v4065 = vpop.f32.mrb[0].mxu0
      %v4066 = vadd.f32 %v3905, %v4065
      %v4067 = vpop.f32.mrb[0].mxu0
      %v4068 = vpop.f32.mrb[0].mxu0
      %v4069 = vadd.f32 %v3908, %v4068
      %v4070 = vpop.f32.mrb[0].mxu0
      %4071 = vmatprep.mubr.bf16.mxu0 0
      %4072 = vmatmul.mubr.bf16.gmra.mrb[0].mxu0 %v3615
      %v4073 = vpop.f32.mrb[0].mxu0
      %v4074 = vadd.f32 %v3913, %v4073
      %v4075 = vpop.f32.mrb[0].mxu0
      %v4076 = vpop.f32.mrb[0].mxu0
      %v4077 = vadd.f32 %v3916, %v4076
      %v4078 = vpop.f32.mrb[0].mxu0
      %4079 = vmatprep.mubr.bf16.mxu0 0
      %4080 = vmatmul.mubr.bf16.gmra.mrb[0].mxu0 %v3618
      %v4081 = vpop.f32.mrb[0].mxu0
      %v4082 = vadd.f32 %v3921, %v4081
      %v4083 = vpop.f32.mrb[0].mxu0
      %v4084 = vpop.f32.mrb[0].mxu0
      %v4085 = vadd.f32 %v3924, %v4084
      %v4086 = vpop.f32.mrb[0].mxu0
      %4087 = vmatprep.mubr.bf16.mxu0 0
      %4088 = vmatmul.mubr.bf16.gmra.mrb[0].mxu0 %v3621
      %v4089 = vpop.f32.mrb[0].mxu0
      %v4090 = vadd.f32 %v3929, %v4089
      %v4091 = vpop.f32.mrb[0].mxu0
      %v4092 = vpop.f32.mrb[0].mxu0
      %v4093 = vadd.f32 %v3932, %v4092
      %v4094 = vpop.f32.mrb[0].mxu0
      %4095 = vmatprep.mubr.bf16.mxu0 0
      %4096 = vmatmul.mubr.bf16.gmra.mrb[0].mxu0 %v3624
      %v4097 = vpop.f32.mrb[0].mxu0
      %v4098 = vadd.f32 %v3937, %v4097
      %v4099 = vpop.f32.mrb[0].mxu0
      %v4100 = vpop.f32.mrb[0].mxu0
      %v4101 = vadd.f32 %v3940, %v4100
      %v4102 = vpop.f32.mrb[0].mxu0
      %4103 = vmatprep.mubr.bf16.mxu0 0
      %4104 = vmatmul.mubr.bf16.gmra.mrb[0].mxu0 %v3627
      %v4105 = vpop.f32.mrb[0].mxu0
      %v4106 = vadd.f32 %v3945, %v4105
      %v4107 = vpop.f32.mrb[0].mxu0
      %v4108 = vpop.f32.mrb[0].mxu0
      %v4109 = vadd.f32 %v3948, %v4108
      %v4110 = vpop.f32.mrb[0].mxu0
      %4111 = vdwg.mxu0
      %4128 = vrot.lane.b32.xlu0 %v4050, 64
      %v4129 = vpop.permute.xlu0 %4128
      %4130 = vrot.lane.b32.xlu0 %v4053, 64
      %v4131 = vpop.permute.xlu0 %4130
      %4132 = vrot.lane.b32.xlu0 %v4058, 64
      %v4133 = vpop.permute.xlu0 %4132
      %4134 = vrot.lane.b32.xlu0 %v4061, 64
      %v4135 = vpop.permute.xlu0 %4134
      %4136 = vrot.lane.b32.xlu0 %v4066, 64
      %v4137 = vpop.permute.xlu0 %4136
      %4138 = vrot.lane.b32.xlu0 %v4069, 64
      %v4139 = vpop.permute.xlu0 %4138
      %4140 = vrot.lane.b32.xlu0 %v4074, 64
      %v4141 = vpop.permute.xlu0 %4140
      %4142 = vrot.lane.b32.xlu0 %v4077, 64
      %v4143 = vpop.permute.xlu0 %4142
      %4144 = vrot.lane.b32.xlu0 %v4082, 64
      %v4145 = vpop.permute.xlu0 %4144
      %4146 = vrot.lane.b32.xlu0 %v4085, 64
      %v4147 = vpop.permute.xlu0 %4146
      %4148 = vrot.lane.b32.xlu0 %v4090, 64
      %v4149 = vpop.permute.xlu0 %4148
      %4150 = vrot.lane.b32.xlu0 %v4093, 64
      %v4151 = vpop.permute.xlu0 %4150
      %4152 = vrot.lane.b32.xlu0 %v4098, 64
      %v4153 = vpop.permute.xlu0 %4152
      %4154 = vrot.lane.b32.xlu0 %v4101, 64
      %v4155 = vpop.permute.xlu0 %4154
      %4156 = vrot.lane.b32.xlu0 %v4106, 64
      %v4157 = vpop.permute.xlu0 %4156
      %4158 = vrot.lane.b32.xlu0 %v4109, 64
      %v4159 = vpop.permute.xlu0 %4158
      %v4176 = vsel %vm226, %v3986, %v4129
      %v4177 = vsel %vm226, %v3989, %v4131
      %v4178 = vsel %vm226, %v3994, %v4133
      %v4179 = vsel %vm226, %v3997, %v4135
      %v4180 = vsel %vm226, %v4002, %v4137
      %v4181 = vsel %vm226, %v4005, %v4139
      %v4182 = vsel %vm226, %v4010, %v4141
      %v4183 = vsel %vm226, %v4013, %v4143
      %v4184 = vsel %vm226, %v4018, %v4145
      %v4185 = vsel %vm226, %v4021, %v4147
      %v4186 = vsel %vm226, %v4026, %v4149
      %v4187 = vsel %vm226, %v4029, %v4151
      %v4188 = vsel %vm226, %v4034, %v4153
      %v4189 = vsel %vm226, %v4037, %v4155
      %v4190 = vsel %vm226, %v4042, %v4157
      %v4191 = vsel %vm226, %v4045, %v4159
      %4192 = vst [vmem:[%s224] sm:$0xff] %v4176
      %4193 = vst [vmem:[%s224 + $0x8] sm:$0xff] %v4177
      %4194 = vst [vmem:[%s224 + $0x10] sm:$0xff] %v4178
      %4195 = vst [vmem:[%s224 + $0x18] sm:$0xff] %v4179
      %4196 = vst [vmem:[%s224 + $0x20] sm:$0xff] %v4180
      %4197 = vst [vmem:[%s224 + $0x28] sm:$0xff] %v4181
      %4198 = vst [vmem:[%s224 + $0x30] sm:$0xff] %v4182
      %4199 = vst [vmem:[%s224 + $0x38] sm:$0xff] %v4183
      %4200 = vst [vmem:[%s224 + $0x40] sm:$0xff] %v4184
      %4201 = vst [vmem:[%s224 + $0x48] sm:$0xff] %v4185
      %4202 = vst [vmem:[%s224 + $0x50] sm:$0xff] %v4186
      %4203 = vst [vmem:[%s224 + $0x58] sm:$0xff] %v4187
      %4204 = vst [vmem:[%s224 + $0x60] sm:$0xff] %v4188
      %4205 = vst [vmem:[%s224 + $0x68] sm:$0xff] %v4189
      %4206 = vst [vmem:[%s224 + $0x70] sm:$0xff] %v4190
      %4207 = vst [vmem:[%s224 + $0x78] sm:$0xff] %v4191
      %p4208 = scmp.lt.s32.totalorder %s16, 1
      %s4209 = scalar_select %p4208, %s16, 1
      %s4210 = smul.addr %s4209, 16
      %s4211 = smul.addr %s4210, 8
      %s4212 = scalar_lea.vmem %s5, %s4211
      // Predicated region
      $region41: #{block_forward.1} parent=39 // pred_check
        %p4213 = pneg %p144
      $region42: #{block_forward.1} parent=39 // pred_check_branch
        %4215 = sbr.rel (%p4213) target = $region44
      $region43: #{block_forward.1} parent=39 // pred_region
        _
      $region44: #{block_forward.1} parent=39 // pred_fallthru
        _
    $region40: #{block_forward.1} parent=5 // pred_fallthru
      _
    %p4216 = scmp.le.s32.totalorder 2, %s11
    // Predicated region
    $region45: #{block_forward.1} parent=5 // pred_check
      %p4217 = pneg %p4216
    $region46: #{block_forward.1} parent=5 // pred_check_branch
      %4219 = sbr.rel (%p4217) target = $region48
    $region47: #{block_forward.1} parent=5 // pred_region
      %s4220 = ssub.s32 %s11, 2
      // Predicated region
      $region49: #{block_forward.1} parent=47 // pred_check
        %p4221 = pneg %p150
      $region50: #{block_forward.1} parent=47 // pred_check_branch
        %4223 = sbr.rel (%p4221) target = $region52
      $region51: #{block_forward.1} parent=47 // pred_region
        %p4224 = scmp.lt.s32.totalorder %s17, 1
        %s4225 = scalar_select %p4224, %s17, 1
        %s4226 = smul.addr %s4225, 16
        %s4227 = smul.addr %s4226, 8
        %s4228 = scalar_lea.vmem %s5, %s4227
      $region52: #{block_forward.1} parent=47 // pred_fallthru
        _
    $region48: #{block_forward.1} parent=5 // pred_fallthru
      _
  $region6: #{block_forward.1} parent=0 // loop_footer
    %s15 = sadd.s32 1, %s11
  $region7: #{block_forward.1} parent=0 // loop_footer_branch
    %10 = sbr.rel target = $region3
  $region8: #{block_forward.1} parent=0 // loop_exit
    _

</llo_original>
